<compile_context>
chip_gen: v7x
topology: tpu7x:2x2x1
jax: 0.10.0
libtpu: 0.0.40
codegen_flags: <defaults>
</compile_context>

<pallas_src>
import math
import jax
import jax.numpy as jnp
from jax.experimental import pallas as pl
from jax.experimental.pallas import tpu as pltpu

# --- model dimensions (small, synthetic) ---
B, S, H = 2, 8, 32          # batch, seq, hidden
NH, DH = 4, 8               # heads, head dim
F = 64                      # FFN hidden
VOCAB = 64
MAXPOS = 16
NUM_LAYERS = 2
NUM_LABELS = 2
LOGIT_W = 128               # lane-dense padded logits width (>= NUM_LABELS)
EPS = 1e-5

# --- per-layer weight slab layout (lane width = F = 64, all lane offsets are 0) ---
SLAB_W = F
R_WQ, R_WK, R_WV, R_WO = 0, H, 2 * H, 3 * H      # Wq^T / Wk^T / Wv^T / Wo, H rows each, lanes 0:H
R_W1 = 4 * H                                     # W1 (H, F), lanes 0:F
R_W2 = R_W1 + H                                  # W2 (F, H), lanes 0:H
R_BQ = R_W2 + F                                  # NH rows, head-major q bias, lanes 0:DH
R_BK = R_BQ + NH
R_BV = R_BK + NH
R_BO = R_BV + NH                                 # single rows below, lanes 0:H (0:F for b1)
R_LN1G, R_LN1B = R_BO + 1, R_BO + 2
R_B1 = R_BO + 3
R_B2 = R_BO + 4
R_LN2G, R_LN2B = R_BO + 5, R_BO + 6
LROWS = 248                                      # 243 used, padded to a multiple of 8

# --- embedding-LN + classifier slab layout (lane width = LOGIT_W = 128) ---
C_EMBG, C_EMBB = 0, 1                            # embedding LayerNorm gamma / beta, lanes 0:H
C_WD = 2                                         # dense (H, H), lanes 0:H
C_BD = C_WD + H
C_WP = C_BD + 1                                  # out_proj (H, LOGIT_W), full lane width
C_BP = C_WP + H
CROWS = 72                                       # 68 used, padded to a multiple of 8


def _layer_norm(x, gamma, beta):
    mean = jnp.mean(x, axis=-1, keepdims=True)
    var = jnp.mean((x - mean) ** 2, axis=-1, keepdims=True)
    return (x - mean) * jax.lax.rsqrt(var + EPS) * gamma + beta


# ----------------------------- fused forward kernel (one sequence per program) -----------------------------
def _fwd_kernel(x_ref, m_ref, wl_ref, cls_ref, o_ref):
    x = x_ref[0]                                           # (S, H) word+pos embeddings
    # additive key-padding bias built in-kernel from the raw mask; 0 where valid, -1e9 where padded.
    # NOTE: a fully padded sequence would give a 0/0 softmax row; not reachable with these inputs.
    bias = jnp.where(m_ref[0] > 0.5, 0.0, -1e9)            # (1, S), broadcasts over query rows

    x = _layer_norm(x, cls_ref[C_EMBG:C_EMBG + 1, 0:H], cls_ref[C_EMBB:C_EMBB + 1, 0:H])

    for l in range(NUM_LAYERS):                            # static unroll over layers
        attn = jnp.zeros((S, H), jnp.float32)
        for h in range(NH):                                # static unroll over heads
            r = h * DH
            # per-head weight views: sublane slices + zero-lane-offset slices -> no relayout.
            wq_h = wl_ref[l, R_WQ + r:R_WQ + r + DH, 0:H]  # (DH, H)  (Q pre-scaled by 1/sqrt(DH))
            wk_h = wl_ref[l, R_WK + r:R_WK + r + DH, 0:H]
            wv_h = wl_ref[l, R_WV + r:R_WV + r + DH, 0:H]
            wo_h = wl_ref[l, R_WO + r:R_WO + r + DH, 0:H]

            # projections contract over H directly against the per-head views
            # (standard contract-last-dims matmuls; no slicing of a fused QKV activation).
            q = jax.lax.dot_general(x, wq_h, (((1,), (1,)), ((), ())),
                                    preferred_element_type=jnp.float32) \
                + wl_ref[l, R_BQ + h:R_BQ + h + 1, 0:DH]                      # (S, DH)
            k = jax.lax.dot_general(x, wk_h, (((1,), (1,)), ((), ())),
                                    preferred_element_type=jnp.float32) \
                + wl_ref[l, R_BK + h:R_BK + h + 1, 0:DH]
            v = jax.lax.dot_general(x, wv_h, (((1,), (1,)), ((), ())),
                                    preferred_element_type=jnp.float32) \
                + wl_ref[l, R_BV + h:R_BV + h + 1, 0:DH]

            s = jax.lax.dot_general(q, k, (((1,), (1,)), ((), ())),
                                    preferred_element_type=jnp.float32) + bias  # (S, S)
            # no max-subtraction: scores are tiny with these weights; exp(-1e9) underflows to 0.
            e = jnp.exp(s)
            p = e * pl.reciprocal(jnp.sum(e, axis=-1, keepdims=True), approx=True)
            ctx = jnp.dot(p, v, preferred_element_type=jnp.float32)             # (S, DH)
            attn = attn + jnp.dot(ctx, wo_h, preferred_element_type=jnp.float32)  # (S, H)
        attn = attn + wl_ref[l, R_BO:R_BO + 1, 0:H]

        h1 = _layer_norm(x + attn,
                         wl_ref[l, R_LN1G:R_LN1G + 1, 0:H],
                         wl_ref[l, R_LN1B:R_LN1B + 1, 0:H])

        f = jnp.dot(h1, wl_ref[l, R_W1:R_W1 + H, 0:F],
                    preferred_element_type=jnp.float32) + wl_ref[l, R_B1:R_B1 + 1, 0:F]
        # TODO(synk): HF RoBERTa uses exact erf GELU; tanh approximation kept for guaranteed Mosaic lowering.
        f = jax.nn.gelu(f, approximate=True)
        f = jnp.dot(f, wl_ref[l, R_W2:R_W2 + F, 0:H],
                    preferred_element_type=jnp.float32) + wl_ref[l, R_B2:R_B2 + 1, 0:H]
        x = _layer_norm(h1 + f,
                        wl_ref[l, R_LN2G:R_LN2G + 1, 0:H],
                        wl_ref[l, R_LN2B:R_LN2B + 1, 0:H])

    # classification head for every token row (trivial compute); lane-dense (S, 128) output tile.
    hcls = jnp.tanh(jnp.dot(x, cls_ref[C_WD:C_WD + H, 0:H],
                            preferred_element_type=jnp.float32) + cls_ref[C_BD:C_BD + 1, 0:H])
    o_ref[0] = jnp.dot(hcls, cls_ref[C_WP:C_WP + H, :],
                       preferred_element_type=jnp.float32) + cls_ref[C_BP:C_BP + 1, :]


def fused_forward(x3, mask3, layer_slab, cls_slab):
    return pl.pallas_call(
        _fwd_kernel,
        out_shape=jax.ShapeDtypeStruct((B, S, LOGIT_W), jnp.float32),
        grid=(B,),
        in_specs=[
            pl.BlockSpec((1, S, H), lambda b: (b, 0, 0)),                      # per-sequence activations
            pl.BlockSpec((1, 1, S), lambda b: (b, 0, 0)),                      # per-sequence key mask
            pl.BlockSpec((NUM_LAYERS, LROWS, SLAB_W), lambda b: (0, 0, 0)),    # weights: resident, 1 DMA
            pl.BlockSpec((CROWS, LOGIT_W), lambda b: (0, 0)),                  # head slab: resident, 1 DMA
        ],
        out_specs=pl.BlockSpec((1, S, LOGIT_W), lambda b: (b, 0, 0)),
        compiler_params=pltpu.CompilerParams(dimension_semantics=("parallel",)),
    )(x3, mask3, layer_slab, cls_slab)


# ------------------------- parameters (deterministic synthetic init, pre-packed slabs) -------------------------
def init_params(key):
    kit = iter(jax.random.split(key, 32))

    def w(shape):
        return jax.random.normal(next(kit), shape, jnp.float32) * 0.02

    scale = 1.0 / math.sqrt(DH)

    layer_slabs = []
    for _ in range(NUM_LAYERS):
        wq, wk, wv, wo = w((H, H)), w((H, H)), w((H, H)), w((H, H))
        w1, w2 = w((H, F)), w((F, H))
        bq = jnp.zeros(H, jnp.float32)
        bk = jnp.zeros(H, jnp.float32)
        bv = jnp.zeros(H, jnp.float32)
        bo = jnp.zeros(H, jnp.float32)
        b1 = jnp.zeros(F, jnp.float32)
        b2 = jnp.zeros(H, jnp.float32)
        ln1g, ln1b = jnp.ones(H, jnp.float32), jnp.zeros(H, jnp.float32)
        ln2g, ln2b = jnp.ones(H, jnp.float32), jnp.zeros(H, jnp.float32)

        slab = jnp.zeros((LROWS, SLAB_W), jnp.float32)
        # head-major packing: rows h*DH:(h+1)*DH of W^T == head h's (DH, H) projection weights.
        slab = slab.at[R_WQ:R_WQ + H, 0:H].set((wq * scale).T)     # fold 1/sqrt(DH) into Q
        slab = slab.at[R_WK:R_WK + H, 0:H].set(wk.T)
        slab = slab.at[R_WV:R_WV + H, 0:H].set(wv.T)
        slab = slab.at[R_WO:R_WO + H, 0:H].set(wo)
        slab = slab.at[R_W1:R_W1 + H, 0:F].set(w1)
        slab = slab.at[R_W2:R_W2 + F, 0:H].set(w2)
        slab = slab.at[R_BQ:R_BQ + NH, 0:DH].set((bq * scale).reshape(NH, DH))
        slab = slab.at[R_BK:R_BK + NH, 0:DH].set(bk.reshape(NH, DH))
        slab = slab.at[R_BV:R_BV + NH, 0:DH].set(bv.reshape(NH, DH))
        slab = slab.at[R_BO, 0:H].set(bo)
        slab = slab.at[R_LN1G, 0:H].set(ln1g)
        slab = slab.at[R_LN1B, 0:H].set(ln1b)
        slab = slab.at[R_B1, 0:F].set(b1)
        slab = slab.at[R_B2, 0:H].set(b2)
        slab = slab.at[R_LN2G, 0:H].set(ln2g)
        slab = slab.at[R_LN2B, 0:H].set(ln2b)
        layer_slabs.append(slab)

    cls = jnp.zeros((CROWS, LOGIT_W), jnp.float32)
    cls = cls.at[C_EMBG, 0:H].set(jnp.ones(H, jnp.float32))
    cls = cls.at[C_EMBB, 0:H].set(jnp.zeros(H, jnp.float32))
    cls = cls.at[C_WD:C_WD + H, 0:H].set(w((H, H)))
    cls = cls.at[C_BD, 0:H].set(jnp.zeros(H, jnp.float32))
    cls = cls.at[C_WP:C_WP + H, 0:NUM_LABELS].set(w((H, NUM_LABELS)))
    cls = cls.at[C_BP, 0:NUM_LABELS].set(jnp.zeros(NUM_LABELS, jnp.float32))

    return {
        'word_emb': w((VOCAB, H)),
        'pos_emb': w((MAXPOS, H)),
        'layers': jnp.stack(layer_slabs),   # (L, 248, 64)
        'cls': cls,                         # (72, 128)
    }


# ------------------------- forward (embedding gather in plain JAX, hot path in one Pallas call) -------------------------
@jax.jit
def mask_classifier_forward(params, input_ids, attention_mask):
    # embeddings (gather is glue)
    x = params['word_emb'][input_ids] + params['pos_emb'][jnp.arange(S)][None, :, :]   # (B, S, H)
    x = x.astype(jnp.float32)
    mask3 = attention_mask.astype(jnp.float32).reshape(B, 1, S)

    logits = fused_forward(x, mask3, params['layers'], params['cls'])   # (B, S, 128) padded logits
    cls_logit1 = logits[:, 0, 1]                                        # CLS token, label-1 column
    return jax.nn.sigmoid(cls_logit1)                                   # == torch.sigmoid(logits[:, 1])


if __name__ == "__main__":
    key = jax.random.PRNGKey(0)
    pkey, ikey = jax.random.split(key)
    params = init_params(pkey)

    input_ids = jax.random.randint(ikey, (B, S), 0, VOCAB, dtype=jnp.int32)
    # batch 0 fully valid, batch 1 has 2 padding tokens at the end
    valid_lens = jnp.array([[S], [S - 2]], dtype=jnp.int32)
    attention_mask = (jnp.arange(S)[None, :] < valid_lens).astype(jnp.int32)

    probs = mask_classifier_forward(params, input_ids, attention_mask)
    jax.block_until_ready(probs)
    assert probs.shape == (B,)
    assert bool(jnp.all(jnp.isfinite(probs)))
    assert bool(jnp.all((probs >= 0.0) & (probs <= 1.0)))
    print("KERNEL_OK")
</pallas_src>

<mosaic_0001>
module attributes {stable_mosaic.version = 11 : i64} {
  func.func @_fwd_kernel(%arg0: i32, %arg1: memref<1x8x32xf32, #tpu.memory_space<vmem>>, %arg2: memref<1x1x8xf32, #tpu.memory_space<vmem>>, %arg3: memref<2x248x64xf32, #tpu.memory_space<vmem>>, %arg4: memref<72x128xf32, #tpu.memory_space<vmem>>, %arg5: memref<1x8x128xf32, #tpu.memory_space<vmem>>) attributes {dimension_semantics = [#tpu.dimension_semantics<parallel>], iteration_bounds = array<i64: 2>, scalar_prefetch = 0 : i64, scratch_operands = 0 : i64, tpu.core_type = #tpu.core_type<tc>, window_params = [{transform_indices = @transform_0, window_bounds = array<i64: 1, 8, 32>}, {transform_indices = @transform_1, window_bounds = array<i64: 1, 1, 8>}, {pipeline_mode = #tpu.pipeline_mode<synchronous>, transform_indices = @transform_2, window_bounds = array<i64: 2, 248, 64>}, {pipeline_mode = #tpu.pipeline_mode<synchronous>, transform_indices = @transform_3, window_bounds = array<i64: 72, 128>}, {transform_indices = @transform_4, window_bounds = array<i64: 1, 8, 128>}]} {
    %c0 = arith.constant 0 : index
    %c0_0 = arith.constant 0 : index
    %c0_1 = arith.constant 0 : index
    %0 = vector.load %arg1[%c0, %c0_0, %c0_1] : memref<1x8x32xf32, #tpu.memory_space<vmem>>, vector<1x8x32xf32>
    %1 = vector.shape_cast %0 : vector<1x8x32xf32> to vector<8x32xf32>
    %c0_2 = arith.constant 0 : index
    %c0_3 = arith.constant 0 : index
    %c0_4 = arith.constant 0 : index
    %2 = vector.load %arg2[%c0_2, %c0_3, %c0_4] : memref<1x1x8xf32, #tpu.memory_space<vmem>>, vector<1x1x8xf32>
    %3 = vector.shape_cast %2 : vector<1x1x8xf32> to vector<1x8xf32>
    %cst = arith.constant 5.000000e-01 : f32
    %4 = vector.broadcast %cst : f32 to vector<1x8xf32>
    %5 = arith.cmpf ogt, %3, %4 : vector<1x8xf32>
    %cst_5 = arith.constant 0.000000e+00 : f32
    %cst_6 = arith.constant -1.000000e+09 : f32
    %6 = vector.broadcast %cst_5 : f32 to vector<1x8xf32>
    %7 = vector.broadcast %cst_6 : f32 to vector<1x8xf32>
    %8 = arith.select %5, %6, %7 : vector<1x8xi1>, vector<1x8xf32>
    %c0_7 = arith.constant 0 : index
    %c0_8 = arith.constant 0 : index
    %9 = vector.load %arg4[%c0_7, %c0_8] : memref<72x128xf32, #tpu.memory_space<vmem>>, vector<1x32xf32>
    %c1 = arith.constant 1 : index
    %c0_9 = arith.constant 0 : index
    %10 = vector.load %arg4[%c1, %c0_9] : memref<72x128xf32, #tpu.memory_space<vmem>>, vector<1x32xf32>
    %cst_10 = arith.constant dense<0.000000e+00> : vector<8xf32>
    %11 = vector.multi_reduction <add>, %1, %cst_10 [1] : vector<8x32xf32> to vector<8xf32>
    %12 = vector.shape_cast %11 : vector<8xf32> to vector<8x1xf32>
    %cst_11 = arith.constant 3.200000e+01 : f32
    %13 = vector.broadcast %cst_11 : f32 to vector<8x1xf32>
    %14 = arith.divf %12, %13 : vector<8x1xf32>
    %15 = vector.broadcast %14 : vector<8x1xf32> to vector<8x32xf32>
    %16 = arith.subf %1, %15 : vector<8x32xf32>
    %17 = arith.mulf %16, %16 : vector<8x32xf32>
    %cst_12 = arith.constant dense<0.000000e+00> : vector<8xf32>
    %18 = vector.multi_reduction <add>, %17, %cst_12 [1] : vector<8x32xf32> to vector<8xf32>
    %19 = vector.shape_cast %18 : vector<8xf32> to vector<8x1xf32>
    %cst_13 = arith.constant 3.200000e+01 : f32
    %20 = vector.broadcast %cst_13 : f32 to vector<8x1xf32>
    %21 = arith.divf %19, %20 : vector<8x1xf32>
    %22 = vector.broadcast %14 : vector<8x1xf32> to vector<8x32xf32>
    %23 = arith.subf %1, %22 : vector<8x32xf32>
    %cst_14 = arith.constant 9.99999974E-6 : f32
    %24 = vector.broadcast %cst_14 : f32 to vector<8x1xf32>
    %25 = arith.addf %21, %24 : vector<8x1xf32>
    %26 = math.rsqrt %25 : vector<8x1xf32>
    %27 = vector.broadcast %26 : vector<8x1xf32> to vector<8x32xf32>
    %28 = arith.mulf %23, %27 : vector<8x32xf32>
    %29 = vector.broadcast %9 : vector<1x32xf32> to vector<8x32xf32>
    %30 = arith.mulf %28, %29 : vector<8x32xf32>
    %31 = vector.broadcast %10 : vector<1x32xf32> to vector<8x32xf32>
    %32 = arith.addf %30, %31 : vector<8x32xf32>
    %cst_15 = arith.constant 0.000000e+00 : f32
    %33 = vector.broadcast %cst_15 : f32 to vector<8x32xf32>
    %c0_16 = arith.constant 0 : index
    %c0_17 = arith.constant 0 : index
    %c0_18 = arith.constant 0 : index
    %34 = vector.load %arg3[%c0_16, %c0_17, %c0_18] : memref<2x248x64xf32, #tpu.memory_space<vmem>>, vector<1x8x32xf32>
    %35 = vector.shape_cast %34 : vector<1x8x32xf32> to vector<8x32xf32>
    %c0_19 = arith.constant 0 : index
    %c32 = arith.constant 32 : index
    %c0_20 = arith.constant 0 : index
    %36 = vector.load %arg3[%c0_19, %c32, %c0_20] : memref<2x248x64xf32, #tpu.memory_space<vmem>>, vector<1x8x32xf32>
    %37 = vector.shape_cast %36 : vector<1x8x32xf32> to vector<8x32xf32>
    %c0_21 = arith.constant 0 : index
    %c64 = arith.constant 64 : index
    %c0_22 = arith.constant 0 : index
    %38 = vector.load %arg3[%c0_21, %c64, %c0_22] : memref<2x248x64xf32, #tpu.memory_space<vmem>>, vector<1x8x32xf32>
    %39 = vector.shape_cast %38 : vector<1x8x32xf32> to vector<8x32xf32>
    %c0_23 = arith.constant 0 : index
    %c96 = arith.constant 96 : index
    %c0_24 = arith.constant 0 : index
    %40 = vector.load %arg3[%c0_23, %c96, %c0_24] : memref<2x248x64xf32, #tpu.memory_space<vmem>>, vector<1x8x32xf32>
    %41 = vector.shape_cast %40 : vector<1x8x32xf32> to vector<8x32xf32>
    %cst_25 = arith.constant dense<0.000000e+00> : vector<8x8xf32>
    %42 = tpu.matmul %32, %35, %cst_25 {dimension_numbers = #tpu.dot_dimension_numbers<[1], [1], [0], [0], [0, 0, 1, 0], [], []>} : vector<8x32xf32>, vector<8x32xf32>, vector<8x8xf32> -> vector<8x8xf32>
    %c0_26 = arith.constant 0 : index
    %c224 = arith.constant 224 : index
    %c0_27 = arith.constant 0 : index
    %43 = vector.load %arg3[%c0_26, %c224, %c0_27] : memref<2x248x64xf32, #tpu.memory_space<vmem>>, vector<1x1x8xf32>
    %44 = vector.shape_cast %43 : vector<1x1x8xf32> to vector<1x8xf32>
    %45 = vector.broadcast %44 : vector<1x8xf32> to vector<8x8xf32>
    %46 = arith.addf %42, %45 : vector<8x8xf32>
    %cst_28 = arith.constant dense<0.000000e+00> : vector<8x8xf32>
    %47 = tpu.matmul %32, %37, %cst_28 {dimension_numbers = #tpu.dot_dimension_numbers<[1], [1], [0], [0], [0, 0, 1, 0], [], []>} : vector<8x32xf32>, vector<8x32xf32>, vector<8x8xf32> -> vector<8x8xf32>
    %c0_29 = arith.constant 0 : index
    %c228 = arith.constant 228 : index
    %c0_30 = arith.constant 0 : index
    %48 = vector.load %arg3[%c0_29, %c228, %c0_30] : memref<2x248x64xf32, #tpu.memory_space<vmem>>, vector<1x1x8xf32>
    %49 = vector.shape_cast %48 : vector<1x1x8xf32> to vector<1x8xf32>
    %50 = vector.broadcast %49 : vector<1x8xf32> to vector<8x8xf32>
    %51 = arith.addf %47, %50 : vector<8x8xf32>
    %cst_31 = arith.constant dense<0.000000e+00> : vector<8x8xf32>
    %52 = tpu.matmul %32, %39, %cst_31 {dimension_numbers = #tpu.dot_dimension_numbers<[1], [1], [0], [0], [0, 0, 1, 0], [], []>} : vector<8x32xf32>, vector<8x32xf32>, vector<8x8xf32> -> vector<8x8xf32>
    %c0_32 = arith.constant 0 : index
    %c232 = arith.constant 232 : index
    %c0_33 = arith.constant 0 : index
    %53 = vector.load %arg3[%c0_32, %c232, %c0_33] : memref<2x248x64xf32, #tpu.memory_space<vmem>>, vector<1x1x8xf32>
    %54 = vector.shape_cast %53 : vector<1x1x8xf32> to vector<1x8xf32>
    %55 = vector.broadcast %54 : vector<1x8xf32> to vector<8x8xf32>
    %56 = arith.addf %52, %55 : vector<8x8xf32>
    %cst_34 = arith.constant dense<0.000000e+00> : vector<8x8xf32>
    %57 = tpu.matmul %46, %51, %cst_34 {dimension_numbers = #tpu.dot_dimension_numbers<[1], [1], [0], [0], [0, 0, 1, 0], [], []>} : vector<8x8xf32>, vector<8x8xf32>, vector<8x8xf32> -> vector<8x8xf32>
    %58 = vector.broadcast %8 : vector<1x8xf32> to vector<8x8xf32>
    %59 = arith.addf %57, %58 : vector<8x8xf32>
    %60 = math.exp %59 : vector<8x8xf32>
    %cst_35 = arith.constant dense<0.000000e+00> : vector<8xf32>
    %61 = vector.multi_reduction <add>, %60, %cst_35 [1] : vector<8x8xf32> to vector<8xf32>
    %62 = vector.shape_cast %61 : vector<8xf32> to vector<8x1xf32>
    %63 = tpu.reciprocal %62 {approx = true} : vector<8x1xf32> -> vector<8x1xf32>
    %64 = vector.broadcast %63 : vector<8x1xf32> to vector<8x8xf32>
    %65 = arith.mulf %60, %64 : vector<8x8xf32>
    %cst_36 = arith.constant dense<0.000000e+00> : vector<8x8xf32>
    %66 = tpu.matmul %65, %56, %cst_36 {dimension_numbers = #tpu.dot_dimension_numbers<[1], [0], [0], [1], [0, 0, 1, 1], [], []>} : vector<8x8xf32>, vector<8x8xf32>, vector<8x8xf32> -> vector<8x8xf32>
    %cst_37 = arith.constant dense<0.000000e+00> : vector<8x32xf32>
    %67 = tpu.matmul %66, %41, %cst_37 {dimension_numbers = #tpu.dot_dimension_numbers<[1], [0], [0], [1], [0, 0, 1, 1], [], []>} : vector<8x8xf32>, vector<8x32xf32>, vector<8x32xf32> -> vector<8x32xf32>
    %68 = arith.addf %33, %67 : vector<8x32xf32>
    %c0_38 = arith.constant 0 : index
    %c8 = arith.constant 8 : index
    %c0_39 = arith.constant 0 : index
    %69 = vector.load %arg3[%c0_38, %c8, %c0_39] : memref<2x248x64xf32, #tpu.memory_space<vmem>>, vector<1x8x32xf32>
    %70 = vector.shape_cast %69 : vector<1x8x32xf32> to vector<8x32xf32>
    %c0_40 = arith.constant 0 : index
    %c40 = arith.constant 40 : index
    %c0_41 = arith.constant 0 : index
    %71 = vector.load %arg3[%c0_40, %c40, %c0_41] : memref<2x248x64xf32, #tpu.memory_space<vmem>>, vector<1x8x32xf32>
    %72 = vector.shape_cast %71 : vector<1x8x32xf32> to vector<8x32xf32>
    %c0_42 = arith.constant 0 : index
    %c72 = arith.constant 72 : index
    %c0_43 = arith.constant 0 : index
    %73 = vector.load %arg3[%c0_42, %c72, %c0_43] : memref<2x248x64xf32, #tpu.memory_space<vmem>>, vector<1x8x32xf32>
    %74 = vector.shape_cast %73 : vector<1x8x32xf32> to vector<8x32xf32>
    %c0_44 = arith.constant 0 : index
    %c104 = arith.constant 104 : index
    %c0_45 = arith.constant 0 : index
    %75 = vector.load %arg3[%c0_44, %c104, %c0_45] : memref<2x248x64xf32, #tpu.memory_space<vmem>>, vector<1x8x32xf32>
    %76 = vector.shape_cast %75 : vector<1x8x32xf32> to vector<8x32xf32>
    %cst_46 = arith.constant dense<0.000000e+00> : vector<8x8xf32>
    %77 = tpu.matmul %32, %70, %cst_46 {dimension_numbers = #tpu.dot_dimension_numbers<[1], [1], [0], [0], [0, 0, 1, 0], [], []>} : vector<8x32xf32>, vector<8x32xf32>, vector<8x8xf32> -> vector<8x8xf32>
    %c0_47 = arith.constant 0 : index
    %c225 = arith.constant 225 : index
    %c0_48 = arith.constant 0 : index
    %78 = vector.load %arg3[%c0_47, %c225, %c0_48] : memref<2x248x64xf32, #tpu.memory_space<vmem>>, vector<1x1x8xf32>
    %79 = vector.shape_cast %78 : vector<1x1x8xf32> to vector<1x8xf32>
    %80 = vector.broadcast %79 : vector<1x8xf32> to vector<8x8xf32>
    %81 = arith.addf %77, %80 : vector<8x8xf32>
    %cst_49 = arith.constant dense<0.000000e+00> : vector<8x8xf32>
    %82 = tpu.matmul %32, %72, %cst_49 {dimension_numbers = #tpu.dot_dimension_numbers<[1], [1], [0], [0], [0, 0, 1, 0], [], []>} : vector<8x32xf32>, vector<8x32xf32>, vector<8x8xf32> -> vector<8x8xf32>
    %c0_50 = arith.constant 0 : index
    %c229 = arith.constant 229 : index
    %c0_51 = arith.constant 0 : index
    %83 = vector.load %arg3[%c0_50, %c229, %c0_51] : memref<2x248x64xf32, #tpu.memory_space<vmem>>, vector<1x1x8xf32>
    %84 = vector.shape_cast %83 : vector<1x1x8xf32> to vector<1x8xf32>
    %85 = vector.broadcast %84 : vector<1x8xf32> to vector<8x8xf32>
    %86 = arith.addf %82, %85 : vector<8x8xf32>
    %cst_52 = arith.constant dense<0.000000e+00> : vector<8x8xf32>
    %87 = tpu.matmul %32, %74, %cst_52 {dimension_numbers = #tpu.dot_dimension_numbers<[1], [1], [0], [0], [0, 0, 1, 0], [], []>} : vector<8x32xf32>, vector<8x32xf32>, vector<8x8xf32> -> vector<8x8xf32>
    %c0_53 = arith.constant 0 : index
    %c233 = arith.constant 233 : index
    %c0_54 = arith.constant 0 : index
    %88 = vector.load %arg3[%c0_53, %c233, %c0_54] : memref<2x248x64xf32, #tpu.memory_space<vmem>>, vector<1x1x8xf32>
    %89 = vector.shape_cast %88 : vector<1x1x8xf32> to vector<1x8xf32>
    %90 = vector.broadcast %89 : vector<1x8xf32> to vector<8x8xf32>
    %91 = arith.addf %87, %90 : vector<8x8xf32>
    %cst_55 = arith.constant dense<0.000000e+00> : vector<8x8xf32>
    %92 = tpu.matmul %81, %86, %cst_55 {dimension_numbers = #tpu.dot_dimension_numbers<[1], [1], [0], [0], [0, 0, 1, 0], [], []>} : vector<8x8xf32>, vector<8x8xf32>, vector<8x8xf32> -> vector<8x8xf32>
    %93 = vector.broadcast %8 : vector<1x8xf32> to vector<8x8xf32>
    %94 = arith.addf %92, %93 : vector<8x8xf32>
    %95 = math.exp %94 : vector<8x8xf32>
    %cst_56 = arith.constant dense<0.000000e+00> : vector<8xf32>
    %96 = vector.multi_reduction <add>, %95, %cst_56 [1] : vector<8x8xf32> to vector<8xf32>
    %97 = vector.shape_cast %96 : vector<8xf32> to vector<8x1xf32>
    %98 = tpu.reciprocal %97 {approx = true} : vector<8x1xf32> -> vector<8x1xf32>
    %99 = vector.broadcast %98 : vector<8x1xf32> to vector<8x8xf32>
    %100 = arith.mulf %95, %99 : vector<8x8xf32>
    %cst_57 = arith.constant dense<0.000000e+00> : vector<8x8xf32>
    %101 = tpu.matmul %100, %91, %cst_57 {dimension_numbers = #tpu.dot_dimension_numbers<[1], [0], [0], [1], [0, 0, 1, 1], [], []>} : vector<8x8xf32>, vector<8x8xf32>, vector<8x8xf32> -> vector<8x8xf32>
    %cst_58 = arith.constant dense<0.000000e+00> : vector<8x32xf32>
    %102 = tpu.matmul %101, %76, %cst_58 {dimension_numbers = #tpu.dot_dimension_numbers<[1], [0], [0], [1], [0, 0, 1, 1], [], []>} : vector<8x8xf32>, vector<8x32xf32>, vector<8x32xf32> -> vector<8x32xf32>
    %103 = arith.addf %68, %102 : vector<8x32xf32>
    %c0_59 = arith.constant 0 : index
    %c16 = arith.constant 16 : index
    %c0_60 = arith.constant 0 : index
    %104 = vector.load %arg3[%c0_59, %c16, %c0_60] : memref<2x248x64xf32, #tpu.memory_space<vmem>>, vector<1x8x32xf32>
    %105 = vector.shape_cast %104 : vector<1x8x32xf32> to vector<8x32xf32>
    %c0_61 = arith.constant 0 : index
    %c48 = arith.constant 48 : index
    %c0_62 = arith.constant 0 : index
    %106 = vector.load %arg3[%c0_61, %c48, %c0_62] : memref<2x248x64xf32, #tpu.memory_space<vmem>>, vector<1x8x32xf32>
    %107 = vector.shape_cast %106 : vector<1x8x32xf32> to vector<8x32xf32>
    %c0_63 = arith.constant 0 : index
    %c80 = arith.constant 80 : index
    %c0_64 = arith.constant 0 : index
    %108 = vector.load %arg3[%c0_63, %c80, %c0_64] : memref<2x248x64xf32, #tpu.memory_space<vmem>>, vector<1x8x32xf32>
    %109 = vector.shape_cast %108 : vector<1x8x32xf32> to vector<8x32xf32>
    %c0_65 = arith.constant 0 : index
    %c112 = arith.constant 112 : index
    %c0_66 = arith.constant 0 : index
    %110 = vector.load %arg3[%c0_65, %c112, %c0_66] : memref<2x248x64xf32, #tpu.memory_space<vmem>>, vector<1x8x32xf32>
    %111 = vector.shape_cast %110 : vector<1x8x32xf32> to vector<8x32xf32>
    %cst_67 = arith.constant dense<0.000000e+00> : vector<8x8xf32>
    %112 = tpu.matmul %32, %105, %cst_67 {dimension_numbers = #tpu.dot_dimension_numbers<[1], [1], [0], [0], [0, 0, 1, 0], [], []>} : vector<8x32xf32>, vector<8x32xf32>, vector<8x8xf32> -> vector<8x8xf32>
    %c0_68 = arith.constant 0 : index
    %c226 = arith.constant 226 : index
    %c0_69 = arith.constant 0 : index
    %113 = vector.load %arg3[%c0_68, %c226, %c0_69] : memref<2x248x64xf32, #tpu.memory_space<vmem>>, vector<1x1x8xf32>
    %114 = vector.shape_cast %113 : vector<1x1x8xf32> to vector<1x8xf32>
    %115 = vector.broadcast %114 : vector<1x8xf32> to vector<8x8xf32>
    %116 = arith.addf %112, %115 : vector<8x8xf32>
    %cst_70 = arith.constant dense<0.000000e+00> : vector<8x8xf32>
    %117 = tpu.matmul %32, %107, %cst_70 {dimension_numbers = #tpu.dot_dimension_numbers<[1], [1], [0], [0], [0, 0, 1, 0], [], []>} : vector<8x32xf32>, vector<8x32xf32>, vector<8x8xf32> -> vector<8x8xf32>
    %c0_71 = arith.constant 0 : index
    %c230 = arith.constant 230 : index
    %c0_72 = arith.constant 0 : index
    %118 = vector.load %arg3[%c0_71, %c230, %c0_72] : memref<2x248x64xf32, #tpu.memory_space<vmem>>, vector<1x1x8xf32>
    %119 = vector.shape_cast %118 : vector<1x1x8xf32> to vector<1x8xf32>
    %120 = vector.broadcast %119 : vector<1x8xf32> to vector<8x8xf32>
    %121 = arith.addf %117, %120 : vector<8x8xf32>
    %cst_73 = arith.constant dense<0.000000e+00> : vector<8x8xf32>
    %122 = tpu.matmul %32, %109, %cst_73 {dimension_numbers = #tpu.dot_dimension_numbers<[1], [1], [0], [0], [0, 0, 1, 0], [], []>} : vector<8x32xf32>, vector<8x32xf32>, vector<8x8xf32> -> vector<8x8xf32>
    %c0_74 = arith.constant 0 : index
    %c234 = arith.constant 234 : index
    %c0_75 = arith.constant 0 : index
    %123 = vector.load %arg3[%c0_74, %c234, %c0_75] : memref<2x248x64xf32, #tpu.memory_space<vmem>>, vector<1x1x8xf32>
    %124 = vector.shape_cast %123 : vector<1x1x8xf32> to vector<1x8xf32>
    %125 = vector.broadcast %124 : vector<1x8xf32> to vector<8x8xf32>
    %126 = arith.addf %122, %125 : vector<8x8xf32>
    %cst_76 = arith.constant dense<0.000000e+00> : vector<8x8xf32>
    %127 = tpu.matmul %116, %121, %cst_76 {dimension_numbers = #tpu.dot_dimension_numbers<[1], [1], [0], [0], [0, 0, 1, 0], [], []>} : vector<8x8xf32>, vector<8x8xf32>, vector<8x8xf32> -> vector<8x8xf32>
    %128 = vector.broadcast %8 : vector<1x8xf32> to vector<8x8xf32>
    %129 = arith.addf %127, %128 : vector<8x8xf32>
    %130 = math.exp %129 : vector<8x8xf32>
    %cst_77 = arith.constant dense<0.000000e+00> : vector<8xf32>
    %131 = vector.multi_reduction <add>, %130, %cst_77 [1] : vector<8x8xf32> to vector<8xf32>
    %132 = vector.shape_cast %131 : vector<8xf32> to vector<8x1xf32>
    %133 = tpu.reciprocal %132 {approx = true} : vector<8x1xf32> -> vector<8x1xf32>
    %134 = vector.broadcast %133 : vector<8x1xf32> to vector<8x8xf32>
    %135 = arith.mulf %130, %134 : vector<8x8xf32>
    %cst_78 = arith.constant dense<0.000000e+00> : vector<8x8xf32>
    %136 = tpu.matmul %135, %126, %cst_78 {dimension_numbers = #tpu.dot_dimension_numbers<[1], [0], [0], [1], [0, 0, 1, 1], [], []>} : vector<8x8xf32>, vector<8x8xf32>, vector<8x8xf32> -> vector<8x8xf32>
    %cst_79 = arith.constant dense<0.000000e+00> : vector<8x32xf32>
    %137 = tpu.matmul %136, %111, %cst_79 {dimension_numbers = #tpu.dot_dimension_numbers<[1], [0], [0], [1], [0, 0, 1, 1], [], []>} : vector<8x8xf32>, vector<8x32xf32>, vector<8x32xf32> -> vector<8x32xf32>
    %138 = arith.addf %103, %137 : vector<8x32xf32>
    %c0_80 = arith.constant 0 : index
    %c24 = arith.constant 24 : index
    %c0_81 = arith.constant 0 : index
    %139 = vector.load %arg3[%c0_80, %c24, %c0_81] : memref<2x248x64xf32, #tpu.memory_space<vmem>>, vector<1x8x32xf32>
    %140 = vector.shape_cast %139 : vector<1x8x32xf32> to vector<8x32xf32>
    %c0_82 = arith.constant 0 : index
    %c56 = arith.constant 56 : index
    %c0_83 = arith.constant 0 : index
    %141 = vector.load %arg3[%c0_82, %c56, %c0_83] : memref<2x248x64xf32, #tpu.memory_space<vmem>>, vector<1x8x32xf32>
    %142 = vector.shape_cast %141 : vector<1x8x32xf32> to vector<8x32xf32>
    %c0_84 = arith.constant 0 : index
    %c88 = arith.constant 88 : index
    %c0_85 = arith.constant 0 : index
    %143 = vector.load %arg3[%c0_84, %c88, %c0_85] : memref<2x248x64xf32, #tpu.memory_space<vmem>>, vector<1x8x32xf32>
    %144 = vector.shape_cast %143 : vector<1x8x32xf32> to vector<8x32xf32>
    %c0_86 = arith.constant 0 : index
    %c120 = arith.constant 120 : index
    %c0_87 = arith.constant 0 : index
    %145 = vector.load %arg3[%c0_86, %c120, %c0_87] : memref<2x248x64xf32, #tpu.memory_space<vmem>>, vector<1x8x32xf32>
    %146 = vector.shape_cast %145 : vector<1x8x32xf32> to vector<8x32xf32>
    %cst_88 = arith.constant dense<0.000000e+00> : vector<8x8xf32>
    %147 = tpu.matmul %32, %140, %cst_88 {dimension_numbers = #tpu.dot_dimension_numbers<[1], [1], [0], [0], [0, 0, 1, 0], [], []>} : vector<8x32xf32>, vector<8x32xf32>, vector<8x8xf32> -> vector<8x8xf32>
    %c0_89 = arith.constant 0 : index
    %c227 = arith.constant 227 : index
    %c0_90 = arith.constant 0 : index
    %148 = vector.load %arg3[%c0_89, %c227, %c0_90] : memref<2x248x64xf32, #tpu.memory_space<vmem>>, vector<1x1x8xf32>
    %149 = vector.shape_cast %148 : vector<1x1x8xf32> to vector<1x8xf32>
    %150 = vector.broadcast %149 : vector<1x8xf32> to vector<8x8xf32>
    %151 = arith.addf %147, %150 : vector<8x8xf32>
    %cst_91 = arith.constant dense<0.000000e+00> : vector<8x8xf32>
    %152 = tpu.matmul %32, %142, %cst_91 {dimension_numbers = #tpu.dot_dimension_numbers<[1], [1], [0], [0], [0, 0, 1, 0], [], []>} : vector<8x32xf32>, vector<8x32xf32>, vector<8x8xf32> -> vector<8x8xf32>
    %c0_92 = arith.constant 0 : index
    %c231 = arith.constant 231 : index
    %c0_93 = arith.constant 0 : index
    %153 = vector.load %arg3[%c0_92, %c231, %c0_93] : memref<2x248x64xf32, #tpu.memory_space<vmem>>, vector<1x1x8xf32>
    %154 = vector.shape_cast %153 : vector<1x1x8xf32> to vector<1x8xf32>
    %155 = vector.broadcast %154 : vector<1x8xf32> to vector<8x8xf32>
    %156 = arith.addf %152, %155 : vector<8x8xf32>
    %cst_94 = arith.constant dense<0.000000e+00> : vector<8x8xf32>
    %157 = tpu.matmul %32, %144, %cst_94 {dimension_numbers = #tpu.dot_dimension_numbers<[1], [1], [0], [0], [0, 0, 1, 0], [], []>} : vector<8x32xf32>, vector<8x32xf32>, vector<8x8xf32> -> vector<8x8xf32>
    %c0_95 = arith.constant 0 : index
    %c235 = arith.constant 235 : index
    %c0_96 = arith.constant 0 : index
    %158 = vector.load %arg3[%c0_95, %c235, %c0_96] : memref<2x248x64xf32, #tpu.memory_space<vmem>>, vector<1x1x8xf32>
    %159 = vector.shape_cast %158 : vector<1x1x8xf32> to vector<1x8xf32>
    %160 = vector.broadcast %159 : vector<1x8xf32> to vector<8x8xf32>
    %161 = arith.addf %157, %160 : vector<8x8xf32>
    %cst_97 = arith.constant dense<0.000000e+00> : vector<8x8xf32>
    %162 = tpu.matmul %151, %156, %cst_97 {dimension_numbers = #tpu.dot_dimension_numbers<[1], [1], [0], [0], [0, 0, 1, 0], [], []>} : vector<8x8xf32>, vector<8x8xf32>, vector<8x8xf32> -> vector<8x8xf32>
    %163 = vector.broadcast %8 : vector<1x8xf32> to vector<8x8xf32>
    %164 = arith.addf %162, %163 : vector<8x8xf32>
    %165 = math.exp %164 : vector<8x8xf32>
    %cst_98 = arith.constant dense<0.000000e+00> : vector<8xf32>
    %166 = vector.multi_reduction <add>, %165, %cst_98 [1] : vector<8x8xf32> to vector<8xf32>
    %167 = vector.shape_cast %166 : vector<8xf32> to vector<8x1xf32>
    %168 = tpu.reciprocal %167 {approx = true} : vector<8x1xf32> -> vector<8x1xf32>
    %169 = vector.broadcast %168 : vector<8x1xf32> to vector<8x8xf32>
    %170 = arith.mulf %165, %169 : vector<8x8xf32>
    %cst_99 = arith.constant dense<0.000000e+00> : vector<8x8xf32>
    %171 = tpu.matmul %170, %161, %cst_99 {dimension_numbers = #tpu.dot_dimension_numbers<[1], [0], [0], [1], [0, 0, 1, 1], [], []>} : vector<8x8xf32>, vector<8x8xf32>, vector<8x8xf32> -> vector<8x8xf32>
    %cst_100 = arith.constant dense<0.000000e+00> : vector<8x32xf32>
    %172 = tpu.matmul %171, %146, %cst_100 {dimension_numbers = #tpu.dot_dimension_numbers<[1], [0], [0], [1], [0, 0, 1, 1], [], []>} : vector<8x8xf32>, vector<8x32xf32>, vector<8x32xf32> -> vector<8x32xf32>
    %173 = arith.addf %138, %172 : vector<8x32xf32>
    %c0_101 = arith.constant 0 : index
    %c236 = arith.constant 236 : index
    %c0_102 = arith.constant 0 : index
    %174 = vector.load %arg3[%c0_101, %c236, %c0_102] : memref<2x248x64xf32, #tpu.memory_space<vmem>>, vector<1x1x32xf32>
    %175 = vector.shape_cast %174 : vector<1x1x32xf32> to vector<1x32xf32>
    %176 = vector.broadcast %175 : vector<1x32xf32> to vector<8x32xf32>
    %177 = arith.addf %173, %176 : vector<8x32xf32>
    %178 = arith.addf %32, %177 : vector<8x32xf32>
    %c0_103 = arith.constant 0 : index
    %c237 = arith.constant 237 : index
    %c0_104 = arith.constant 0 : index
    %179 = vector.load %arg3[%c0_103, %c237, %c0_104] : memref<2x248x64xf32, #tpu.memory_space<vmem>>, vector<1x1x32xf32>
    %180 = vector.shape_cast %179 : vector<1x1x32xf32> to vector<1x32xf32>
    %c0_105 = arith.constant 0 : index
    %c238 = arith.constant 238 : index
    %c0_106 = arith.constant 0 : index
    %181 = vector.load %arg3[%c0_105, %c238, %c0_106] : memref<2x248x64xf32, #tpu.memory_space<vmem>>, vector<1x1x32xf32>
    %182 = vector.shape_cast %181 : vector<1x1x32xf32> to vector<1x32xf32>
    %cst_107 = arith.constant dense<0.000000e+00> : vector<8xf32>
    %183 = vector.multi_reduction <add>, %178, %cst_107 [1] : vector<8x32xf32> to vector<8xf32>
    %184 = vector.shape_cast %183 : vector<8xf32> to vector<8x1xf32>
    %cst_108 = arith.constant 3.200000e+01 : f32
    %185 = vector.broadcast %cst_108 : f32 to vector<8x1xf32>
    %186 = arith.divf %184, %185 : vector<8x1xf32>
    %187 = vector.broadcast %186 : vector<8x1xf32> to vector<8x32xf32>
    %188 = arith.subf %178, %187 : vector<8x32xf32>
    %189 = arith.mulf %188, %188 : vector<8x32xf32>
    %cst_109 = arith.constant dense<0.000000e+00> : vector<8xf32>
    %190 = vector.multi_reduction <add>, %189, %cst_109 [1] : vector<8x32xf32> to vector<8xf32>
    %191 = vector.shape_cast %190 : vector<8xf32> to vector<8x1xf32>
    %cst_110 = arith.constant 3.200000e+01 : f32
    %192 = vector.broadcast %cst_110 : f32 to vector<8x1xf32>
    %193 = arith.divf %191, %192 : vector<8x1xf32>
    %194 = vector.broadcast %186 : vector<8x1xf32> to vector<8x32xf32>
    %195 = arith.subf %178, %194 : vector<8x32xf32>
    %cst_111 = arith.constant 9.99999974E-6 : f32
    %196 = vector.broadcast %cst_111 : f32 to vector<8x1xf32>
    %197 = arith.addf %193, %196 : vector<8x1xf32>
    %198 = math.rsqrt %197 : vector<8x1xf32>
    %199 = vector.broadcast %198 : vector<8x1xf32> to vector<8x32xf32>
    %200 = arith.mulf %195, %199 : vector<8x32xf32>
    %201 = vector.broadcast %180 : vector<1x32xf32> to vector<8x32xf32>
    %202 = arith.mulf %200, %201 : vector<8x32xf32>
    %203 = vector.broadcast %182 : vector<1x32xf32> to vector<8x32xf32>
    %204 = arith.addf %202, %203 : vector<8x32xf32>
    %c0_112 = arith.constant 0 : index
    %c128 = arith.constant 128 : index
    %c0_113 = arith.constant 0 : index
    %205 = vector.load %arg3[%c0_112, %c128, %c0_113] : memref<2x248x64xf32, #tpu.memory_space<vmem>>, vector<1x32x64xf32>
    %206 = vector.shape_cast %205 : vector<1x32x64xf32> to vector<32x64xf32>
    %cst_114 = arith.constant dense<0.000000e+00> : vector<8x64xf32>
    %207 = tpu.matmul %204, %206, %cst_114 {dimension_numbers = #tpu.dot_dimension_numbers<[1], [0], [0], [1], [0, 0, 1, 1], [], []>} : vector<8x32xf32>, vector<32x64xf32>, vector<8x64xf32> -> vector<8x64xf32>
    %c0_115 = arith.constant 0 : index
    %c239 = arith.constant 239 : index
    %c0_116 = arith.constant 0 : index
    %208 = vector.load %arg3[%c0_115, %c239, %c0_116] : memref<2x248x64xf32, #tpu.memory_space<vmem>>, vector<1x1x64xf32>
    %209 = vector.shape_cast %208 : vector<1x1x64xf32> to vector<1x64xf32>
    %210 = vector.broadcast %209 : vector<1x64xf32> to vector<8x64xf32>
    %211 = arith.addf %207, %210 : vector<8x64xf32>
    %212 = arith.mulf %211, %211 : vector<8x64xf32>
    %213 = arith.mulf %211, %212 : vector<8x64xf32>
    %cst_117 = arith.constant 4.471500e-02 : f32
    %214 = vector.broadcast %cst_117 : f32 to vector<8x64xf32>
    %215 = arith.mulf %214, %213 : vector<8x64xf32>
    %216 = arith.addf %211, %215 : vector<8x64xf32>
    %cst_118 = arith.constant 0.797884583 : f32
    %217 = vector.broadcast %cst_118 : f32 to vector<8x64xf32>
    %218 = arith.mulf %217, %216 : vector<8x64xf32>
    %219 = math.tanh %218 : vector<8x64xf32>
    %cst_119 = arith.constant 1.000000e+00 : f32
    %220 = vector.broadcast %cst_119 : f32 to vector<8x64xf32>
    %221 = arith.addf %220, %219 : vector<8x64xf32>
    %cst_120 = arith.constant 5.000000e-01 : f32
    %222 = vector.broadcast %cst_120 : f32 to vector<8x64xf32>
    %223 = arith.mulf %222, %221 : vector<8x64xf32>
    %224 = arith.mulf %211, %223 : vector<8x64xf32>
    %c0_121 = arith.constant 0 : index
    %c160 = arith.constant 160 : index
    %c0_122 = arith.constant 0 : index
    %225 = vector.load %arg3[%c0_121, %c160, %c0_122] : memref<2x248x64xf32, #tpu.memory_space<vmem>>, vector<1x64x32xf32>
    %226 = vector.shape_cast %225 : vector<1x64x32xf32> to vector<64x32xf32>
    %cst_123 = arith.constant dense<0.000000e+00> : vector<8x32xf32>
    %227 = tpu.matmul %224, %226, %cst_123 {dimension_numbers = #tpu.dot_dimension_numbers<[1], [0], [0], [1], [0, 0, 1, 1], [], []>} : vector<8x64xf32>, vector<64x32xf32>, vector<8x32xf32> -> vector<8x32xf32>
    %c0_124 = arith.constant 0 : index
    %c240 = arith.constant 240 : index
    %c0_125 = arith.constant 0 : index
    %228 = vector.load %arg3[%c0_124, %c240, %c0_125] : memref<2x248x64xf32, #tpu.memory_space<vmem>>, vector<1x1x32xf32>
    %229 = vector.shape_cast %228 : vector<1x1x32xf32> to vector<1x32xf32>
    %230 = vector.broadcast %229 : vector<1x32xf32> to vector<8x32xf32>
    %231 = arith.addf %227, %230 : vector<8x32xf32>
    %232 = arith.addf %204, %231 : vector<8x32xf32>
    %c0_126 = arith.constant 0 : index
    %c241 = arith.constant 241 : index
    %c0_127 = arith.constant 0 : index
    %233 = vector.load %arg3[%c0_126, %c241, %c0_127] : memref<2x248x64xf32, #tpu.memory_space<vmem>>, vector<1x1x32xf32>
    %234 = vector.shape_cast %233 : vector<1x1x32xf32> to vector<1x32xf32>
    %c0_128 = arith.constant 0 : index
    %c242 = arith.constant 242 : index
    %c0_129 = arith.constant 0 : index
    %235 = vector.load %arg3[%c0_128, %c242, %c0_129] : memref<2x248x64xf32, #tpu.memory_space<vmem>>, vector<1x1x32xf32>
    %236 = vector.shape_cast %235 : vector<1x1x32xf32> to vector<1x32xf32>
    %cst_130 = arith.constant dense<0.000000e+00> : vector<8xf32>
    %237 = vector.multi_reduction <add>, %232, %cst_130 [1] : vector<8x32xf32> to vector<8xf32>
    %238 = vector.shape_cast %237 : vector<8xf32> to vector<8x1xf32>
    %cst_131 = arith.constant 3.200000e+01 : f32
    %239 = vector.broadcast %cst_131 : f32 to vector<8x1xf32>
    %240 = arith.divf %238, %239 : vector<8x1xf32>
    %241 = vector.broadcast %240 : vector<8x1xf32> to vector<8x32xf32>
    %242 = arith.subf %232, %241 : vector<8x32xf32>
    %243 = arith.mulf %242, %242 : vector<8x32xf32>
    %cst_132 = arith.constant dense<0.000000e+00> : vector<8xf32>
    %244 = vector.multi_reduction <add>, %243, %cst_132 [1] : vector<8x32xf32> to vector<8xf32>
    %245 = vector.shape_cast %244 : vector<8xf32> to vector<8x1xf32>
    %cst_133 = arith.constant 3.200000e+01 : f32
    %246 = vector.broadcast %cst_133 : f32 to vector<8x1xf32>
    %247 = arith.divf %245, %246 : vector<8x1xf32>
    %248 = vector.broadcast %240 : vector<8x1xf32> to vector<8x32xf32>
    %249 = arith.subf %232, %248 : vector<8x32xf32>
    %cst_134 = arith.constant 9.99999974E-6 : f32
    %250 = vector.broadcast %cst_134 : f32 to vector<8x1xf32>
    %251 = arith.addf %247, %250 : vector<8x1xf32>
    %252 = math.rsqrt %251 : vector<8x1xf32>
    %253 = vector.broadcast %252 : vector<8x1xf32> to vector<8x32xf32>
    %254 = arith.mulf %249, %253 : vector<8x32xf32>
    %255 = vector.broadcast %234 : vector<1x32xf32> to vector<8x32xf32>
    %256 = arith.mulf %254, %255 : vector<8x32xf32>
    %257 = vector.broadcast %236 : vector<1x32xf32> to vector<8x32xf32>
    %258 = arith.addf %256, %257 : vector<8x32xf32>
    %cst_135 = arith.constant 0.000000e+00 : f32
    %259 = vector.broadcast %cst_135 : f32 to vector<8x32xf32>
    %c1_136 = arith.constant 1 : index
    %c0_137 = arith.constant 0 : index
    %c0_138 = arith.constant 0 : index
    %260 = vector.load %arg3[%c1_136, %c0_137, %c0_138] : memref<2x248x64xf32, #tpu.memory_space<vmem>>, vector<1x8x32xf32>
    %261 = vector.shape_cast %260 : vector<1x8x32xf32> to vector<8x32xf32>
    %c1_139 = arith.constant 1 : index
    %c32_140 = arith.constant 32 : index
    %c0_141 = arith.constant 0 : index
    %262 = vector.load %arg3[%c1_139, %c32_140, %c0_141] : memref<2x248x64xf32, #tpu.memory_space<vmem>>, vector<1x8x32xf32>
    %263 = vector.shape_cast %262 : vector<1x8x32xf32> to vector<8x32xf32>
    %c1_142 = arith.constant 1 : index
    %c64_143 = arith.constant 64 : index
    %c0_144 = arith.constant 0 : index
    %264 = vector.load %arg3[%c1_142, %c64_143, %c0_144] : memref<2x248x64xf32, #tpu.memory_space<vmem>>, vector<1x8x32xf32>
    %265 = vector.shape_cast %264 : vector<1x8x32xf32> to vector<8x32xf32>
    %c1_145 = arith.constant 1 : index
    %c96_146 = arith.constant 96 : index
    %c0_147 = arith.constant 0 : index
    %266 = vector.load %arg3[%c1_145, %c96_146, %c0_147] : memref<2x248x64xf32, #tpu.memory_space<vmem>>, vector<1x8x32xf32>
    %267 = vector.shape_cast %266 : vector<1x8x32xf32> to vector<8x32xf32>
    %cst_148 = arith.constant dense<0.000000e+00> : vector<8x8xf32>
    %268 = tpu.matmul %258, %261, %cst_148 {dimension_numbers = #tpu.dot_dimension_numbers<[1], [1], [0], [0], [0, 0, 1, 0], [], []>} : vector<8x32xf32>, vector<8x32xf32>, vector<8x8xf32> -> vector<8x8xf32>
    %c1_149 = arith.constant 1 : index
    %c224_150 = arith.constant 224 : index
    %c0_151 = arith.constant 0 : index
    %269 = vector.load %arg3[%c1_149, %c224_150, %c0_151] : memref<2x248x64xf32, #tpu.memory_space<vmem>>, vector<1x1x8xf32>
    %270 = vector.shape_cast %269 : vector<1x1x8xf32> to vector<1x8xf32>
    %271 = vector.broadcast %270 : vector<1x8xf32> to vector<8x8xf32>
    %272 = arith.addf %268, %271 : vector<8x8xf32>
    %cst_152 = arith.constant dense<0.000000e+00> : vector<8x8xf32>
    %273 = tpu.matmul %258, %263, %cst_152 {dimension_numbers = #tpu.dot_dimension_numbers<[1], [1], [0], [0], [0, 0, 1, 0], [], []>} : vector<8x32xf32>, vector<8x32xf32>, vector<8x8xf32> -> vector<8x8xf32>
    %c1_153 = arith.constant 1 : index
    %c228_154 = arith.constant 228 : index
    %c0_155 = arith.constant 0 : index
    %274 = vector.load %arg3[%c1_153, %c228_154, %c0_155] : memref<2x248x64xf32, #tpu.memory_space<vmem>>, vector<1x1x8xf32>
    %275 = vector.shape_cast %274 : vector<1x1x8xf32> to vector<1x8xf32>
    %276 = vector.broadcast %275 : vector<1x8xf32> to vector<8x8xf32>
    %277 = arith.addf %273, %276 : vector<8x8xf32>
    %cst_156 = arith.constant dense<0.000000e+00> : vector<8x8xf32>
    %278 = tpu.matmul %258, %265, %cst_156 {dimension_numbers = #tpu.dot_dimension_numbers<[1], [1], [0], [0], [0, 0, 1, 0], [], []>} : vector<8x32xf32>, vector<8x32xf32>, vector<8x8xf32> -> vector<8x8xf32>
    %c1_157 = arith.constant 1 : index
    %c232_158 = arith.constant 232 : index
    %c0_159 = arith.constant 0 : index
    %279 = vector.load %arg3[%c1_157, %c232_158, %c0_159] : memref<2x248x64xf32, #tpu.memory_space<vmem>>, vector<1x1x8xf32>
    %280 = vector.shape_cast %279 : vector<1x1x8xf32> to vector<1x8xf32>
    %281 = vector.broadcast %280 : vector<1x8xf32> to vector<8x8xf32>
    %282 = arith.addf %278, %281 : vector<8x8xf32>
    %cst_160 = arith.constant dense<0.000000e+00> : vector<8x8xf32>
    %283 = tpu.matmul %272, %277, %cst_160 {dimension_numbers = #tpu.dot_dimension_numbers<[1], [1], [0], [0], [0, 0, 1, 0], [], []>} : vector<8x8xf32>, vector<8x8xf32>, vector<8x8xf32> -> vector<8x8xf32>
    %284 = vector.broadcast %8 : vector<1x8xf32> to vector<8x8xf32>
    %285 = arith.addf %283, %284 : vector<8x8xf32>
    %286 = math.exp %285 : vector<8x8xf32>
    %cst_161 = arith.constant dense<0.000000e+00> : vector<8xf32>
    %287 = vector.multi_reduction <add>, %286, %cst_161 [1] : vector<8x8xf32> to vector<8xf32>
    %288 = vector.shape_cast %287 : vector<8xf32> to vector<8x1xf32>
    %289 = tpu.reciprocal %288 {approx = true} : vector<8x1xf32> -> vector<8x1xf32>
    %290 = vector.broadcast %289 : vector<8x1xf32> to vector<8x8xf32>
    %291 = arith.mulf %286, %290 : vector<8x8xf32>
    %cst_162 = arith.constant dense<0.000000e+00> : vector<8x8xf32>
    %292 = tpu.matmul %291, %282, %cst_162 {dimension_numbers = #tpu.dot_dimension_numbers<[1], [0], [0], [1], [0, 0, 1, 1], [], []>} : vector<8x8xf32>, vector<8x8xf32>, vector<8x8xf32> -> vector<8x8xf32>
    %cst_163 = arith.constant dense<0.000000e+00> : vector<8x32xf32>
    %293 = tpu.matmul %292, %267, %cst_163 {dimension_numbers = #tpu.dot_dimension_numbers<[1], [0], [0], [1], [0, 0, 1, 1], [], []>} : vector<8x8xf32>, vector<8x32xf32>, vector<8x32xf32> -> vector<8x32xf32>
    %294 = arith.addf %259, %293 : vector<8x32xf32>
    %c1_164 = arith.constant 1 : index
    %c8_165 = arith.constant 8 : index
    %c0_166 = arith.constant 0 : index
    %295 = vector.load %arg3[%c1_164, %c8_165, %c0_166] : memref<2x248x64xf32, #tpu.memory_space<vmem>>, vector<1x8x32xf32>
    %296 = vector.shape_cast %295 : vector<1x8x32xf32> to vector<8x32xf32>
    %c1_167 = arith.constant 1 : index
    %c40_168 = arith.constant 40 : index
    %c0_169 = arith.constant 0 : index
    %297 = vector.load %arg3[%c1_167, %c40_168, %c0_169] : memref<2x248x64xf32, #tpu.memory_space<vmem>>, vector<1x8x32xf32>
    %298 = vector.shape_cast %297 : vector<1x8x32xf32> to vector<8x32xf32>
    %c1_170 = arith.constant 1 : index
    %c72_171 = arith.constant 72 : index
    %c0_172 = arith.constant 0 : index
    %299 = vector.load %arg3[%c1_170, %c72_171, %c0_172] : memref<2x248x64xf32, #tpu.memory_space<vmem>>, vector<1x8x32xf32>
    %300 = vector.shape_cast %299 : vector<1x8x32xf32> to vector<8x32xf32>
    %c1_173 = arith.constant 1 : index
    %c104_174 = arith.constant 104 : index
    %c0_175 = arith.constant 0 : index
    %301 = vector.load %arg3[%c1_173, %c104_174, %c0_175] : memref<2x248x64xf32, #tpu.memory_space<vmem>>, vector<1x8x32xf32>
    %302 = vector.shape_cast %301 : vector<1x8x32xf32> to vector<8x32xf32>
    %cst_176 = arith.constant dense<0.000000e+00> : vector<8x8xf32>
    %303 = tpu.matmul %258, %296, %cst_176 {dimension_numbers = #tpu.dot_dimension_numbers<[1], [1], [0], [0], [0, 0, 1, 0], [], []>} : vector<8x32xf32>, vector<8x32xf32>, vector<8x8xf32> -> vector<8x8xf32>
    %c1_177 = arith.constant 1 : index
    %c225_178 = arith.constant 225 : index
    %c0_179 = arith.constant 0 : index
    %304 = vector.load %arg3[%c1_177, %c225_178, %c0_179] : memref<2x248x64xf32, #tpu.memory_space<vmem>>, vector<1x1x8xf32>
    %305 = vector.shape_cast %304 : vector<1x1x8xf32> to vector<1x8xf32>
    %306 = vector.broadcast %305 : vector<1x8xf32> to vector<8x8xf32>
    %307 = arith.addf %303, %306 : vector<8x8xf32>
    %cst_180 = arith.constant dense<0.000000e+00> : vector<8x8xf32>
    %308 = tpu.matmul %258, %298, %cst_180 {dimension_numbers = #tpu.dot_dimension_numbers<[1], [1], [0], [0], [0, 0, 1, 0], [], []>} : vector<8x32xf32>, vector<8x32xf32>, vector<8x8xf32> -> vector<8x8xf32>
    %c1_181 = arith.constant 1 : index
    %c229_182 = arith.constant 229 : index
    %c0_183 = arith.constant 0 : index
    %309 = vector.load %arg3[%c1_181, %c229_182, %c0_183] : memref<2x248x64xf32, #tpu.memory_space<vmem>>, vector<1x1x8xf32>
    %310 = vector.shape_cast %309 : vector<1x1x8xf32> to vector<1x8xf32>
    %311 = vector.broadcast %310 : vector<1x8xf32> to vector<8x8xf32>
    %312 = arith.addf %308, %311 : vector<8x8xf32>
    %cst_184 = arith.constant dense<0.000000e+00> : vector<8x8xf32>
    %313 = tpu.matmul %258, %300, %cst_184 {dimension_numbers = #tpu.dot_dimension_numbers<[1], [1], [0], [0], [0, 0, 1, 0], [], []>} : vector<8x32xf32>, vector<8x32xf32>, vector<8x8xf32> -> vector<8x8xf32>
    %c1_185 = arith.constant 1 : index
    %c233_186 = arith.constant 233 : index
    %c0_187 = arith.constant 0 : index
    %314 = vector.load %arg3[%c1_185, %c233_186, %c0_187] : memref<2x248x64xf32, #tpu.memory_space<vmem>>, vector<1x1x8xf32>
    %315 = vector.shape_cast %314 : vector<1x1x8xf32> to vector<1x8xf32>
    %316 = vector.broadcast %315 : vector<1x8xf32> to vector<8x8xf32>
    %317 = arith.addf %313, %316 : vector<8x8xf32>
    %cst_188 = arith.constant dense<0.000000e+00> : vector<8x8xf32>
    %318 = tpu.matmul %307, %312, %cst_188 {dimension_numbers = #tpu.dot_dimension_numbers<[1], [1], [0], [0], [0, 0, 1, 0], [], []>} : vector<8x8xf32>, vector<8x8xf32>, vector<8x8xf32> -> vector<8x8xf32>
    %319 = vector.broadcast %8 : vector<1x8xf32> to vector<8x8xf32>
    %320 = arith.addf %318, %319 : vector<8x8xf32>
    %321 = math.exp %320 : vector<8x8xf32>
    %cst_189 = arith.constant dense<0.000000e+00> : vector<8xf32>
    %322 = vector.multi_reduction <add>, %321, %cst_189 [1] : vector<8x8xf32> to vector<8xf32>
    %323 = vector.shape_cast %322 : vector<8xf32> to vector<8x1xf32>
    %324 = tpu.reciprocal %323 {approx = true} : vector<8x1xf32> -> vector<8x1xf32>
    %325 = vector.broadcast %324 : vector<8x1xf32> to vector<8x8xf32>
    %326 = arith.mulf %321, %325 : vector<8x8xf32>
    %cst_190 = arith.constant dense<0.000000e+00> : vector<8x8xf32>
    %327 = tpu.matmul %326, %317, %cst_190 {dimension_numbers = #tpu.dot_dimension_numbers<[1], [0], [0], [1], [0, 0, 1, 1], [], []>} : vector<8x8xf32>, vector<8x8xf32>, vector<8x8xf32> -> vector<8x8xf32>
    %cst_191 = arith.constant dense<0.000000e+00> : vector<8x32xf32>
    %328 = tpu.matmul %327, %302, %cst_191 {dimension_numbers = #tpu.dot_dimension_numbers<[1], [0], [0], [1], [0, 0, 1, 1], [], []>} : vector<8x8xf32>, vector<8x32xf32>, vector<8x32xf32> -> vector<8x32xf32>
    %329 = arith.addf %294, %328 : vector<8x32xf32>
    %c1_192 = arith.constant 1 : index
    %c16_193 = arith.constant 16 : index
    %c0_194 = arith.constant 0 : index
    %330 = vector.load %arg3[%c1_192, %c16_193, %c0_194] : memref<2x248x64xf32, #tpu.memory_space<vmem>>, vector<1x8x32xf32>
    %331 = vector.shape_cast %330 : vector<1x8x32xf32> to vector<8x32xf32>
    %c1_195 = arith.constant 1 : index
    %c48_196 = arith.constant 48 : index
    %c0_197 = arith.constant 0 : index
    %332 = vector.load %arg3[%c1_195, %c48_196, %c0_197] : memref<2x248x64xf32, #tpu.memory_space<vmem>>, vector<1x8x32xf32>
    %333 = vector.shape_cast %332 : vector<1x8x32xf32> to vector<8x32xf32>
    %c1_198 = arith.constant 1 : index
    %c80_199 = arith.constant 80 : index
    %c0_200 = arith.constant 0 : index
    %334 = vector.load %arg3[%c1_198, %c80_199, %c0_200] : memref<2x248x64xf32, #tpu.memory_space<vmem>>, vector<1x8x32xf32>
    %335 = vector.shape_cast %334 : vector<1x8x32xf32> to vector<8x32xf32>
    %c1_201 = arith.constant 1 : index
    %c112_202 = arith.constant 112 : index
    %c0_203 = arith.constant 0 : index
    %336 = vector.load %arg3[%c1_201, %c112_202, %c0_203] : memref<2x248x64xf32, #tpu.memory_space<vmem>>, vector<1x8x32xf32>
    %337 = vector.shape_cast %336 : vector<1x8x32xf32> to vector<8x32xf32>
    %cst_204 = arith.constant dense<0.000000e+00> : vector<8x8xf32>
    %338 = tpu.matmul %258, %331, %cst_204 {dimension_numbers = #tpu.dot_dimension_numbers<[1], [1], [0], [0], [0, 0, 1, 0], [], []>} : vector<8x32xf32>, vector<8x32xf32>, vector<8x8xf32> -> vector<8x8xf32>
    %c1_205 = arith.constant 1 : index
    %c226_206 = arith.constant 226 : index
    %c0_207 = arith.constant 0 : index
    %339 = vector.load %arg3[%c1_205, %c226_206, %c0_207] : memref<2x248x64xf32, #tpu.memory_space<vmem>>, vector<1x1x8xf32>
    %340 = vector.shape_cast %339 : vector<1x1x8xf32> to vector<1x8xf32>
    %341 = vector.broadcast %340 : vector<1x8xf32> to vector<8x8xf32>
    %342 = arith.addf %338, %341 : vector<8x8xf32>
    %cst_208 = arith.constant dense<0.000000e+00> : vector<8x8xf32>
    %343 = tpu.matmul %258, %333, %cst_208 {dimension_numbers = #tpu.dot_dimension_numbers<[1], [1], [0], [0], [0, 0, 1, 0], [], []>} : vector<8x32xf32>, vector<8x32xf32>, vector<8x8xf32> -> vector<8x8xf32>
    %c1_209 = arith.constant 1 : index
    %c230_210 = arith.constant 230 : index
    %c0_211 = arith.constant 0 : index
    %344 = vector.load %arg3[%c1_209, %c230_210, %c0_211] : memref<2x248x64xf32, #tpu.memory_space<vmem>>, vector<1x1x8xf32>
    %345 = vector.shape_cast %344 : vector<1x1x8xf32> to vector<1x8xf32>
    %346 = vector.broadcast %345 : vector<1x8xf32> to vector<8x8xf32>
    %347 = arith.addf %343, %346 : vector<8x8xf32>
    %cst_212 = arith.constant dense<0.000000e+00> : vector<8x8xf32>
    %348 = tpu.matmul %258, %335, %cst_212 {dimension_numbers = #tpu.dot_dimension_numbers<[1], [1], [0], [0], [0, 0, 1, 0], [], []>} : vector<8x32xf32>, vector<8x32xf32>, vector<8x8xf32> -> vector<8x8xf32>
    %c1_213 = arith.constant 1 : index
    %c234_214 = arith.constant 234 : index
    %c0_215 = arith.constant 0 : index
    %349 = vector.load %arg3[%c1_213, %c234_214, %c0_215] : memref<2x248x64xf32, #tpu.memory_space<vmem>>, vector<1x1x8xf32>
    %350 = vector.shape_cast %349 : vector<1x1x8xf32> to vector<1x8xf32>
    %351 = vector.broadcast %350 : vector<1x8xf32> to vector<8x8xf32>
    %352 = arith.addf %348, %351 : vector<8x8xf32>
    %cst_216 = arith.constant dense<0.000000e+00> : vector<8x8xf32>
    %353 = tpu.matmul %342, %347, %cst_216 {dimension_numbers = #tpu.dot_dimension_numbers<[1], [1], [0], [0], [0, 0, 1, 0], [], []>} : vector<8x8xf32>, vector<8x8xf32>, vector<8x8xf32> -> vector<8x8xf32>
    %354 = vector.broadcast %8 : vector<1x8xf32> to vector<8x8xf32>
    %355 = arith.addf %353, %354 : vector<8x8xf32>
    %356 = math.exp %355 : vector<8x8xf32>
    %cst_217 = arith.constant dense<0.000000e+00> : vector<8xf32>
    %357 = vector.multi_reduction <add>, %356, %cst_217 [1] : vector<8x8xf32> to vector<8xf32>
    %358 = vector.shape_cast %357 : vector<8xf32> to vector<8x1xf32>
    %359 = tpu.reciprocal %358 {approx = true} : vector<8x1xf32> -> vector<8x1xf32>
    %360 = vector.broadcast %359 : vector<8x1xf32> to vector<8x8xf32>
    %361 = arith.mulf %356, %360 : vector<8x8xf32>
    %cst_218 = arith.constant dense<0.000000e+00> : vector<8x8xf32>
    %362 = tpu.matmul %361, %352, %cst_218 {dimension_numbers = #tpu.dot_dimension_numbers<[1], [0], [0], [1], [0, 0, 1, 1], [], []>} : vector<8x8xf32>, vector<8x8xf32>, vector<8x8xf32> -> vector<8x8xf32>
    %cst_219 = arith.constant dense<0.000000e+00> : vector<8x32xf32>
    %363 = tpu.matmul %362, %337, %cst_219 {dimension_numbers = #tpu.dot_dimension_numbers<[1], [0], [0], [1], [0, 0, 1, 1], [], []>} : vector<8x8xf32>, vector<8x32xf32>, vector<8x32xf32> -> vector<8x32xf32>
    %364 = arith.addf %329, %363 : vector<8x32xf32>
    %c1_220 = arith.constant 1 : index
    %c24_221 = arith.constant 24 : index
    %c0_222 = arith.constant 0 : index
    %365 = vector.load %arg3[%c1_220, %c24_221, %c0_222] : memref<2x248x64xf32, #tpu.memory_space<vmem>>, vector<1x8x32xf32>
    %366 = vector.shape_cast %365 : vector<1x8x32xf32> to vector<8x32xf32>
    %c1_223 = arith.constant 1 : index
    %c56_224 = arith.constant 56 : index
    %c0_225 = arith.constant 0 : index
    %367 = vector.load %arg3[%c1_223, %c56_224, %c0_225] : memref<2x248x64xf32, #tpu.memory_space<vmem>>, vector<1x8x32xf32>
    %368 = vector.shape_cast %367 : vector<1x8x32xf32> to vector<8x32xf32>
    %c1_226 = arith.constant 1 : index
    %c88_227 = arith.constant 88 : index
    %c0_228 = arith.constant 0 : index
    %369 = vector.load %arg3[%c1_226, %c88_227, %c0_228] : memref<2x248x64xf32, #tpu.memory_space<vmem>>, vector<1x8x32xf32>
    %370 = vector.shape_cast %369 : vector<1x8x32xf32> to vector<8x32xf32>
    %c1_229 = arith.constant 1 : index
    %c120_230 = arith.constant 120 : index
    %c0_231 = arith.constant 0 : index
    %371 = vector.load %arg3[%c1_229, %c120_230, %c0_231] : memref<2x248x64xf32, #tpu.memory_space<vmem>>, vector<1x8x32xf32>
    %372 = vector.shape_cast %371 : vector<1x8x32xf32> to vector<8x32xf32>
    %cst_232 = arith.constant dense<0.000000e+00> : vector<8x8xf32>
    %373 = tpu.matmul %258, %366, %cst_232 {dimension_numbers = #tpu.dot_dimension_numbers<[1], [1], [0], [0], [0, 0, 1, 0], [], []>} : vector<8x32xf32>, vector<8x32xf32>, vector<8x8xf32> -> vector<8x8xf32>
    %c1_233 = arith.constant 1 : index
    %c227_234 = arith.constant 227 : index
    %c0_235 = arith.constant 0 : index
    %374 = vector.load %arg3[%c1_233, %c227_234, %c0_235] : memref<2x248x64xf32, #tpu.memory_space<vmem>>, vector<1x1x8xf32>
    %375 = vector.shape_cast %374 : vector<1x1x8xf32> to vector<1x8xf32>
    %376 = vector.broadcast %375 : vector<1x8xf32> to vector<8x8xf32>
    %377 = arith.addf %373, %376 : vector<8x8xf32>
    %cst_236 = arith.constant dense<0.000000e+00> : vector<8x8xf32>
    %378 = tpu.matmul %258, %368, %cst_236 {dimension_numbers = #tpu.dot_dimension_numbers<[1], [1], [0], [0], [0, 0, 1, 0], [], []>} : vector<8x32xf32>, vector<8x32xf32>, vector<8x8xf32> -> vector<8x8xf32>
    %c1_237 = arith.constant 1 : index
    %c231_238 = arith.constant 231 : index
    %c0_239 = arith.constant 0 : index
    %379 = vector.load %arg3[%c1_237, %c231_238, %c0_239] : memref<2x248x64xf32, #tpu.memory_space<vmem>>, vector<1x1x8xf32>
    %380 = vector.shape_cast %379 : vector<1x1x8xf32> to vector<1x8xf32>
    %381 = vector.broadcast %380 : vector<1x8xf32> to vector<8x8xf32>
    %382 = arith.addf %378, %381 : vector<8x8xf32>
    %cst_240 = arith.constant dense<0.000000e+00> : vector<8x8xf32>
    %383 = tpu.matmul %258, %370, %cst_240 {dimension_numbers = #tpu.dot_dimension_numbers<[1], [1], [0], [0], [0, 0, 1, 0], [], []>} : vector<8x32xf32>, vector<8x32xf32>, vector<8x8xf32> -> vector<8x8xf32>
    %c1_241 = arith.constant 1 : index
    %c235_242 = arith.constant 235 : index
    %c0_243 = arith.constant 0 : index
    %384 = vector.load %arg3[%c1_241, %c235_242, %c0_243] : memref<2x248x64xf32, #tpu.memory_space<vmem>>, vector<1x1x8xf32>
    %385 = vector.shape_cast %384 : vector<1x1x8xf32> to vector<1x8xf32>
    %386 = vector.broadcast %385 : vector<1x8xf32> to vector<8x8xf32>
    %387 = arith.addf %383, %386 : vector<8x8xf32>
    %cst_244 = arith.constant dense<0.000000e+00> : vector<8x8xf32>
    %388 = tpu.matmul %377, %382, %cst_244 {dimension_numbers = #tpu.dot_dimension_numbers<[1], [1], [0], [0], [0, 0, 1, 0], [], []>} : vector<8x8xf32>, vector<8x8xf32>, vector<8x8xf32> -> vector<8x8xf32>
    %389 = vector.broadcast %8 : vector<1x8xf32> to vector<8x8xf32>
    %390 = arith.addf %388, %389 : vector<8x8xf32>
    %391 = math.exp %390 : vector<8x8xf32>
    %cst_245 = arith.constant dense<0.000000e+00> : vector<8xf32>
    %392 = vector.multi_reduction <add>, %391, %cst_245 [1] : vector<8x8xf32> to vector<8xf32>
    %393 = vector.shape_cast %392 : vector<8xf32> to vector<8x1xf32>
    %394 = tpu.reciprocal %393 {approx = true} : vector<8x1xf32> -> vector<8x1xf32>
    %395 = vector.broadcast %394 : vector<8x1xf32> to vector<8x8xf32>
    %396 = arith.mulf %391, %395 : vector<8x8xf32>
    %cst_246 = arith.constant dense<0.000000e+00> : vector<8x8xf32>
    %397 = tpu.matmul %396, %387, %cst_246 {dimension_numbers = #tpu.dot_dimension_numbers<[1], [0], [0], [1], [0, 0, 1, 1], [], []>} : vector<8x8xf32>, vector<8x8xf32>, vector<8x8xf32> -> vector<8x8xf32>
    %cst_247 = arith.constant dense<0.000000e+00> : vector<8x32xf32>
    %398 = tpu.matmul %397, %372, %cst_247 {dimension_numbers = #tpu.dot_dimension_numbers<[1], [0], [0], [1], [0, 0, 1, 1], [], []>} : vector<8x8xf32>, vector<8x32xf32>, vector<8x32xf32> -> vector<8x32xf32>
    %399 = arith.addf %364, %398 : vector<8x32xf32>
    %c1_248 = arith.constant 1 : index
    %c236_249 = arith.constant 236 : index
    %c0_250 = arith.constant 0 : index
    %400 = vector.load %arg3[%c1_248, %c236_249, %c0_250] : memref<2x248x64xf32, #tpu.memory_space<vmem>>, vector<1x1x32xf32>
    %401 = vector.shape_cast %400 : vector<1x1x32xf32> to vector<1x32xf32>
    %402 = vector.broadcast %401 : vector<1x32xf32> to vector<8x32xf32>
    %403 = arith.addf %399, %402 : vector<8x32xf32>
    %404 = arith.addf %258, %403 : vector<8x32xf32>
    %c1_251 = arith.constant 1 : index
    %c237_252 = arith.constant 237 : index
    %c0_253 = arith.constant 0 : index
    %405 = vector.load %arg3[%c1_251, %c237_252, %c0_253] : memref<2x248x64xf32, #tpu.memory_space<vmem>>, vector<1x1x32xf32>
    %406 = vector.shape_cast %405 : vector<1x1x32xf32> to vector<1x32xf32>
    %c1_254 = arith.constant 1 : index
    %c238_255 = arith.constant 238 : index
    %c0_256 = arith.constant 0 : index
    %407 = vector.load %arg3[%c1_254, %c238_255, %c0_256] : memref<2x248x64xf32, #tpu.memory_space<vmem>>, vector<1x1x32xf32>
    %408 = vector.shape_cast %407 : vector<1x1x32xf32> to vector<1x32xf32>
    %cst_257 = arith.constant dense<0.000000e+00> : vector<8xf32>
    %409 = vector.multi_reduction <add>, %404, %cst_257 [1] : vector<8x32xf32> to vector<8xf32>
    %410 = vector.shape_cast %409 : vector<8xf32> to vector<8x1xf32>
    %cst_258 = arith.constant 3.200000e+01 : f32
    %411 = vector.broadcast %cst_258 : f32 to vector<8x1xf32>
    %412 = arith.divf %410, %411 : vector<8x1xf32>
    %413 = vector.broadcast %412 : vector<8x1xf32> to vector<8x32xf32>
    %414 = arith.subf %404, %413 : vector<8x32xf32>
    %415 = arith.mulf %414, %414 : vector<8x32xf32>
    %cst_259 = arith.constant dense<0.000000e+00> : vector<8xf32>
    %416 = vector.multi_reduction <add>, %415, %cst_259 [1] : vector<8x32xf32> to vector<8xf32>
    %417 = vector.shape_cast %416 : vector<8xf32> to vector<8x1xf32>
    %cst_260 = arith.constant 3.200000e+01 : f32
    %418 = vector.broadcast %cst_260 : f32 to vector<8x1xf32>
    %419 = arith.divf %417, %418 : vector<8x1xf32>
    %420 = vector.broadcast %412 : vector<8x1xf32> to vector<8x32xf32>
    %421 = arith.subf %404, %420 : vector<8x32xf32>
    %cst_261 = arith.constant 9.99999974E-6 : f32
    %422 = vector.broadcast %cst_261 : f32 to vector<8x1xf32>
    %423 = arith.addf %419, %422 : vector<8x1xf32>
    %424 = math.rsqrt %423 : vector<8x1xf32>
    %425 = vector.broadcast %424 : vector<8x1xf32> to vector<8x32xf32>
    %426 = arith.mulf %421, %425 : vector<8x32xf32>
    %427 = vector.broadcast %406 : vector<1x32xf32> to vector<8x32xf32>
    %428 = arith.mulf %426, %427 : vector<8x32xf32>
    %429 = vector.broadcast %408 : vector<1x32xf32> to vector<8x32xf32>
    %430 = arith.addf %428, %429 : vector<8x32xf32>
    %c1_262 = arith.constant 1 : index
    %c128_263 = arith.constant 128 : index
    %c0_264 = arith.constant 0 : index
    %431 = vector.load %arg3[%c1_262, %c128_263, %c0_264] : memref<2x248x64xf32, #tpu.memory_space<vmem>>, vector<1x32x64xf32>
    %432 = vector.shape_cast %431 : vector<1x32x64xf32> to vector<32x64xf32>
    %cst_265 = arith.constant dense<0.000000e+00> : vector<8x64xf32>
    %433 = tpu.matmul %430, %432, %cst_265 {dimension_numbers = #tpu.dot_dimension_numbers<[1], [0], [0], [1], [0, 0, 1, 1], [], []>} : vector<8x32xf32>, vector<32x64xf32>, vector<8x64xf32> -> vector<8x64xf32>
    %c1_266 = arith.constant 1 : index
    %c239_267 = arith.constant 239 : index
    %c0_268 = arith.constant 0 : index
    %434 = vector.load %arg3[%c1_266, %c239_267, %c0_268] : memref<2x248x64xf32, #tpu.memory_space<vmem>>, vector<1x1x64xf32>
    %435 = vector.shape_cast %434 : vector<1x1x64xf32> to vector<1x64xf32>
    %436 = vector.broadcast %435 : vector<1x64xf32> to vector<8x64xf32>
    %437 = arith.addf %433, %436 : vector<8x64xf32>
    %438 = arith.mulf %437, %437 : vector<8x64xf32>
    %439 = arith.mulf %437, %438 : vector<8x64xf32>
    %cst_269 = arith.constant 4.471500e-02 : f32
    %440 = vector.broadcast %cst_269 : f32 to vector<8x64xf32>
    %441 = arith.mulf %440, %439 : vector<8x64xf32>
    %442 = arith.addf %437, %441 : vector<8x64xf32>
    %cst_270 = arith.constant 0.797884583 : f32
    %443 = vector.broadcast %cst_270 : f32 to vector<8x64xf32>
    %444 = arith.mulf %443, %442 : vector<8x64xf32>
    %445 = math.tanh %444 : vector<8x64xf32>
    %cst_271 = arith.constant 1.000000e+00 : f32
    %446 = vector.broadcast %cst_271 : f32 to vector<8x64xf32>
    %447 = arith.addf %446, %445 : vector<8x64xf32>
    %cst_272 = arith.constant 5.000000e-01 : f32
    %448 = vector.broadcast %cst_272 : f32 to vector<8x64xf32>
    %449 = arith.mulf %448, %447 : vector<8x64xf32>
    %450 = arith.mulf %437, %449 : vector<8x64xf32>
    %c1_273 = arith.constant 1 : index
    %c160_274 = arith.constant 160 : index
    %c0_275 = arith.constant 0 : index
    %451 = vector.load %arg3[%c1_273, %c160_274, %c0_275] : memref<2x248x64xf32, #tpu.memory_space<vmem>>, vector<1x64x32xf32>
    %452 = vector.shape_cast %451 : vector<1x64x32xf32> to vector<64x32xf32>
    %cst_276 = arith.constant dense<0.000000e+00> : vector<8x32xf32>
    %453 = tpu.matmul %450, %452, %cst_276 {dimension_numbers = #tpu.dot_dimension_numbers<[1], [0], [0], [1], [0, 0, 1, 1], [], []>} : vector<8x64xf32>, vector<64x32xf32>, vector<8x32xf32> -> vector<8x32xf32>
    %c1_277 = arith.constant 1 : index
    %c240_278 = arith.constant 240 : index
    %c0_279 = arith.constant 0 : index
    %454 = vector.load %arg3[%c1_277, %c240_278, %c0_279] : memref<2x248x64xf32, #tpu.memory_space<vmem>>, vector<1x1x32xf32>
    %455 = vector.shape_cast %454 : vector<1x1x32xf32> to vector<1x32xf32>
    %456 = vector.broadcast %455 : vector<1x32xf32> to vector<8x32xf32>
    %457 = arith.addf %453, %456 : vector<8x32xf32>
    %458 = arith.addf %430, %457 : vector<8x32xf32>
    %c1_280 = arith.constant 1 : index
    %c241_281 = arith.constant 241 : index
    %c0_282 = arith.constant 0 : index
    %459 = vector.load %arg3[%c1_280, %c241_281, %c0_282] : memref<2x248x64xf32, #tpu.memory_space<vmem>>, vector<1x1x32xf32>
    %460 = vector.shape_cast %459 : vector<1x1x32xf32> to vector<1x32xf32>
    %c1_283 = arith.constant 1 : index
    %c242_284 = arith.constant 242 : index
    %c0_285 = arith.constant 0 : index
    %461 = vector.load %arg3[%c1_283, %c242_284, %c0_285] : memref<2x248x64xf32, #tpu.memory_space<vmem>>, vector<1x1x32xf32>
    %462 = vector.shape_cast %461 : vector<1x1x32xf32> to vector<1x32xf32>
    %cst_286 = arith.constant dense<0.000000e+00> : vector<8xf32>
    %463 = vector.multi_reduction <add>, %458, %cst_286 [1] : vector<8x32xf32> to vector<8xf32>
    %464 = vector.shape_cast %463 : vector<8xf32> to vector<8x1xf32>
    %cst_287 = arith.constant 3.200000e+01 : f32
    %465 = vector.broadcast %cst_287 : f32 to vector<8x1xf32>
    %466 = arith.divf %464, %465 : vector<8x1xf32>
    %467 = vector.broadcast %466 : vector<8x1xf32> to vector<8x32xf32>
    %468 = arith.subf %458, %467 : vector<8x32xf32>
    %469 = arith.mulf %468, %468 : vector<8x32xf32>
    %cst_288 = arith.constant dense<0.000000e+00> : vector<8xf32>
    %470 = vector.multi_reduction <add>, %469, %cst_288 [1] : vector<8x32xf32> to vector<8xf32>
    %471 = vector.shape_cast %470 : vector<8xf32> to vector<8x1xf32>
    %cst_289 = arith.constant 3.200000e+01 : f32
    %472 = vector.broadcast %cst_289 : f32 to vector<8x1xf32>
    %473 = arith.divf %471, %472 : vector<8x1xf32>
    %474 = vector.broadcast %466 : vector<8x1xf32> to vector<8x32xf32>
    %475 = arith.subf %458, %474 : vector<8x32xf32>
    %cst_290 = arith.constant 9.99999974E-6 : f32
    %476 = vector.broadcast %cst_290 : f32 to vector<8x1xf32>
    %477 = arith.addf %473, %476 : vector<8x1xf32>
    %478 = math.rsqrt %477 : vector<8x1xf32>
    %479 = vector.broadcast %478 : vector<8x1xf32> to vector<8x32xf32>
    %480 = arith.mulf %475, %479 : vector<8x32xf32>
    %481 = vector.broadcast %460 : vector<1x32xf32> to vector<8x32xf32>
    %482 = arith.mulf %480, %481 : vector<8x32xf32>
    %483 = vector.broadcast %462 : vector<1x32xf32> to vector<8x32xf32>
    %484 = arith.addf %482, %483 : vector<8x32xf32>
    %c2 = arith.constant 2 : index
    %c0_291 = arith.constant 0 : index
    %485 = vector.load %arg4[%c2, %c0_291] : memref<72x128xf32, #tpu.memory_space<vmem>>, vector<32x32xf32>
    %cst_292 = arith.constant dense<0.000000e+00> : vector<8x32xf32>
    %486 = tpu.matmul %484, %485, %cst_292 {dimension_numbers = #tpu.dot_dimension_numbers<[1], [0], [0], [1], [0, 0, 1, 1], [], []>} : vector<8x32xf32>, vector<32x32xf32>, vector<8x32xf32> -> vector<8x32xf32>
    %c34 = arith.constant 34 : index
    %c0_293 = arith.constant 0 : index
    %487 = vector.load %arg4[%c34, %c0_293] : memref<72x128xf32, #tpu.memory_space<vmem>>, vector<1x32xf32>
    %488 = vector.broadcast %487 : vector<1x32xf32> to vector<8x32xf32>
    %489 = arith.addf %486, %488 : vector<8x32xf32>
    %490 = math.tanh %489 : vector<8x32xf32>
    %c35 = arith.constant 35 : index
    %c0_294 = arith.constant 0 : index
    %491 = vector.load %arg4[%c35, %c0_294] : memref<72x128xf32, #tpu.memory_space<vmem>>, vector<32x128xf32>
    %cst_295 = arith.constant dense<0.000000e+00> : vector<8x128xf32>
    %492 = tpu.matmul %490, %491, %cst_295 {dimension_numbers = #tpu.dot_dimension_numbers<[1], [0], [0], [1], [0, 0, 1, 1], [], []>} : vector<8x32xf32>, vector<32x128xf32>, vector<8x128xf32> -> vector<8x128xf32>
    %c67 = arith.constant 67 : index
    %c0_296 = arith.constant 0 : index
    %493 = vector.load %arg4[%c67, %c0_296] : memref<72x128xf32, #tpu.memory_space<vmem>>, vector<1x128xf32>
    %494 = vector.broadcast %493 : vector<1x128xf32> to vector<8x128xf32>
    %495 = arith.addf %492, %494 : vector<8x128xf32>
    %c0_297 = arith.constant 0 : index
    %c0_298 = arith.constant 0 : index
    %c0_299 = arith.constant 0 : index
    %496 = vector.load %arg5[%c0_297, %c0_298, %c0_299] : memref<1x8x128xf32, #tpu.memory_space<vmem>>, vector<1x8x128xf32>
    %497 = vector.shape_cast %496 : vector<1x8x128xf32> to vector<8x128xf32>
    %498 = vector.shape_cast %495 : vector<8x128xf32> to vector<1x8x128xf32>
    tpu.vector_store %arg5[%c0_297, %c0_298, %c0_299], %498 {strides = array<i32>} : memref<1x8x128xf32, #tpu.memory_space<vmem>>, vector<1x8x128xf32>,
    return
  }
  func.func @transform_0(%arg0: i32) -> (i32, i32, i32) {
    %c0_i32 = arith.constant 0 : i32
    %c0_i32_0 = arith.constant 0 : i32
    %c0_i32_1 = arith.constant 0 : i32
    return %arg0, %c0_i32, %c0_i32_0 : i32, i32, i32
  }
  func.func @transform_1(%arg0: i32) -> (i32, i32, i32) {
    %c0_i32 = arith.constant 0 : i32
    %c0_i32_0 = arith.constant 0 : i32
    %c0_i32_1 = arith.constant 0 : i32
    return %arg0, %c0_i32, %c0_i32_0 : i32, i32, i32
  }
  func.func @transform_2(%arg0: i32) -> (i32, i32, i32) {
    %c0_i32 = arith.constant 0 : i32
    %c0_i32_0 = arith.constant 0 : i32
    %c0_i32_1 = arith.constant 0 : i32
    %c0_i32_2 = arith.constant 0 : i32
    return %c0_i32, %c0_i32_0, %c0_i32_1 : i32, i32, i32
  }
  func.func @transform_3(%arg0: i32) -> (i32, i32) {
    %c0_i32 = arith.constant 0 : i32
    %c0_i32_0 = arith.constant 0 : i32
    %c0_i32_1 = arith.constant 0 : i32
    return %c0_i32, %c0_i32_0 : i32, i32
  }
  func.func @transform_4(%arg0: i32) -> (i32, i32, i32) {
    %c0_i32 = arith.constant 0 : i32
    %c0_i32_0 = arith.constant 0 : i32
    %c0_i32_1 = arith.constant 0 : i32
    return %arg0, %c0_i32, %c0_i32_0 : i32, i32, i32
  }
}

</mosaic_0001>

<llo_original>
// kernel: mask_classifier_forward.1
$region0: #{mask_classifier_forward.1}
  #allocation0 [shape = 'u32[]', space=smem, size = 0x4, offset = 0x4, fixed_abs, tag = 'smem constant byte address 0x4 - core index']
  #allocation1 [shape = 'u32[144,128]{1,0:T(1,128)}', space=vmem, size = 0x12000, scoped, tag = 'internal scratch']
  %s0 = inlined_call_operand.vmem [shape: f32[2,8,32], index: 0, kind: input, shape index: {}]
  %s1 = inlined_call_operand.vmem [shape: f32[2,1,8], index: 1, kind: input, shape index: {}]
  %s2 = inlined_call_operand.vmem [shape: f32[2,248,64], index: 2, kind: input, shape index: {}]
  %s3 = inlined_call_operand.vmem [shape: f32[72,128], index: 3, kind: input, shape index: {}]
  %s4 = inlined_call_operand.vmem [shape: f32[2,8,128], index: 4, kind: output, shape index: {}]
  %s5 = sld [smem:[#allocation0]]
  $region49: #{mask_classifier_forward.1} parent=0
    _
  %s7 = ssub.s32 1, %s5
  %s8 = scalar_select 0, %s7, %s5
  loop: start=0, step=1, limit=4
  $region2: #{mask_classifier_forward.1} parent=0 // loop_pre_header
    _
  $region3: #{mask_classifier_forward.1} parent=0 // loop_header
    %s10 = sphi 0, %s14
    %p11 = scmp.ge.s32.totalorder %s10, 4
    %s20 = sphi 0, %s22
    %s23 = sphi 0, %s20
    %s24 = sphi 0, %s23
    %s40 = sphi 0, %s24
    %s46 = sphi 0, %s48
    %s49 = sphi 0, %s46
    %s50 = sphi 0, %s49
    %s66 = sphi 0, %s50
    %s70 = sphi 0, %s70
    %s72 = sphi 0, %s70
    %s73 = sphi 0, %s72
    %s87 = sphi 0, %s73
    %s91 = sphi 0, %s91
    %s93 = sphi 0, %s91
    %s94 = sphi 0, %s93
    %s108 = sphi 0, %s94
    %s114 = sphi 0, %s116
    %s117 = sphi 0, %s114
    %s118 = sphi 0, %s117
    %s134 = sphi 0, %s118
  $region4: #{mask_classifier_forward.1} parent=0 // loop_header_branch
    %13 = sbr.rel (%p11) target = $region8
  $region5: #{mask_classifier_forward.1} parent=0 // loop_body
    %s15 = ssub.s32 %s10, 1
    %s16 = ssub.s32 %s10, 2
    %s17 = sadd.s32 %s10, 1
    %s18 = ssub.s32 %s10, %s17
    %p19 = scmp.eq.s32.totalorder %s18, 0
    %s21 = sadd.s32 %s20, 1
    %s22 = scalar_select %p19, %s20, %s21
    %p25 = pneg %p19
    %p26 = scmp.eq.s32.totalorder %s10, 1
    %p27 = por %p25, %p26
    %p28 = scmp.ne.s32.totalorder %s20, %s23
    %p29 = scmp.eq.s32.totalorder %s10, 0
    %p30 = por %p28, %p29
    %p31 = scmp.ne.s32.totalorder %s20, %s23
    %p32 = scmp.eq.s32.totalorder %s15, 1
    %p33 = por %p31, %p32
    %p34 = scmp.ne.s32.totalorder %s23, %s24
    %p35 = scmp.eq.s32.totalorder %s15, 0
    %p36 = por %p34, %p35
    %p37 = scmp.ne.s32.totalorder %s23, %s24
    %p38 = scmp.eq.s32.totalorder %s16, 1
    %p39 = por %p37, %p38
    %p41 = scmp.ne.s32.totalorder %s24, %s40
    %p42 = scmp.eq.s32.totalorder %s16, 0
    %p43 = por %p41, %p42
    %s44 = ssub.s32 %s10, %s17
    %p45 = scmp.eq.s32.totalorder %s44, 0
    %s47 = sadd.s32 %s46, 1
    %s48 = scalar_select %p45, %s46, %s47
    %p51 = pneg %p45
    %p52 = scmp.eq.s32.totalorder %s10, 1
    %p53 = por %p51, %p52
    %p54 = scmp.ne.s32.totalorder %s46, %s49
    %p55 = scmp.eq.s32.totalorder %s10, 0
    %p56 = por %p54, %p55
    %p57 = scmp.ne.s32.totalorder %s46, %s49
    %p58 = scmp.eq.s32.totalorder %s15, 1
    %p59 = por %p57, %p58
    %p60 = scmp.ne.s32.totalorder %s49, %s50
    %p61 = scmp.eq.s32.totalorder %s15, 0
    %p62 = por %p60, %p61
    %p63 = scmp.ne.s32.totalorder %s49, %s50
    %p64 = scmp.eq.s32.totalorder %s16, 1
    %p65 = por %p63, %p64
    %p67 = scmp.ne.s32.totalorder %s50, %s66
    %p68 = scmp.eq.s32.totalorder %s16, 0
    %p69 = por %p67, %p68
    %s71 = sadd.s32 %s70, 1
    %p74 = scmp.eq.s32.totalorder %s10, 1
    %p75 = scmp.ne.s32.totalorder %s70, %s72
    %p76 = scmp.eq.s32.totalorder %s10, 0
    %p77 = por %p75, %p76
    %p78 = scmp.ne.s32.totalorder %s70, %s72
    %p79 = scmp.eq.s32.totalorder %s15, 1
    %p80 = por %p78, %p79
    %p81 = scmp.ne.s32.totalorder %s72, %s73
    %p82 = scmp.eq.s32.totalorder %s15, 0
    %p83 = por %p81, %p82
    %p84 = scmp.ne.s32.totalorder %s72, %s73
    %p85 = scmp.eq.s32.totalorder %s16, 1
    %p86 = por %p84, %p85
    %p88 = scmp.ne.s32.totalorder %s73, %s87
    %p89 = scmp.eq.s32.totalorder %s16, 0
    %p90 = por %p88, %p89
    %s92 = sadd.s32 %s91, 1
    %p95 = scmp.eq.s32.totalorder %s10, 1
    %p96 = scmp.ne.s32.totalorder %s91, %s93
    %p97 = scmp.eq.s32.totalorder %s10, 0
    %p98 = por %p96, %p97
    %p99 = scmp.ne.s32.totalorder %s91, %s93
    %p100 = scmp.eq.s32.totalorder %s15, 1
    %p101 = por %p99, %p100
    %p102 = scmp.ne.s32.totalorder %s93, %s94
    %p103 = scmp.eq.s32.totalorder %s15, 0
    %p104 = por %p102, %p103
    %p105 = scmp.ne.s32.totalorder %s93, %s94
    %p106 = scmp.eq.s32.totalorder %s16, 1
    %p107 = por %p105, %p106
    %p109 = scmp.ne.s32.totalorder %s94, %s108
    %p110 = scmp.eq.s32.totalorder %s16, 0
    %p111 = por %p109, %p110
    %s112 = ssub.s32 %s10, %s17
    %p113 = scmp.eq.s32.totalorder %s112, 0
    %s115 = sadd.s32 %s114, 1
    %s116 = scalar_select %p113, %s114, %s115
    %p119 = pneg %p113
    %p120 = scmp.eq.s32.totalorder %s10, 1
    %p121 = por %p119, %p120
    %p122 = scmp.ne.s32.totalorder %s114, %s117
    %p123 = scmp.eq.s32.totalorder %s10, 0
    %p124 = por %p122, %p123
    %p125 = scmp.ne.s32.totalorder %s114, %s117
    %p126 = scmp.eq.s32.totalorder %s15, 1
    %p127 = por %p125, %p126
    %p128 = scmp.ne.s32.totalorder %s117, %s118
    %p129 = scmp.eq.s32.totalorder %s15, 0
    %p130 = por %p128, %p129
    %p131 = scmp.ne.s32.totalorder %s117, %s118
    %p132 = scmp.eq.s32.totalorder %s16, 1
    %p133 = por %p131, %p132
    %p135 = scmp.ne.s32.totalorder %s118, %s134
    %p136 = scmp.eq.s32.totalorder %s16, 0
    %p137 = por %p135, %p136
    %p138 = scmp.le.s32.totalorder 1, %s10
    %p139 = scmp.lt.s32.totalorder %s10, 3
    %p140 = pnand %p138, %p139
    %p141 = pneg %p140
    // Predicated region
    $region9: #{mask_classifier_forward.1} parent=5 // pred_check
      _
    $region10: #{mask_classifier_forward.1} parent=5 // pred_check_branch
      %143 = sbr.rel (%p140) target = $region12
    $region11: #{mask_classifier_forward.1} parent=5 // pred_region
      %s144 = ssub.s32 %s10, 1
      // Predicated region
      $region13: #{mask_classifier_forward.1} parent=11 // pred_check
        %p145 = pneg %p83
      $region14: #{mask_classifier_forward.1} parent=11 // pred_check_branch
        %147 = sbr.rel (%p145) target = $region16
      $region15: #{mask_classifier_forward.1} parent=11 // pred_region
        _
      $region16: #{mask_classifier_forward.1} parent=11 // pred_fallthru
        _
      // Predicated region
      $region17: #{mask_classifier_forward.1} parent=11 // pred_check
        %p148 = pneg %p104
      $region18: #{mask_classifier_forward.1} parent=11 // pred_check_branch
        %150 = sbr.rel (%p148) target = $region20
      $region19: #{mask_classifier_forward.1} parent=11 // pred_region
        _
      $region20: #{mask_classifier_forward.1} parent=11 // pred_fallthru
        _
    $region12: #{mask_classifier_forward.1} parent=5 // pred_fallthru
      _
    %p151 = scmp.lt.s32.totalorder %s10, 2
    // Predicated region
    $region21: #{mask_classifier_forward.1} parent=5 // pred_check
      %p152 = pneg %p151
    $region22: #{mask_classifier_forward.1} parent=5 // pred_check_branch
      %154 = sbr.rel (%p152) target = $region24
    $region23: #{mask_classifier_forward.1} parent=5 // pred_region
      // Predicated region
      $region25: #{mask_classifier_forward.1} parent=23 // pred_check
        %p155 = pneg %p30
      $region26: #{mask_classifier_forward.1} parent=23 // pred_check_branch
        %157 = sbr.rel (%p155) target = $region28
      $region27: #{mask_classifier_forward.1} parent=23 // pred_region
        %p158 = scmp.lt.s32.totalorder %s10, 1
        %s159 = scalar_select %p158, %s10, 1
        %s160 = smul.addr %s159, 8
        %s161 = scalar_lea.vmem %s0, %s160
      $region28: #{mask_classifier_forward.1} parent=23 // pred_fallthru
        _
      // Predicated region
      $region29: #{mask_classifier_forward.1} parent=23 // pred_check
        %p162 = pneg %p56
      $region30: #{mask_classifier_forward.1} parent=23 // pred_check_branch
        %164 = sbr.rel (%p162) target = $region32
      $region31: #{mask_classifier_forward.1} parent=23 // pred_region
        %p165 = scmp.lt.s32.totalorder %s10, 1
        %s166 = scalar_select %p165, %s10, 1
        %s167 = scalar_lea.vmem %s1, %s166
      $region32: #{mask_classifier_forward.1} parent=23 // pred_fallthru
        _
    $region24: #{mask_classifier_forward.1} parent=5 // pred_fallthru
      _
    %p168 = scmp.le.s32.totalorder 1, %s10
    %p169 = scmp.lt.s32.totalorder %s10, 3
    %p170 = pnand %p168, %p169
    %p171 = pneg %p170
    // Predicated region
    $region33: #{mask_classifier_forward.1} parent=5 // pred_check
      _
    $region34: #{mask_classifier_forward.1} parent=5 // pred_check_branch
      %173 = sbr.rel (%p170) target = $region36
    $region35: #{mask_classifier_forward.1} parent=5 // pred_region
      %s174 = ssub.s32 %s10, 1
      %p175 = scmp.lt.s32.totalorder %s15, 1
      %s176 = scalar_select %p175, %s15, 1
      %s177 = smul.addr %s176, 8
      %s178 = scalar_lea.vmem %s0, %s177
      %p179 = pneg %p36
      %p180 = pneg %p33
      %p181 = scmp.lt.s32.totalorder %s15, 1
      %s182 = scalar_select %p181, %s15, 1
      %s183 = scalar_lea.vmem %s1, %s182
      %p184 = pneg %p62
      %p185 = pneg %p59
      %p186 = pneg %p83
      %p187 = pneg %p80
      %p188 = pneg %p104
      %p189 = pneg %p101
      %p190 = pneg %p130
      %p191 = pneg %p127
      %p192 = scmp.lt.s32.totalorder %s15, 1
      %s193 = scalar_select %p192, %s15, 1
      %s194 = smul.addr %s193, 8
      %s195 = scalar_lea.vmem %s4, %s194
      %p196 = scmp.lt.s32.totalorder %s15, 1
      %s197 = scalar_select %p196, %s15, 1
      %s198 = smul.addr %s197, 8
      %s199 = scalar_lea.vmem %s0, %s198
      %p200 = scmp.lt.s32.totalorder %s15, 1
      %s201 = scalar_select %p200, %s15, 1
      %s202 = scalar_lea.vmem %s1, %s201
      %p203 = scmp.lt.s32.totalorder %s15, 1
      %s204 = scalar_select %p203, %s15, 1
      %s205 = smul.addr %s204, 8
      %s206 = scalar_lea.vmem %s4, %s205
      %v207 = vld [vmem:[%s199] sm:$0xff]
      %v208 = vld [vmem:[%s202] sm:$0x1]
      %vm209 = vcmp.gt.f32.partialorder %v208, 0.5
      %v210 = vsel %vm209, 0.0, -1e+09
      %v211 = vld [vmem:[%s3] sm:$0x1]
      %v212 = vld [vmem:[%s3 + $0x1] sm:$0x1]
      %vm213 = vcmask 261120
      %v214 = vsel %vm213, %v207, 0.0
      %215 = vadd.xlane.f32.xlu0 %v214
      %v216 = vpop.xlane.xlu0 %215
      %v217 = vrcp.pop 32.0
      %v218 = vmul.f32 %v216, %v217
      %v219 = vsub.f32 %v207, %v218
      %v220 = vmul.f32 %v219, %v219
      %v221 = vsel %vm213, %v220, 0.0
      %222 = vadd.xlane.f32.xlu0 %v221
      %v223 = vpop.xlane.xlu0 %222
      %v224 = vmul.f32 %v223, %v217
      %v225 = vadd.f32 %v224, 1e-05
      %v226 = vrsqrt.pop %v225
      %v227 = vmul.f32 %v219, %v226
      %v228 = vlaneseq
      %v229 = vshrl.u32 %v228, 7
      %v230 = vsub.s32 0, %v229
      %v231 = vrot.slane %v211, %v230
      %v232 = vmul.f32 %v227, %v231
      %v233 = vlaneseq
      %v234 = vshrl.u32 %v233, 7
      %v235 = vsub.s32 0, %v234
      %v236 = vrot.slane %v212, %v235
      %v237 = vadd.f32 %v232, %v236
      %v238 = vld [vmem:[%s2] sm:$0xff]
      %v239 = vld [vmem:[%s2 + $0x20] sm:$0xff]
      %v240 = vld [vmem:[%s2 + $0x40] sm:$0xff]
      %v241 = vld [vmem:[%s2 + $0x60] sm:$0xff]
      %v242 = vld [vmem:[%s2 + $0xe0] sm:$0x1]
      %v243 = vlaneseq
      %v244 = vshrl.u32 %v243, 7
      %v245 = vsub.s32 0, %v244
      %v246 = vrot.slane %v242, %v245
      %v248 = vsel %vm213, %v237, 0
      %v251 = vsel %vm213, %v238, 0
      %253 = vmatprep.subr.mxu0 0.0
      %254 = vmatpush1.xpose.msra.mxu0 %v251
      %255 = vmatprep.subr.mxu0 0.0
      %256 = vmatpush1.xpose.msra.mxu0 0.0
      %257 = vmatprep.subr.mxu0 0.0
      %258 = vmatpush1.xpose.msra.mxu0 0.0
      %259 = vmatprep.subr.mxu0 0.0
      %260 = vmatpush1.xpose.msra.mxu0 0.0
      %261 = vmatprep.subr.mxu0 0.0
      %262 = vmatpush1.xpose.msra.mxu0 0.0
      %263 = vmatprep.subr.mxu0 0.0
      %264 = vmatpush1.xpose.msra.mxu0 0.0
      %265 = vmatprep.subr.mxu0 0.0
      %266 = vmatpush1.xpose.msra.mxu0 0.0
      %267 = vmatprep.subr.mxu0 0.0
      %268 = vmatpush1.xpose.msra.mxu0 0.0
      %269 = vmatprep.subr.mxu0 0.0
      %270 = vmatpush1.xpose.msra.mxu0 0.0
      %271 = vmatprep.subr.mxu0 0.0
      %272 = vmatpush1.xpose.msra.mxu0 0.0
      %273 = vmatprep.subr.mxu0 0.0
      %274 = vmatpush1.xpose.msra.mxu0 0.0
      %275 = vmatprep.subr.mxu0 0.0
      %276 = vmatpush1.xpose.msra.mxu0 0.0
      %277 = vmatprep.subr.mxu0 0.0
      %278 = vmatpush1.xpose.msra.mxu0 0.0
      %279 = vmatprep.subr.mxu0 0.0
      %280 = vmatpush1.xpose.msra.mxu0 0.0
      %281 = vmatprep.subr.mxu0 0.0
      %282 = vmatpush1.xpose.msra.mxu0 0.0
      %283 = vmatprep.subr.mxu0 0.0
      %284 = vmatpush1.xpose.msra.mxu0 0.0
      %285 = vmatprep.subr.mxu0 0.0
      %286 = vmatpush1.xpose.msra.mxu0 0.0
      %287 = vmatprep.subr.mxu0 0.0
      %288 = vmatpush1.xpose.msra.mxu0 0.0
      %289 = vmatprep.subr.mxu0 0.0
      %290 = vmatpush1.xpose.msra.mxu0 0.0
      %291 = vmatprep.subr.mxu0 0.0
      %292 = vmatpush1.xpose.msra.mxu0 0.0
      %293 = vmatprep.subr.mxu0 0.0
      %294 = vmatpush1.xpose.msra.mxu0 0.0
      %295 = vmatprep.subr.mxu0 0.0
      %296 = vmatpush1.xpose.msra.mxu0 0.0
      %297 = vmatprep.subr.mxu0 0.0
      %298 = vmatpush1.xpose.msra.mxu0 0.0
      %299 = vmatprep.subr.mxu0 0.0
      %300 = vmatpush1.xpose.msra.mxu0 0.0
      %301 = vmatprep.subr.mxu0 0.0
      %302 = vmatpush1.xpose.msra.mxu0 0.0
      %303 = vmatprep.subr.mxu0 0.0
      %304 = vmatpush1.xpose.msra.mxu0 0.0
      %305 = vmatprep.subr.mxu0 0.0
      %306 = vmatpush1.xpose.msra.mxu0 0.0
      %307 = vmatprep.subr.mxu0 0.0
      %308 = vmatpush1.xpose.msra.mxu0 0.0
      %309 = vmatprep.subr.mxu0 0.0
      %310 = vmatpush1.xpose.msra.mxu0 0.0
      %311 = vmatprep.subr.mxu0 0.0
      %312 = vmatpush1.xpose.msra.mxu0 0.0
      %313 = vmatprep.subr.mxu0 0.0
      %314 = vmatpush1.xpose.msra.mxu0 0.0
      %315 = vmatprep.subr.mxu0 0.0
      %316 = vmatpush1.xpose.msra.mxu0 0.0
      %317 = vmatprep.mubr.f32.mxu0 0.0
      %318 = vmatmul.mubr.f32.gmra.mrb[0].mxu0 %v248
      %v319 = vpop.f32.mrb[0].mxu0
      %v320 = vadd.f32 %v246, %v319
      %v321 = vpop.f32.mrb[0].mxu0
      %322 = vdwg.mxu0
      %v323 = vld [vmem:[%s2 + $0xe4] sm:$0x1]
      %v324 = vlaneseq
      %v325 = vshrl.u32 %v324, 7
      %v326 = vsub.s32 0, %v325
      %v327 = vrot.slane %v323, %v326
      %v329 = vsel %vm213, %v239, 0
      %331 = vmatprep.subr.mxu0 0.0
      %332 = vmatpush1.xpose.msra.mxu0 %v329
      %333 = vmatprep.subr.mxu0 0.0
      %334 = vmatpush1.xpose.msra.mxu0 0.0
      %335 = vmatprep.subr.mxu0 0.0
      %336 = vmatpush1.xpose.msra.mxu0 0.0
      %337 = vmatprep.subr.mxu0 0.0
      %338 = vmatpush1.xpose.msra.mxu0 0.0
      %339 = vmatprep.subr.mxu0 0.0
      %340 = vmatpush1.xpose.msra.mxu0 0.0
      %341 = vmatprep.subr.mxu0 0.0
      %342 = vmatpush1.xpose.msra.mxu0 0.0
      %343 = vmatprep.subr.mxu0 0.0
      %344 = vmatpush1.xpose.msra.mxu0 0.0
      %345 = vmatprep.subr.mxu0 0.0
      %346 = vmatpush1.xpose.msra.mxu0 0.0
      %347 = vmatprep.subr.mxu0 0.0
      %348 = vmatpush1.xpose.msra.mxu0 0.0
      %349 = vmatprep.subr.mxu0 0.0
      %350 = vmatpush1.xpose.msra.mxu0 0.0
      %351 = vmatprep.subr.mxu0 0.0
      %352 = vmatpush1.xpose.msra.mxu0 0.0
      %353 = vmatprep.subr.mxu0 0.0
      %354 = vmatpush1.xpose.msra.mxu0 0.0
      %355 = vmatprep.subr.mxu0 0.0
      %356 = vmatpush1.xpose.msra.mxu0 0.0
      %357 = vmatprep.subr.mxu0 0.0
      %358 = vmatpush1.xpose.msra.mxu0 0.0
      %359 = vmatprep.subr.mxu0 0.0
      %360 = vmatpush1.xpose.msra.mxu0 0.0
      %361 = vmatprep.subr.mxu0 0.0
      %362 = vmatpush1.xpose.msra.mxu0 0.0
      %363 = vmatprep.subr.mxu0 0.0
      %364 = vmatpush1.xpose.msra.mxu0 0.0
      %365 = vmatprep.subr.mxu0 0.0
      %366 = vmatpush1.xpose.msra.mxu0 0.0
      %367 = vmatprep.subr.mxu0 0.0
      %368 = vmatpush1.xpose.msra.mxu0 0.0
      %369 = vmatprep.subr.mxu0 0.0
      %370 = vmatpush1.xpose.msra.mxu0 0.0
      %371 = vmatprep.subr.mxu0 0.0
      %372 = vmatpush1.xpose.msra.mxu0 0.0
      %373 = vmatprep.subr.mxu0 0.0
      %374 = vmatpush1.xpose.msra.mxu0 0.0
      %375 = vmatprep.subr.mxu0 0.0
      %376 = vmatpush1.xpose.msra.mxu0 0.0
      %377 = vmatprep.subr.mxu0 0.0
      %378 = vmatpush1.xpose.msra.mxu0 0.0
      %379 = vmatprep.subr.mxu0 0.0
      %380 = vmatpush1.xpose.msra.mxu0 0.0
      %381 = vmatprep.subr.mxu0 0.0
      %382 = vmatpush1.xpose.msra.mxu0 0.0
      %383 = vmatprep.subr.mxu0 0.0
      %384 = vmatpush1.xpose.msra.mxu0 0.0
      %385 = vmatprep.subr.mxu0 0.0
      %386 = vmatpush1.xpose.msra.mxu0 0.0
      %387 = vmatprep.subr.mxu0 0.0
      %388 = vmatpush1.xpose.msra.mxu0 0.0
      %389 = vmatprep.subr.mxu0 0.0
      %390 = vmatpush1.xpose.msra.mxu0 0.0
      %391 = vmatprep.subr.mxu0 0.0
      %392 = vmatpush1.xpose.msra.mxu0 0.0
      %393 = vmatprep.subr.mxu0 0.0
      %394 = vmatpush1.xpose.msra.mxu0 0.0
      %395 = vmatprep.mubr.f32.mxu0 0.0
      %396 = vmatmul.mubr.f32.gmra.mrb[0].mxu0 %v248
      %v397 = vpop.f32.mrb[0].mxu0
      %v398 = vadd.f32 %v327, %v397
      %v399 = vpop.f32.mrb[0].mxu0
      %400 = vdwg.mxu0
      %v401 = vld [vmem:[%s2 + $0xe8] sm:$0x1]
      %v402 = vlaneseq
      %v403 = vshrl.u32 %v402, 7
      %v404 = vsub.s32 0, %v403
      %v405 = vrot.slane %v401, %v404
      %v407 = vsel %vm213, %v240, 0
      %409 = vmatprep.subr.mxu0 0.0
      %410 = vmatpush1.xpose.msra.mxu0 %v407
      %411 = vmatprep.subr.mxu0 0.0
      %412 = vmatpush1.xpose.msra.mxu0 0.0
      %413 = vmatprep.subr.mxu0 0.0
      %414 = vmatpush1.xpose.msra.mxu0 0.0
      %415 = vmatprep.subr.mxu0 0.0
      %416 = vmatpush1.xpose.msra.mxu0 0.0
      %417 = vmatprep.subr.mxu0 0.0
      %418 = vmatpush1.xpose.msra.mxu0 0.0
      %419 = vmatprep.subr.mxu0 0.0
      %420 = vmatpush1.xpose.msra.mxu0 0.0
      %421 = vmatprep.subr.mxu0 0.0
      %422 = vmatpush1.xpose.msra.mxu0 0.0
      %423 = vmatprep.subr.mxu0 0.0
      %424 = vmatpush1.xpose.msra.mxu0 0.0
      %425 = vmatprep.subr.mxu0 0.0
      %426 = vmatpush1.xpose.msra.mxu0 0.0
      %427 = vmatprep.subr.mxu0 0.0
      %428 = vmatpush1.xpose.msra.mxu0 0.0
      %429 = vmatprep.subr.mxu0 0.0
      %430 = vmatpush1.xpose.msra.mxu0 0.0
      %431 = vmatprep.subr.mxu0 0.0
      %432 = vmatpush1.xpose.msra.mxu0 0.0
      %433 = vmatprep.subr.mxu0 0.0
      %434 = vmatpush1.xpose.msra.mxu0 0.0
      %435 = vmatprep.subr.mxu0 0.0
      %436 = vmatpush1.xpose.msra.mxu0 0.0
      %437 = vmatprep.subr.mxu0 0.0
      %438 = vmatpush1.xpose.msra.mxu0 0.0
      %439 = vmatprep.subr.mxu0 0.0
      %440 = vmatpush1.xpose.msra.mxu0 0.0
      %441 = vmatprep.subr.mxu0 0.0
      %442 = vmatpush1.xpose.msra.mxu0 0.0
      %443 = vmatprep.subr.mxu0 0.0
      %444 = vmatpush1.xpose.msra.mxu0 0.0
      %445 = vmatprep.subr.mxu0 0.0
      %446 = vmatpush1.xpose.msra.mxu0 0.0
      %447 = vmatprep.subr.mxu0 0.0
      %448 = vmatpush1.xpose.msra.mxu0 0.0
      %449 = vmatprep.subr.mxu0 0.0
      %450 = vmatpush1.xpose.msra.mxu0 0.0
      %451 = vmatprep.subr.mxu0 0.0
      %452 = vmatpush1.xpose.msra.mxu0 0.0
      %453 = vmatprep.subr.mxu0 0.0
      %454 = vmatpush1.xpose.msra.mxu0 0.0
      %455 = vmatprep.subr.mxu0 0.0
      %456 = vmatpush1.xpose.msra.mxu0 0.0
      %457 = vmatprep.subr.mxu0 0.0
      %458 = vmatpush1.xpose.msra.mxu0 0.0
      %459 = vmatprep.subr.mxu0 0.0
      %460 = vmatpush1.xpose.msra.mxu0 0.0
      %461 = vmatprep.subr.mxu0 0.0
      %462 = vmatpush1.xpose.msra.mxu0 0.0
      %463 = vmatprep.subr.mxu0 0.0
      %464 = vmatpush1.xpose.msra.mxu0 0.0
      %465 = vmatprep.subr.mxu0 0.0
      %466 = vmatpush1.xpose.msra.mxu0 0.0
      %467 = vmatprep.subr.mxu0 0.0
      %468 = vmatpush1.xpose.msra.mxu0 0.0
      %469 = vmatprep.subr.mxu0 0.0
      %470 = vmatpush1.xpose.msra.mxu0 0.0
      %471 = vmatprep.subr.mxu0 0.0
      %472 = vmatpush1.xpose.msra.mxu0 0.0
      %473 = vmatprep.mubr.f32.mxu0 0.0
      %474 = vmatmul.mubr.f32.gmra.mrb[0].mxu0 %v248
      %v475 = vpop.f32.mrb[0].mxu0
      %v476 = vadd.f32 %v405, %v475
      %v477 = vpop.f32.mrb[0].mxu0
      %478 = vdwg.mxu0
      %v480 = vlaneseq
      %v481 = vshrl.u32 %v480, 7
      %v482 = vsub.s32 0, %v481
      %v483 = vrot.slane %v210, %v482
      %vm485 = vcmask 64512
      %v487 = vsel %vm485, %v320, 0
      %v490 = vsel %vm485, %v398, 0
      %492 = vmatprep.subr.mxu0 0.0
      %493 = vmatpush1.xpose.msra.mxu0 %v490
      %494 = vmatprep.subr.mxu0 0.0
      %495 = vmatpush1.xpose.msra.mxu0 0.0
      %496 = vmatprep.subr.mxu0 0.0
      %497 = vmatpush1.xpose.msra.mxu0 0.0
      %498 = vmatprep.subr.mxu0 0.0
      %499 = vmatpush1.xpose.msra.mxu0 0.0
      %500 = vmatprep.subr.mxu0 0.0
      %501 = vmatpush1.xpose.msra.mxu0 0.0
      %502 = vmatprep.subr.mxu0 0.0
      %503 = vmatpush1.xpose.msra.mxu0 0.0
      %504 = vmatprep.subr.mxu0 0.0
      %505 = vmatpush1.xpose.msra.mxu0 0.0
      %506 = vmatprep.subr.mxu0 0.0
      %507 = vmatpush1.xpose.msra.mxu0 0.0
      %508 = vmatprep.subr.mxu0 0.0
      %509 = vmatpush1.xpose.msra.mxu0 0.0
      %510 = vmatprep.subr.mxu0 0.0
      %511 = vmatpush1.xpose.msra.mxu0 0.0
      %512 = vmatprep.subr.mxu0 0.0
      %513 = vmatpush1.xpose.msra.mxu0 0.0
      %514 = vmatprep.subr.mxu0 0.0
      %515 = vmatpush1.xpose.msra.mxu0 0.0
      %516 = vmatprep.subr.mxu0 0.0
      %517 = vmatpush1.xpose.msra.mxu0 0.0
      %518 = vmatprep.subr.mxu0 0.0
      %519 = vmatpush1.xpose.msra.mxu0 0.0
      %520 = vmatprep.subr.mxu0 0.0
      %521 = vmatpush1.xpose.msra.mxu0 0.0
      %522 = vmatprep.subr.mxu0 0.0
      %523 = vmatpush1.xpose.msra.mxu0 0.0
      %524 = vmatprep.subr.mxu0 0.0
      %525 = vmatpush1.xpose.msra.mxu0 0.0
      %526 = vmatprep.subr.mxu0 0.0
      %527 = vmatpush1.xpose.msra.mxu0 0.0
      %528 = vmatprep.subr.mxu0 0.0
      %529 = vmatpush1.xpose.msra.mxu0 0.0
      %530 = vmatprep.subr.mxu0 0.0
      %531 = vmatpush1.xpose.msra.mxu0 0.0
      %532 = vmatprep.subr.mxu0 0.0
      %533 = vmatpush1.xpose.msra.mxu0 0.0
      %534 = vmatprep.subr.mxu0 0.0
      %535 = vmatpush1.xpose.msra.mxu0 0.0
      %536 = vmatprep.subr.mxu0 0.0
      %537 = vmatpush1.xpose.msra.mxu0 0.0
      %538 = vmatprep.subr.mxu0 0.0
      %539 = vmatpush1.xpose.msra.mxu0 0.0
      %540 = vmatprep.subr.mxu0 0.0
      %541 = vmatpush1.xpose.msra.mxu0 0.0
      %542 = vmatprep.subr.mxu0 0.0
      %543 = vmatpush1.xpose.msra.mxu0 0.0
      %544 = vmatprep.subr.mxu0 0.0
      %545 = vmatpush1.xpose.msra.mxu0 0.0
      %546 = vmatprep.subr.mxu0 0.0
      %547 = vmatpush1.xpose.msra.mxu0 0.0
      %548 = vmatprep.subr.mxu0 0.0
      %549 = vmatpush1.xpose.msra.mxu0 0.0
      %550 = vmatprep.subr.mxu0 0.0
      %551 = vmatpush1.xpose.msra.mxu0 0.0
      %552 = vmatprep.subr.mxu0 0.0
      %553 = vmatpush1.xpose.msra.mxu0 0.0
      %554 = vmatprep.subr.mxu0 0.0
      %555 = vmatpush1.xpose.msra.mxu0 0.0
      %556 = vmatprep.mubr.f32.mxu0 0.0
      %557 = vmatmul.mubr.f32.gmra.mrb[0].mxu0 %v487
      %v558 = vpop.f32.mrb[0].mxu0
      %v559 = vadd.f32 %v483, %v558
      %v560 = vpop.f32.mrb[0].mxu0
      %561 = vdwg.mxu0
      %v562 = vmul.f32 %v559, 1.442695
      %v563 = vpow.pop %v562
      %v564 = vsel %vm485, %v563, 0.0
      %565 = vadd.xlane.f32.xlu0 %v564
      %v566 = vpop.xlane.xlu0 %565
      %v567 = vrcp.pop %v566
      %v568 = vmul.f32 %v563, %v567
      %v570 = vsel %vm485, %v568, 0
      %572 = vmatprep.subr.mxu0 0.0
      %573 = vmatpush1.msra.mxu0 %v476
      %574 = vmatprep.subr.mxu0 0.0
      %575 = vmatpush1.msra.mxu0 0.0
      %576 = vmatprep.subr.mxu0 0.0
      %577 = vmatpush1.msra.mxu0 0.0
      %578 = vmatprep.subr.mxu0 0.0
      %579 = vmatpush1.msra.mxu0 0.0
      %580 = vmatprep.subr.mxu0 0.0
      %581 = vmatpush1.msra.mxu0 0.0
      %582 = vmatprep.subr.mxu0 0.0
      %583 = vmatpush1.msra.mxu0 0.0
      %584 = vmatprep.subr.mxu0 0.0
      %585 = vmatpush1.msra.mxu0 0.0
      %586 = vmatprep.subr.mxu0 0.0
      %587 = vmatpush1.msra.mxu0 0.0
      %588 = vmatprep.subr.mxu0 0.0
      %589 = vmatpush1.msra.mxu0 0.0
      %590 = vmatprep.subr.mxu0 0.0
      %591 = vmatpush1.msra.mxu0 0.0
      %592 = vmatprep.subr.mxu0 0.0
      %593 = vmatpush1.msra.mxu0 0.0
      %594 = vmatprep.subr.mxu0 0.0
      %595 = vmatpush1.msra.mxu0 0.0
      %596 = vmatprep.subr.mxu0 0.0
      %597 = vmatpush1.msra.mxu0 0.0
      %598 = vmatprep.subr.mxu0 0.0
      %599 = vmatpush1.msra.mxu0 0.0
      %600 = vmatprep.subr.mxu0 0.0
      %601 = vmatpush1.msra.mxu0 0.0
      %602 = vmatprep.subr.mxu0 0.0
      %603 = vmatpush1.msra.mxu0 0.0
      %604 = vmatprep.subr.mxu0 0.0
      %605 = vmatpush1.msra.mxu0 0.0
      %606 = vmatprep.subr.mxu0 0.0
      %607 = vmatpush1.msra.mxu0 0.0
      %608 = vmatprep.subr.mxu0 0.0
      %609 = vmatpush1.msra.mxu0 0.0
      %610 = vmatprep.subr.mxu0 0.0
      %611 = vmatpush1.msra.mxu0 0.0
      %612 = vmatprep.subr.mxu0 0.0
      %613 = vmatpush1.msra.mxu0 0.0
      %614 = vmatprep.subr.mxu0 0.0
      %615 = vmatpush1.msra.mxu0 0.0
      %616 = vmatprep.subr.mxu0 0.0
      %617 = vmatpush1.msra.mxu0 0.0
      %618 = vmatprep.subr.mxu0 0.0
      %619 = vmatpush1.msra.mxu0 0.0
      %620 = vmatprep.subr.mxu0 0.0
      %621 = vmatpush1.msra.mxu0 0.0
      %622 = vmatprep.subr.mxu0 0.0
      %623 = vmatpush1.msra.mxu0 0.0
      %624 = vmatprep.subr.mxu0 0.0
      %625 = vmatpush1.msra.mxu0 0.0
      %626 = vmatprep.subr.mxu0 0.0
      %627 = vmatpush1.msra.mxu0 0.0
      %628 = vmatprep.subr.mxu0 0.0
      %629 = vmatpush1.msra.mxu0 0.0
      %630 = vmatprep.subr.mxu0 0.0
      %631 = vmatpush1.msra.mxu0 0.0
      %632 = vmatprep.subr.mxu0 0.0
      %633 = vmatpush1.msra.mxu0 0.0
      %634 = vmatprep.subr.mxu0 0.0
      %635 = vmatpush1.msra.mxu0 0.0
      %636 = vmatprep.mubr.f32.mxu0 0.0
      %637 = vmatmul.mubr.f32.gmra.mrb[0].mxu0 %v570
      %v638 = vpop.f32.mrb[0].mxu0
      %v639 = vadd.f32 0.0, %v638
      %v640 = vpop.f32.mrb[0].mxu0
      %641 = vdwg.mxu0
      %v642 = vld [vmem:[%s2 + $0x8] sm:$0xff]
      %v643 = vld [vmem:[%s2 + $0x28] sm:$0xff]
      %v644 = vld [vmem:[%s2 + $0x48] sm:$0xff]
      %v645 = vld [vmem:[%s2 + $0x68] sm:$0xff]
      %v646 = vld [vmem:[%s2 + $0xe1] sm:$0x1]
      %v647 = vlaneseq
      %v648 = vshrl.u32 %v647, 7
      %v649 = vsub.s32 0, %v648
      %v650 = vrot.slane %v646, %v649
      %v652 = vsel %vm213, %v642, 0
      %654 = vmatprep.subr.mxu0 0.0
      %655 = vmatpush1.xpose.msra.mxu0 %v652
      %656 = vmatprep.subr.mxu0 0.0
      %657 = vmatpush1.xpose.msra.mxu0 0.0
      %658 = vmatprep.subr.mxu0 0.0
      %659 = vmatpush1.xpose.msra.mxu0 0.0
      %660 = vmatprep.subr.mxu0 0.0
      %661 = vmatpush1.xpose.msra.mxu0 0.0
      %662 = vmatprep.subr.mxu0 0.0
      %663 = vmatpush1.xpose.msra.mxu0 0.0
      %664 = vmatprep.subr.mxu0 0.0
      %665 = vmatpush1.xpose.msra.mxu0 0.0
      %666 = vmatprep.subr.mxu0 0.0
      %667 = vmatpush1.xpose.msra.mxu0 0.0
      %668 = vmatprep.subr.mxu0 0.0
      %669 = vmatpush1.xpose.msra.mxu0 0.0
      %670 = vmatprep.subr.mxu0 0.0
      %671 = vmatpush1.xpose.msra.mxu0 0.0
      %672 = vmatprep.subr.mxu0 0.0
      %673 = vmatpush1.xpose.msra.mxu0 0.0
      %674 = vmatprep.subr.mxu0 0.0
      %675 = vmatpush1.xpose.msra.mxu0 0.0
      %676 = vmatprep.subr.mxu0 0.0
      %677 = vmatpush1.xpose.msra.mxu0 0.0
      %678 = vmatprep.subr.mxu0 0.0
      %679 = vmatpush1.xpose.msra.mxu0 0.0
      %680 = vmatprep.subr.mxu0 0.0
      %681 = vmatpush1.xpose.msra.mxu0 0.0
      %682 = vmatprep.subr.mxu0 0.0
      %683 = vmatpush1.xpose.msra.mxu0 0.0
      %684 = vmatprep.subr.mxu0 0.0
      %685 = vmatpush1.xpose.msra.mxu0 0.0
      %686 = vmatprep.subr.mxu0 0.0
      %687 = vmatpush1.xpose.msra.mxu0 0.0
      %688 = vmatprep.subr.mxu0 0.0
      %689 = vmatpush1.xpose.msra.mxu0 0.0
      %690 = vmatprep.subr.mxu0 0.0
      %691 = vmatpush1.xpose.msra.mxu0 0.0
      %692 = vmatprep.subr.mxu0 0.0
      %693 = vmatpush1.xpose.msra.mxu0 0.0
      %694 = vmatprep.subr.mxu0 0.0
      %695 = vmatpush1.xpose.msra.mxu0 0.0
      %696 = vmatprep.subr.mxu0 0.0
      %697 = vmatpush1.xpose.msra.mxu0 0.0
      %698 = vmatprep.subr.mxu0 0.0
      %699 = vmatpush1.xpose.msra.mxu0 0.0
      %700 = vmatprep.subr.mxu0 0.0
      %701 = vmatpush1.xpose.msra.mxu0 0.0
      %702 = vmatprep.subr.mxu0 0.0
      %703 = vmatpush1.xpose.msra.mxu0 0.0
      %704 = vmatprep.subr.mxu0 0.0
      %705 = vmatpush1.xpose.msra.mxu0 0.0
      %706 = vmatprep.subr.mxu0 0.0
      %707 = vmatpush1.xpose.msra.mxu0 0.0
      %708 = vmatprep.subr.mxu0 0.0
      %709 = vmatpush1.xpose.msra.mxu0 0.0
      %710 = vmatprep.subr.mxu0 0.0
      %711 = vmatpush1.xpose.msra.mxu0 0.0
      %712 = vmatprep.subr.mxu0 0.0
      %713 = vmatpush1.xpose.msra.mxu0 0.0
      %714 = vmatprep.subr.mxu0 0.0
      %715 = vmatpush1.xpose.msra.mxu0 0.0
      %716 = vmatprep.subr.mxu0 0.0
      %717 = vmatpush1.xpose.msra.mxu0 0.0
      %718 = vmatprep.mubr.f32.mxu0 0.0
      %719 = vmatmul.mubr.f32.gmra.mrb[0].mxu0 %v248
      %v720 = vpop.f32.mrb[0].mxu0
      %v721 = vadd.f32 %v650, %v720
      %v722 = vpop.f32.mrb[0].mxu0
      %723 = vdwg.mxu0
      %v724 = vld [vmem:[%s2 + $0xe5] sm:$0x1]
      %v725 = vlaneseq
      %v726 = vshrl.u32 %v725, 7
      %v727 = vsub.s32 0, %v726
      %v728 = vrot.slane %v724, %v727
      %v730 = vsel %vm213, %v643, 0
      %732 = vmatprep.subr.mxu0 0.0
      %733 = vmatpush1.xpose.msra.mxu0 %v730
      %734 = vmatprep.subr.mxu0 0.0
      %735 = vmatpush1.xpose.msra.mxu0 0.0
      %736 = vmatprep.subr.mxu0 0.0
      %737 = vmatpush1.xpose.msra.mxu0 0.0
      %738 = vmatprep.subr.mxu0 0.0
      %739 = vmatpush1.xpose.msra.mxu0 0.0
      %740 = vmatprep.subr.mxu0 0.0
      %741 = vmatpush1.xpose.msra.mxu0 0.0
      %742 = vmatprep.subr.mxu0 0.0
      %743 = vmatpush1.xpose.msra.mxu0 0.0
      %744 = vmatprep.subr.mxu0 0.0
      %745 = vmatpush1.xpose.msra.mxu0 0.0
      %746 = vmatprep.subr.mxu0 0.0
      %747 = vmatpush1.xpose.msra.mxu0 0.0
      %748 = vmatprep.subr.mxu0 0.0
      %749 = vmatpush1.xpose.msra.mxu0 0.0
      %750 = vmatprep.subr.mxu0 0.0
      %751 = vmatpush1.xpose.msra.mxu0 0.0
      %752 = vmatprep.subr.mxu0 0.0
      %753 = vmatpush1.xpose.msra.mxu0 0.0
      %754 = vmatprep.subr.mxu0 0.0
      %755 = vmatpush1.xpose.msra.mxu0 0.0
      %756 = vmatprep.subr.mxu0 0.0
      %757 = vmatpush1.xpose.msra.mxu0 0.0
      %758 = vmatprep.subr.mxu0 0.0
      %759 = vmatpush1.xpose.msra.mxu0 0.0
      %760 = vmatprep.subr.mxu0 0.0
      %761 = vmatpush1.xpose.msra.mxu0 0.0
      %762 = vmatprep.subr.mxu0 0.0
      %763 = vmatpush1.xpose.msra.mxu0 0.0
      %764 = vmatprep.subr.mxu0 0.0
      %765 = vmatpush1.xpose.msra.mxu0 0.0
      %766 = vmatprep.subr.mxu0 0.0
      %767 = vmatpush1.xpose.msra.mxu0 0.0
      %768 = vmatprep.subr.mxu0 0.0
      %769 = vmatpush1.xpose.msra.mxu0 0.0
      %770 = vmatprep.subr.mxu0 0.0
      %771 = vmatpush1.xpose.msra.mxu0 0.0
      %772 = vmatprep.subr.mxu0 0.0
      %773 = vmatpush1.xpose.msra.mxu0 0.0
      %774 = vmatprep.subr.mxu0 0.0
      %775 = vmatpush1.xpose.msra.mxu0 0.0
      %776 = vmatprep.subr.mxu0 0.0
      %777 = vmatpush1.xpose.msra.mxu0 0.0
      %778 = vmatprep.subr.mxu0 0.0
      %779 = vmatpush1.xpose.msra.mxu0 0.0
      %780 = vmatprep.subr.mxu0 0.0
      %781 = vmatpush1.xpose.msra.mxu0 0.0
      %782 = vmatprep.subr.mxu0 0.0
      %783 = vmatpush1.xpose.msra.mxu0 0.0
      %784 = vmatprep.subr.mxu0 0.0
      %785 = vmatpush1.xpose.msra.mxu0 0.0
      %786 = vmatprep.subr.mxu0 0.0
      %787 = vmatpush1.xpose.msra.mxu0 0.0
      %788 = vmatprep.subr.mxu0 0.0
      %789 = vmatpush1.xpose.msra.mxu0 0.0
      %790 = vmatprep.subr.mxu0 0.0
      %791 = vmatpush1.xpose.msra.mxu0 0.0
      %792 = vmatprep.subr.mxu0 0.0
      %793 = vmatpush1.xpose.msra.mxu0 0.0
      %794 = vmatprep.subr.mxu0 0.0
      %795 = vmatpush1.xpose.msra.mxu0 0.0
      %796 = vmatprep.mubr.f32.mxu0 0.0
      %797 = vmatmul.mubr.f32.gmra.mrb[0].mxu0 %v248
      %v798 = vpop.f32.mrb[0].mxu0
      %v799 = vadd.f32 %v728, %v798
      %v800 = vpop.f32.mrb[0].mxu0
      %801 = vdwg.mxu0
      %v802 = vld [vmem:[%s2 + $0xe9] sm:$0x1]
      %v803 = vlaneseq
      %v804 = vshrl.u32 %v803, 7
      %v805 = vsub.s32 0, %v804
      %v806 = vrot.slane %v802, %v805
      %v808 = vsel %vm213, %v644, 0
      %810 = vmatprep.subr.mxu0 0.0
      %811 = vmatpush1.xpose.msra.mxu0 %v808
      %812 = vmatprep.subr.mxu0 0.0
      %813 = vmatpush1.xpose.msra.mxu0 0.0
      %814 = vmatprep.subr.mxu0 0.0
      %815 = vmatpush1.xpose.msra.mxu0 0.0
      %816 = vmatprep.subr.mxu0 0.0
      %817 = vmatpush1.xpose.msra.mxu0 0.0
      %818 = vmatprep.subr.mxu0 0.0
      %819 = vmatpush1.xpose.msra.mxu0 0.0
      %820 = vmatprep.subr.mxu0 0.0
      %821 = vmatpush1.xpose.msra.mxu0 0.0
      %822 = vmatprep.subr.mxu0 0.0
      %823 = vmatpush1.xpose.msra.mxu0 0.0
      %824 = vmatprep.subr.mxu0 0.0
      %825 = vmatpush1.xpose.msra.mxu0 0.0
      %826 = vmatprep.subr.mxu0 0.0
      %827 = vmatpush1.xpose.msra.mxu0 0.0
      %828 = vmatprep.subr.mxu0 0.0
      %829 = vmatpush1.xpose.msra.mxu0 0.0
      %830 = vmatprep.subr.mxu0 0.0
      %831 = vmatpush1.xpose.msra.mxu0 0.0
      %832 = vmatprep.subr.mxu0 0.0
      %833 = vmatpush1.xpose.msra.mxu0 0.0
      %834 = vmatprep.subr.mxu0 0.0
      %835 = vmatpush1.xpose.msra.mxu0 0.0
      %836 = vmatprep.subr.mxu0 0.0
      %837 = vmatpush1.xpose.msra.mxu0 0.0
      %838 = vmatprep.subr.mxu0 0.0
      %839 = vmatpush1.xpose.msra.mxu0 0.0
      %840 = vmatprep.subr.mxu0 0.0
      %841 = vmatpush1.xpose.msra.mxu0 0.0
      %842 = vmatprep.subr.mxu0 0.0
      %843 = vmatpush1.xpose.msra.mxu0 0.0
      %844 = vmatprep.subr.mxu0 0.0
      %845 = vmatpush1.xpose.msra.mxu0 0.0
      %846 = vmatprep.subr.mxu0 0.0
      %847 = vmatpush1.xpose.msra.mxu0 0.0
      %848 = vmatprep.subr.mxu0 0.0
      %849 = vmatpush1.xpose.msra.mxu0 0.0
      %850 = vmatprep.subr.mxu0 0.0
      %851 = vmatpush1.xpose.msra.mxu0 0.0
      %852 = vmatprep.subr.mxu0 0.0
      %853 = vmatpush1.xpose.msra.mxu0 0.0
      %854 = vmatprep.subr.mxu0 0.0
      %855 = vmatpush1.xpose.msra.mxu0 0.0
      %856 = vmatprep.subr.mxu0 0.0
      %857 = vmatpush1.xpose.msra.mxu0 0.0
      %858 = vmatprep.subr.mxu0 0.0
      %859 = vmatpush1.xpose.msra.mxu0 0.0
      %860 = vmatprep.subr.mxu0 0.0
      %861 = vmatpush1.xpose.msra.mxu0 0.0
      %862 = vmatprep.subr.mxu0 0.0
      %863 = vmatpush1.xpose.msra.mxu0 0.0
      %864 = vmatprep.subr.mxu0 0.0
      %865 = vmatpush1.xpose.msra.mxu0 0.0
      %866 = vmatprep.subr.mxu0 0.0
      %867 = vmatpush1.xpose.msra.mxu0 0.0
      %868 = vmatprep.subr.mxu0 0.0
      %869 = vmatpush1.xpose.msra.mxu0 0.0
      %870 = vmatprep.subr.mxu0 0.0
      %871 = vmatpush1.xpose.msra.mxu0 0.0
      %872 = vmatprep.subr.mxu0 0.0
      %873 = vmatpush1.xpose.msra.mxu0 0.0
      %874 = vmatprep.mubr.f32.mxu0 0.0
      %875 = vmatmul.mubr.f32.gmra.mrb[0].mxu0 %v248
      %v876 = vpop.f32.mrb[0].mxu0
      %v877 = vadd.f32 %v806, %v876
      %v878 = vpop.f32.mrb[0].mxu0
      %879 = vdwg.mxu0
      %v881 = vsel %vm485, %v721, 0
      %v884 = vsel %vm485, %v799, 0
      %886 = vmatprep.subr.mxu0 0.0
      %887 = vmatpush1.xpose.msra.mxu0 %v884
      %888 = vmatprep.subr.mxu0 0.0
      %889 = vmatpush1.xpose.msra.mxu0 0.0
      %890 = vmatprep.subr.mxu0 0.0
      %891 = vmatpush1.xpose.msra.mxu0 0.0
      %892 = vmatprep.subr.mxu0 0.0
      %893 = vmatpush1.xpose.msra.mxu0 0.0
      %894 = vmatprep.subr.mxu0 0.0
      %895 = vmatpush1.xpose.msra.mxu0 0.0
      %896 = vmatprep.subr.mxu0 0.0
      %897 = vmatpush1.xpose.msra.mxu0 0.0
      %898 = vmatprep.subr.mxu0 0.0
      %899 = vmatpush1.xpose.msra.mxu0 0.0
      %900 = vmatprep.subr.mxu0 0.0
      %901 = vmatpush1.xpose.msra.mxu0 0.0
      %902 = vmatprep.subr.mxu0 0.0
      %903 = vmatpush1.xpose.msra.mxu0 0.0
      %904 = vmatprep.subr.mxu0 0.0
      %905 = vmatpush1.xpose.msra.mxu0 0.0
      %906 = vmatprep.subr.mxu0 0.0
      %907 = vmatpush1.xpose.msra.mxu0 0.0
      %908 = vmatprep.subr.mxu0 0.0
      %909 = vmatpush1.xpose.msra.mxu0 0.0
      %910 = vmatprep.subr.mxu0 0.0
      %911 = vmatpush1.xpose.msra.mxu0 0.0
      %912 = vmatprep.subr.mxu0 0.0
      %913 = vmatpush1.xpose.msra.mxu0 0.0
      %914 = vmatprep.subr.mxu0 0.0
      %915 = vmatpush1.xpose.msra.mxu0 0.0
      %916 = vmatprep.subr.mxu0 0.0
      %917 = vmatpush1.xpose.msra.mxu0 0.0
      %918 = vmatprep.subr.mxu0 0.0
      %919 = vmatpush1.xpose.msra.mxu0 0.0
      %920 = vmatprep.subr.mxu0 0.0
      %921 = vmatpush1.xpose.msra.mxu0 0.0
      %922 = vmatprep.subr.mxu0 0.0
      %923 = vmatpush1.xpose.msra.mxu0 0.0
      %924 = vmatprep.subr.mxu0 0.0
      %925 = vmatpush1.xpose.msra.mxu0 0.0
      %926 = vmatprep.subr.mxu0 0.0
      %927 = vmatpush1.xpose.msra.mxu0 0.0
      %928 = vmatprep.subr.mxu0 0.0
      %929 = vmatpush1.xpose.msra.mxu0 0.0
      %930 = vmatprep.subr.mxu0 0.0
      %931 = vmatpush1.xpose.msra.mxu0 0.0
      %932 = vmatprep.subr.mxu0 0.0
      %933 = vmatpush1.xpose.msra.mxu0 0.0
      %934 = vmatprep.subr.mxu0 0.0
      %935 = vmatpush1.xpose.msra.mxu0 0.0
      %936 = vmatprep.subr.mxu0 0.0
      %937 = vmatpush1.xpose.msra.mxu0 0.0
      %938 = vmatprep.subr.mxu0 0.0
      %939 = vmatpush1.xpose.msra.mxu0 0.0
      %940 = vmatprep.subr.mxu0 0.0
      %941 = vmatpush1.xpose.msra.mxu0 0.0
      %942 = vmatprep.subr.mxu0 0.0
      %943 = vmatpush1.xpose.msra.mxu0 0.0
      %944 = vmatprep.subr.mxu0 0.0
      %945 = vmatpush1.xpose.msra.mxu0 0.0
      %946 = vmatprep.subr.mxu0 0.0
      %947 = vmatpush1.xpose.msra.mxu0 0.0
      %948 = vmatprep.subr.mxu0 0.0
      %949 = vmatpush1.xpose.msra.mxu0 0.0
      %950 = vmatprep.mubr.f32.mxu0 0.0
      %951 = vmatmul.mubr.f32.gmra.mrb[0].mxu0 %v881
      %v952 = vpop.f32.mrb[0].mxu0
      %v953 = vadd.f32 %v483, %v952
      %v954 = vpop.f32.mrb[0].mxu0
      %955 = vdwg.mxu0
      %v956 = vmul.f32 %v953, 1.442695
      %v957 = vpow.pop %v956
      %v958 = vsel %vm485, %v957, 0.0
      %959 = vadd.xlane.f32.xlu0 %v958
      %v960 = vpop.xlane.xlu0 %959
      %v961 = vrcp.pop %v960
      %v962 = vmul.f32 %v957, %v961
      %v964 = vsel %vm485, %v962, 0
      %966 = vmatprep.subr.mxu0 0.0
      %967 = vmatpush1.msra.mxu0 %v877
      %968 = vmatprep.subr.mxu0 0.0
      %969 = vmatpush1.msra.mxu0 0.0
      %970 = vmatprep.subr.mxu0 0.0
      %971 = vmatpush1.msra.mxu0 0.0
      %972 = vmatprep.subr.mxu0 0.0
      %973 = vmatpush1.msra.mxu0 0.0
      %974 = vmatprep.subr.mxu0 0.0
      %975 = vmatpush1.msra.mxu0 0.0
      %976 = vmatprep.subr.mxu0 0.0
      %977 = vmatpush1.msra.mxu0 0.0
      %978 = vmatprep.subr.mxu0 0.0
      %979 = vmatpush1.msra.mxu0 0.0
      %980 = vmatprep.subr.mxu0 0.0
      %981 = vmatpush1.msra.mxu0 0.0
      %982 = vmatprep.subr.mxu0 0.0
      %983 = vmatpush1.msra.mxu0 0.0
      %984 = vmatprep.subr.mxu0 0.0
      %985 = vmatpush1.msra.mxu0 0.0
      %986 = vmatprep.subr.mxu0 0.0
      %987 = vmatpush1.msra.mxu0 0.0
      %988 = vmatprep.subr.mxu0 0.0
      %989 = vmatpush1.msra.mxu0 0.0
      %990 = vmatprep.subr.mxu0 0.0
      %991 = vmatpush1.msra.mxu0 0.0
      %992 = vmatprep.subr.mxu0 0.0
      %993 = vmatpush1.msra.mxu0 0.0
      %994 = vmatprep.subr.mxu0 0.0
      %995 = vmatpush1.msra.mxu0 0.0
      %996 = vmatprep.subr.mxu0 0.0
      %997 = vmatpush1.msra.mxu0 0.0
      %998 = vmatprep.subr.mxu0 0.0
      %999 = vmatpush1.msra.mxu0 0.0
      %1000 = vmatprep.subr.mxu0 0.0
      %1001 = vmatpush1.msra.mxu0 0.0
      %1002 = vmatprep.subr.mxu0 0.0
      %1003 = vmatpush1.msra.mxu0 0.0
      %1004 = vmatprep.subr.mxu0 0.0
      %1005 = vmatpush1.msra.mxu0 0.0
      %1006 = vmatprep.subr.mxu0 0.0
      %1007 = vmatpush1.msra.mxu0 0.0
      %1008 = vmatprep.subr.mxu0 0.0
      %1009 = vmatpush1.msra.mxu0 0.0
      %1010 = vmatprep.subr.mxu0 0.0
      %1011 = vmatpush1.msra.mxu0 0.0
      %1012 = vmatprep.subr.mxu0 0.0
      %1013 = vmatpush1.msra.mxu0 0.0
      %1014 = vmatprep.subr.mxu0 0.0
      %1015 = vmatpush1.msra.mxu0 0.0
      %1016 = vmatprep.subr.mxu0 0.0
      %1017 = vmatpush1.msra.mxu0 0.0
      %1018 = vmatprep.subr.mxu0 0.0
      %1019 = vmatpush1.msra.mxu0 0.0
      %1020 = vmatprep.subr.mxu0 0.0
      %1021 = vmatpush1.msra.mxu0 0.0
      %1022 = vmatprep.subr.mxu0 0.0
      %1023 = vmatpush1.msra.mxu0 0.0
      %1024 = vmatprep.subr.mxu0 0.0
      %1025 = vmatpush1.msra.mxu0 0.0
      %1026 = vmatprep.subr.mxu0 0.0
      %1027 = vmatpush1.msra.mxu0 0.0
      %1028 = vmatprep.subr.mxu0 0.0
      %1029 = vmatpush1.msra.mxu0 0.0
      %1030 = vmatprep.mubr.f32.mxu0 0.0
      %1031 = vmatmul.mubr.f32.gmra.mrb[0].mxu0 %v964
      %v1032 = vpop.f32.mrb[0].mxu0
      %v1033 = vadd.f32 0.0, %v1032
      %v1034 = vpop.f32.mrb[0].mxu0
      %1035 = vdwg.mxu0
      %v1037 = vsel %vm485, %v1033, 0
      %1039 = vmatprep.subr.mxu0 0.0
      %1040 = vmatpush1.msra.mxu0 %v645
      %1041 = vmatprep.subr.mxu0 0.0
      %1042 = vmatpush1.msra.mxu0 0.0
      %1043 = vmatprep.subr.mxu0 0.0
      %1044 = vmatpush1.msra.mxu0 0.0
      %1045 = vmatprep.subr.mxu0 0.0
      %1046 = vmatpush1.msra.mxu0 0.0
      %1047 = vmatprep.subr.mxu0 0.0
      %1048 = vmatpush1.msra.mxu0 0.0
      %1049 = vmatprep.subr.mxu0 0.0
      %1050 = vmatpush1.msra.mxu0 0.0
      %1051 = vmatprep.subr.mxu0 0.0
      %1052 = vmatpush1.msra.mxu0 0.0
      %1053 = vmatprep.subr.mxu0 0.0
      %1054 = vmatpush1.msra.mxu0 0.0
      %1055 = vmatprep.subr.mxu0 0.0
      %1056 = vmatpush1.msra.mxu0 0.0
      %1057 = vmatprep.subr.mxu0 0.0
      %1058 = vmatpush1.msra.mxu0 0.0
      %1059 = vmatprep.subr.mxu0 0.0
      %1060 = vmatpush1.msra.mxu0 0.0
      %1061 = vmatprep.subr.mxu0 0.0
      %1062 = vmatpush1.msra.mxu0 0.0
      %1063 = vmatprep.subr.mxu0 0.0
      %1064 = vmatpush1.msra.mxu0 0.0
      %1065 = vmatprep.subr.mxu0 0.0
      %1066 = vmatpush1.msra.mxu0 0.0
      %1067 = vmatprep.subr.mxu0 0.0
      %1068 = vmatpush1.msra.mxu0 0.0
      %1069 = vmatprep.subr.mxu0 0.0
      %1070 = vmatpush1.msra.mxu0 0.0
      %1071 = vmatprep.subr.mxu0 0.0
      %1072 = vmatpush1.msra.mxu0 0.0
      %1073 = vmatprep.subr.mxu0 0.0
      %1074 = vmatpush1.msra.mxu0 0.0
      %1075 = vmatprep.subr.mxu0 0.0
      %1076 = vmatpush1.msra.mxu0 0.0
      %1077 = vmatprep.subr.mxu0 0.0
      %1078 = vmatpush1.msra.mxu0 0.0
      %1079 = vmatprep.subr.mxu0 0.0
      %1080 = vmatpush1.msra.mxu0 0.0
      %1081 = vmatprep.subr.mxu0 0.0
      %1082 = vmatpush1.msra.mxu0 0.0
      %1083 = vmatprep.subr.mxu0 0.0
      %1084 = vmatpush1.msra.mxu0 0.0
      %1085 = vmatprep.subr.mxu0 0.0
      %1086 = vmatpush1.msra.mxu0 0.0
      %1087 = vmatprep.subr.mxu0 0.0
      %1088 = vmatpush1.msra.mxu0 0.0
      %1089 = vmatprep.subr.mxu0 0.0
      %1090 = vmatpush1.msra.mxu0 0.0
      %1091 = vmatprep.subr.mxu0 0.0
      %1092 = vmatpush1.msra.mxu0 0.0
      %1093 = vmatprep.subr.mxu0 0.0
      %1094 = vmatpush1.msra.mxu0 0.0
      %1095 = vmatprep.subr.mxu0 0.0
      %1096 = vmatpush1.msra.mxu0 0.0
      %1097 = vmatprep.subr.mxu0 0.0
      %1098 = vmatpush1.msra.mxu0 0.0
      %1099 = vmatprep.subr.mxu0 0.0
      %1100 = vmatpush1.msra.mxu0 0.0
      %1101 = vmatprep.subr.mxu0 0.0
      %1102 = vmatpush1.msra.mxu0 0.0
      %1103 = vmatprep.mubr.f32.mxu0 0.0
      %1104 = vmatmul.mubr.f32.gmra.mrb[0].mxu0 %v1037
      %v1105 = vpop.f32.mrb[0].mxu0
      %v1106 = vadd.f32 0.0, %v1105
      %v1107 = vpop.f32.mrb[0].mxu0
      %1108 = vdwg.mxu0
      %v1110 = vsel %vm485, %v639, 0
      %1112 = vmatprep.subr.mxu0 0.0
      %1113 = vmatpush1.msra.mxu0 %v241
      %1114 = vmatprep.subr.mxu0 0.0
      %1115 = vmatpush1.msra.mxu0 0.0
      %1116 = vmatprep.subr.mxu0 0.0
      %1117 = vmatpush1.msra.mxu0 0.0
      %1118 = vmatprep.subr.mxu0 0.0
      %1119 = vmatpush1.msra.mxu0 0.0
      %1120 = vmatprep.subr.mxu0 0.0
      %1121 = vmatpush1.msra.mxu0 0.0
      %1122 = vmatprep.subr.mxu0 0.0
      %1123 = vmatpush1.msra.mxu0 0.0
      %1124 = vmatprep.subr.mxu0 0.0
      %1125 = vmatpush1.msra.mxu0 0.0
      %1126 = vmatprep.subr.mxu0 0.0
      %1127 = vmatpush1.msra.mxu0 0.0
      %1128 = vmatprep.subr.mxu0 0.0
      %1129 = vmatpush1.msra.mxu0 0.0
      %1130 = vmatprep.subr.mxu0 0.0
      %1131 = vmatpush1.msra.mxu0 0.0
      %1132 = vmatprep.subr.mxu0 0.0
      %1133 = vmatpush1.msra.mxu0 0.0
      %1134 = vmatprep.subr.mxu0 0.0
      %1135 = vmatpush1.msra.mxu0 0.0
      %1136 = vmatprep.subr.mxu0 0.0
      %1137 = vmatpush1.msra.mxu0 0.0
      %1138 = vmatprep.subr.mxu0 0.0
      %1139 = vmatpush1.msra.mxu0 0.0
      %1140 = vmatprep.subr.mxu0 0.0
      %1141 = vmatpush1.msra.mxu0 0.0
      %1142 = vmatprep.subr.mxu0 0.0
      %1143 = vmatpush1.msra.mxu0 0.0
      %1144 = vmatprep.subr.mxu0 0.0
      %1145 = vmatpush1.msra.mxu0 0.0
      %1146 = vmatprep.subr.mxu0 0.0
      %1147 = vmatpush1.msra.mxu0 0.0
      %1148 = vmatprep.subr.mxu0 0.0
      %1149 = vmatpush1.msra.mxu0 0.0
      %1150 = vmatprep.subr.mxu0 0.0
      %1151 = vmatpush1.msra.mxu0 0.0
      %1152 = vmatprep.subr.mxu0 0.0
      %1153 = vmatpush1.msra.mxu0 0.0
      %1154 = vmatprep.subr.mxu0 0.0
      %1155 = vmatpush1.msra.mxu0 0.0
      %1156 = vmatprep.subr.mxu0 0.0
      %1157 = vmatpush1.msra.mxu0 0.0
      %1158 = vmatprep.subr.mxu0 0.0
      %1159 = vmatpush1.msra.mxu0 0.0
      %1160 = vmatprep.subr.mxu0 0.0
      %1161 = vmatpush1.msra.mxu0 0.0
      %1162 = vmatprep.subr.mxu0 0.0
      %1163 = vmatpush1.msra.mxu0 0.0
      %1164 = vmatprep.subr.mxu0 0.0
      %1165 = vmatpush1.msra.mxu0 0.0
      %1166 = vmatprep.subr.mxu0 0.0
      %1167 = vmatpush1.msra.mxu0 0.0
      %1168 = vmatprep.subr.mxu0 0.0
      %1169 = vmatpush1.msra.mxu0 0.0
      %1170 = vmatprep.subr.mxu0 0.0
      %1171 = vmatpush1.msra.mxu0 0.0
      %1172 = vmatprep.subr.mxu0 0.0
      %1173 = vmatpush1.msra.mxu0 0.0
      %1174 = vmatprep.subr.mxu0 0.0
      %1175 = vmatpush1.msra.mxu0 0.0
      %1176 = vmatprep.mubr.f32.mxu0 0.0
      %1177 = vmatmul.mubr.f32.gmra.mrb[0].mxu0 %v1110
      %v1178 = vpop.f32.mrb[0].mxu0
      %v1179 = vadd.f32 %v1106, %v1178
      %v1180 = vpop.f32.mrb[0].mxu0
      %1181 = vdwg.mxu0
      %v1182 = vld [vmem:[%s2 + $0x10] sm:$0xff]
      %v1183 = vld [vmem:[%s2 + $0x30] sm:$0xff]
      %v1184 = vld [vmem:[%s2 + $0x50] sm:$0xff]
      %v1185 = vld [vmem:[%s2 + $0x70] sm:$0xff]
      %v1186 = vld [vmem:[%s2 + $0xe2] sm:$0x1]
      %v1187 = vlaneseq
      %v1188 = vshrl.u32 %v1187, 7
      %v1189 = vsub.s32 0, %v1188
      %v1190 = vrot.slane %v1186, %v1189
      %v1192 = vsel %vm213, %v1182, 0
      %1194 = vmatprep.subr.mxu0 0.0
      %1195 = vmatpush1.xpose.msra.mxu0 %v1192
      %1196 = vmatprep.subr.mxu0 0.0
      %1197 = vmatpush1.xpose.msra.mxu0 0.0
      %1198 = vmatprep.subr.mxu0 0.0
      %1199 = vmatpush1.xpose.msra.mxu0 0.0
      %1200 = vmatprep.subr.mxu0 0.0
      %1201 = vmatpush1.xpose.msra.mxu0 0.0
      %1202 = vmatprep.subr.mxu0 0.0
      %1203 = vmatpush1.xpose.msra.mxu0 0.0
      %1204 = vmatprep.subr.mxu0 0.0
      %1205 = vmatpush1.xpose.msra.mxu0 0.0
      %1206 = vmatprep.subr.mxu0 0.0
      %1207 = vmatpush1.xpose.msra.mxu0 0.0
      %1208 = vmatprep.subr.mxu0 0.0
      %1209 = vmatpush1.xpose.msra.mxu0 0.0
      %1210 = vmatprep.subr.mxu0 0.0
      %1211 = vmatpush1.xpose.msra.mxu0 0.0
      %1212 = vmatprep.subr.mxu0 0.0
      %1213 = vmatpush1.xpose.msra.mxu0 0.0
      %1214 = vmatprep.subr.mxu0 0.0
      %1215 = vmatpush1.xpose.msra.mxu0 0.0
      %1216 = vmatprep.subr.mxu0 0.0
      %1217 = vmatpush1.xpose.msra.mxu0 0.0
      %1218 = vmatprep.subr.mxu0 0.0
      %1219 = vmatpush1.xpose.msra.mxu0 0.0
      %1220 = vmatprep.subr.mxu0 0.0
      %1221 = vmatpush1.xpose.msra.mxu0 0.0
      %1222 = vmatprep.subr.mxu0 0.0
      %1223 = vmatpush1.xpose.msra.mxu0 0.0
      %1224 = vmatprep.subr.mxu0 0.0
      %1225 = vmatpush1.xpose.msra.mxu0 0.0
      %1226 = vmatprep.subr.mxu0 0.0
      %1227 = vmatpush1.xpose.msra.mxu0 0.0
      %1228 = vmatprep.subr.mxu0 0.0
      %1229 = vmatpush1.xpose.msra.mxu0 0.0
      %1230 = vmatprep.subr.mxu0 0.0
      %1231 = vmatpush1.xpose.msra.mxu0 0.0
      %1232 = vmatprep.subr.mxu0 0.0
      %1233 = vmatpush1.xpose.msra.mxu0 0.0
      %1234 = vmatprep.subr.mxu0 0.0
      %1235 = vmatpush1.xpose.msra.mxu0 0.0
      %1236 = vmatprep.subr.mxu0 0.0
      %1237 = vmatpush1.xpose.msra.mxu0 0.0
      %1238 = vmatprep.subr.mxu0 0.0
      %1239 = vmatpush1.xpose.msra.mxu0 0.0
      %1240 = vmatprep.subr.mxu0 0.0
      %1241 = vmatpush1.xpose.msra.mxu0 0.0
      %1242 = vmatprep.subr.mxu0 0.0
      %1243 = vmatpush1.xpose.msra.mxu0 0.0
      %1244 = vmatprep.subr.mxu0 0.0
      %1245 = vmatpush1.xpose.msra.mxu0 0.0
      %1246 = vmatprep.subr.mxu0 0.0
      %1247 = vmatpush1.xpose.msra.mxu0 0.0
      %1248 = vmatprep.subr.mxu0 0.0
      %1249 = vmatpush1.xpose.msra.mxu0 0.0
      %1250 = vmatprep.subr.mxu0 0.0
      %1251 = vmatpush1.xpose.msra.mxu0 0.0
      %1252 = vmatprep.subr.mxu0 0.0
      %1253 = vmatpush1.xpose.msra.mxu0 0.0
      %1254 = vmatprep.subr.mxu0 0.0
      %1255 = vmatpush1.xpose.msra.mxu0 0.0
      %1256 = vmatprep.subr.mxu0 0.0
      %1257 = vmatpush1.xpose.msra.mxu0 0.0
      %1258 = vmatprep.mubr.f32.mxu0 0.0
      %1259 = vmatmul.mubr.f32.gmra.mrb[0].mxu0 %v248
      %v1260 = vpop.f32.mrb[0].mxu0
      %v1261 = vadd.f32 %v1190, %v1260
      %v1262 = vpop.f32.mrb[0].mxu0
      %1263 = vdwg.mxu0
      %v1264 = vld [vmem:[%s2 + $0xe6] sm:$0x1]
      %v1265 = vlaneseq
      %v1266 = vshrl.u32 %v1265, 7
      %v1267 = vsub.s32 0, %v1266
      %v1268 = vrot.slane %v1264, %v1267
      %v1270 = vsel %vm213, %v1183, 0
      %1272 = vmatprep.subr.mxu0 0.0
      %1273 = vmatpush1.xpose.msra.mxu0 %v1270
      %1274 = vmatprep.subr.mxu0 0.0
      %1275 = vmatpush1.xpose.msra.mxu0 0.0
      %1276 = vmatprep.subr.mxu0 0.0
      %1277 = vmatpush1.xpose.msra.mxu0 0.0
      %1278 = vmatprep.subr.mxu0 0.0
      %1279 = vmatpush1.xpose.msra.mxu0 0.0
      %1280 = vmatprep.subr.mxu0 0.0
      %1281 = vmatpush1.xpose.msra.mxu0 0.0
      %1282 = vmatprep.subr.mxu0 0.0
      %1283 = vmatpush1.xpose.msra.mxu0 0.0
      %1284 = vmatprep.subr.mxu0 0.0
      %1285 = vmatpush1.xpose.msra.mxu0 0.0
      %1286 = vmatprep.subr.mxu0 0.0
      %1287 = vmatpush1.xpose.msra.mxu0 0.0
      %1288 = vmatprep.subr.mxu0 0.0
      %1289 = vmatpush1.xpose.msra.mxu0 0.0
      %1290 = vmatprep.subr.mxu0 0.0
      %1291 = vmatpush1.xpose.msra.mxu0 0.0
      %1292 = vmatprep.subr.mxu0 0.0
      %1293 = vmatpush1.xpose.msra.mxu0 0.0
      %1294 = vmatprep.subr.mxu0 0.0
      %1295 = vmatpush1.xpose.msra.mxu0 0.0
      %1296 = vmatprep.subr.mxu0 0.0
      %1297 = vmatpush1.xpose.msra.mxu0 0.0
      %1298 = vmatprep.subr.mxu0 0.0
      %1299 = vmatpush1.xpose.msra.mxu0 0.0
      %1300 = vmatprep.subr.mxu0 0.0
      %1301 = vmatpush1.xpose.msra.mxu0 0.0
      %1302 = vmatprep.subr.mxu0 0.0
      %1303 = vmatpush1.xpose.msra.mxu0 0.0
      %1304 = vmatprep.subr.mxu0 0.0
      %1305 = vmatpush1.xpose.msra.mxu0 0.0
      %1306 = vmatprep.subr.mxu0 0.0
      %1307 = vmatpush1.xpose.msra.mxu0 0.0
      %1308 = vmatprep.subr.mxu0 0.0
      %1309 = vmatpush1.xpose.msra.mxu0 0.0
      %1310 = vmatprep.subr.mxu0 0.0
      %1311 = vmatpush1.xpose.msra.mxu0 0.0
      %1312 = vmatprep.subr.mxu0 0.0
      %1313 = vmatpush1.xpose.msra.mxu0 0.0
      %1314 = vmatprep.subr.mxu0 0.0
      %1315 = vmatpush1.xpose.msra.mxu0 0.0
      %1316 = vmatprep.subr.mxu0 0.0
      %1317 = vmatpush1.xpose.msra.mxu0 0.0
      %1318 = vmatprep.subr.mxu0 0.0
      %1319 = vmatpush1.xpose.msra.mxu0 0.0
      %1320 = vmatprep.subr.mxu0 0.0
      %1321 = vmatpush1.xpose.msra.mxu0 0.0
      %1322 = vmatprep.subr.mxu0 0.0
      %1323 = vmatpush1.xpose.msra.mxu0 0.0
      %1324 = vmatprep.subr.mxu0 0.0
      %1325 = vmatpush1.xpose.msra.mxu0 0.0
      %1326 = vmatprep.subr.mxu0 0.0
      %1327 = vmatpush1.xpose.msra.mxu0 0.0
      %1328 = vmatprep.subr.mxu0 0.0
      %1329 = vmatpush1.xpose.msra.mxu0 0.0
      %1330 = vmatprep.subr.mxu0 0.0
      %1331 = vmatpush1.xpose.msra.mxu0 0.0
      %1332 = vmatprep.subr.mxu0 0.0
      %1333 = vmatpush1.xpose.msra.mxu0 0.0
      %1334 = vmatprep.subr.mxu0 0.0
      %1335 = vmatpush1.xpose.msra.mxu0 0.0
      %1336 = vmatprep.mubr.f32.mxu0 0.0
      %1337 = vmatmul.mubr.f32.gmra.mrb[0].mxu0 %v248
      %v1338 = vpop.f32.mrb[0].mxu0
      %v1339 = vadd.f32 %v1268, %v1338
      %v1340 = vpop.f32.mrb[0].mxu0
      %1341 = vdwg.mxu0
      %v1342 = vld [vmem:[%s2 + $0xea] sm:$0x1]
      %v1343 = vlaneseq
      %v1344 = vshrl.u32 %v1343, 7
      %v1345 = vsub.s32 0, %v1344
      %v1346 = vrot.slane %v1342, %v1345
      %v1348 = vsel %vm213, %v1184, 0
      %1350 = vmatprep.subr.mxu0 0.0
      %1351 = vmatpush1.xpose.msra.mxu0 %v1348
      %1352 = vmatprep.subr.mxu0 0.0
      %1353 = vmatpush1.xpose.msra.mxu0 0.0
      %1354 = vmatprep.subr.mxu0 0.0
      %1355 = vmatpush1.xpose.msra.mxu0 0.0
      %1356 = vmatprep.subr.mxu0 0.0
      %1357 = vmatpush1.xpose.msra.mxu0 0.0
      %1358 = vmatprep.subr.mxu0 0.0
      %1359 = vmatpush1.xpose.msra.mxu0 0.0
      %1360 = vmatprep.subr.mxu0 0.0
      %1361 = vmatpush1.xpose.msra.mxu0 0.0
      %1362 = vmatprep.subr.mxu0 0.0
      %1363 = vmatpush1.xpose.msra.mxu0 0.0
      %1364 = vmatprep.subr.mxu0 0.0
      %1365 = vmatpush1.xpose.msra.mxu0 0.0
      %1366 = vmatprep.subr.mxu0 0.0
      %1367 = vmatpush1.xpose.msra.mxu0 0.0
      %1368 = vmatprep.subr.mxu0 0.0
      %1369 = vmatpush1.xpose.msra.mxu0 0.0
      %1370 = vmatprep.subr.mxu0 0.0
      %1371 = vmatpush1.xpose.msra.mxu0 0.0
      %1372 = vmatprep.subr.mxu0 0.0
      %1373 = vmatpush1.xpose.msra.mxu0 0.0
      %1374 = vmatprep.subr.mxu0 0.0
      %1375 = vmatpush1.xpose.msra.mxu0 0.0
      %1376 = vmatprep.subr.mxu0 0.0
      %1377 = vmatpush1.xpose.msra.mxu0 0.0
      %1378 = vmatprep.subr.mxu0 0.0
      %1379 = vmatpush1.xpose.msra.mxu0 0.0
      %1380 = vmatprep.subr.mxu0 0.0
      %1381 = vmatpush1.xpose.msra.mxu0 0.0
      %1382 = vmatprep.subr.mxu0 0.0
      %1383 = vmatpush1.xpose.msra.mxu0 0.0
      %1384 = vmatprep.subr.mxu0 0.0
      %1385 = vmatpush1.xpose.msra.mxu0 0.0
      %1386 = vmatprep.subr.mxu0 0.0
      %1387 = vmatpush1.xpose.msra.mxu0 0.0
      %1388 = vmatprep.subr.mxu0 0.0
      %1389 = vmatpush1.xpose.msra.mxu0 0.0
      %1390 = vmatprep.subr.mxu0 0.0
      %1391 = vmatpush1.xpose.msra.mxu0 0.0
      %1392 = vmatprep.subr.mxu0 0.0
      %1393 = vmatpush1.xpose.msra.mxu0 0.0
      %1394 = vmatprep.subr.mxu0 0.0
      %1395 = vmatpush1.xpose.msra.mxu0 0.0
      %1396 = vmatprep.subr.mxu0 0.0
      %1397 = vmatpush1.xpose.msra.mxu0 0.0
      %1398 = vmatprep.subr.mxu0 0.0
      %1399 = vmatpush1.xpose.msra.mxu0 0.0
      %1400 = vmatprep.subr.mxu0 0.0
      %1401 = vmatpush1.xpose.msra.mxu0 0.0
      %1402 = vmatprep.subr.mxu0 0.0
      %1403 = vmatpush1.xpose.msra.mxu0 0.0
      %1404 = vmatprep.subr.mxu0 0.0
      %1405 = vmatpush1.xpose.msra.mxu0 0.0
      %1406 = vmatprep.subr.mxu0 0.0
      %1407 = vmatpush1.xpose.msra.mxu0 0.0
      %1408 = vmatprep.subr.mxu0 0.0
      %1409 = vmatpush1.xpose.msra.mxu0 0.0
      %1410 = vmatprep.subr.mxu0 0.0
      %1411 = vmatpush1.xpose.msra.mxu0 0.0
      %1412 = vmatprep.subr.mxu0 0.0
      %1413 = vmatpush1.xpose.msra.mxu0 0.0
      %1414 = vmatprep.mubr.f32.mxu0 0.0
      %1415 = vmatmul.mubr.f32.gmra.mrb[0].mxu0 %v248
      %v1416 = vpop.f32.mrb[0].mxu0
      %v1417 = vadd.f32 %v1346, %v1416
      %v1418 = vpop.f32.mrb[0].mxu0
      %1419 = vdwg.mxu0
      %v1421 = vsel %vm485, %v1261, 0
      %v1424 = vsel %vm485, %v1339, 0
      %1426 = vmatprep.subr.mxu0 0.0
      %1427 = vmatpush1.xpose.msra.mxu0 %v1424
      %1428 = vmatprep.subr.mxu0 0.0
      %1429 = vmatpush1.xpose.msra.mxu0 0.0
      %1430 = vmatprep.subr.mxu0 0.0
      %1431 = vmatpush1.xpose.msra.mxu0 0.0
      %1432 = vmatprep.subr.mxu0 0.0
      %1433 = vmatpush1.xpose.msra.mxu0 0.0
      %1434 = vmatprep.subr.mxu0 0.0
      %1435 = vmatpush1.xpose.msra.mxu0 0.0
      %1436 = vmatprep.subr.mxu0 0.0
      %1437 = vmatpush1.xpose.msra.mxu0 0.0
      %1438 = vmatprep.subr.mxu0 0.0
      %1439 = vmatpush1.xpose.msra.mxu0 0.0
      %1440 = vmatprep.subr.mxu0 0.0
      %1441 = vmatpush1.xpose.msra.mxu0 0.0
      %1442 = vmatprep.subr.mxu0 0.0
      %1443 = vmatpush1.xpose.msra.mxu0 0.0
      %1444 = vmatprep.subr.mxu0 0.0
      %1445 = vmatpush1.xpose.msra.mxu0 0.0
      %1446 = vmatprep.subr.mxu0 0.0
      %1447 = vmatpush1.xpose.msra.mxu0 0.0
      %1448 = vmatprep.subr.mxu0 0.0
      %1449 = vmatpush1.xpose.msra.mxu0 0.0
      %1450 = vmatprep.subr.mxu0 0.0
      %1451 = vmatpush1.xpose.msra.mxu0 0.0
      %1452 = vmatprep.subr.mxu0 0.0
      %1453 = vmatpush1.xpose.msra.mxu0 0.0
      %1454 = vmatprep.subr.mxu0 0.0
      %1455 = vmatpush1.xpose.msra.mxu0 0.0
      %1456 = vmatprep.subr.mxu0 0.0
      %1457 = vmatpush1.xpose.msra.mxu0 0.0
      %1458 = vmatprep.subr.mxu0 0.0
      %1459 = vmatpush1.xpose.msra.mxu0 0.0
      %1460 = vmatprep.subr.mxu0 0.0
      %1461 = vmatpush1.xpose.msra.mxu0 0.0
      %1462 = vmatprep.subr.mxu0 0.0
      %1463 = vmatpush1.xpose.msra.mxu0 0.0
      %1464 = vmatprep.subr.mxu0 0.0
      %1465 = vmatpush1.xpose.msra.mxu0 0.0
      %1466 = vmatprep.subr.mxu0 0.0
      %1467 = vmatpush1.xpose.msra.mxu0 0.0
      %1468 = vmatprep.subr.mxu0 0.0
      %1469 = vmatpush1.xpose.msra.mxu0 0.0
      %1470 = vmatprep.subr.mxu0 0.0
      %1471 = vmatpush1.xpose.msra.mxu0 0.0
      %1472 = vmatprep.subr.mxu0 0.0
      %1473 = vmatpush1.xpose.msra.mxu0 0.0
      %1474 = vmatprep.subr.mxu0 0.0
      %1475 = vmatpush1.xpose.msra.mxu0 0.0
      %1476 = vmatprep.subr.mxu0 0.0
      %1477 = vmatpush1.xpose.msra.mxu0 0.0
      %1478 = vmatprep.subr.mxu0 0.0
      %1479 = vmatpush1.xpose.msra.mxu0 0.0
      %1480 = vmatprep.subr.mxu0 0.0
      %1481 = vmatpush1.xpose.msra.mxu0 0.0
      %1482 = vmatprep.subr.mxu0 0.0
      %1483 = vmatpush1.xpose.msra.mxu0 0.0
      %1484 = vmatprep.subr.mxu0 0.0
      %1485 = vmatpush1.xpose.msra.mxu0 0.0
      %1486 = vmatprep.subr.mxu0 0.0
      %1487 = vmatpush1.xpose.msra.mxu0 0.0
      %1488 = vmatprep.subr.mxu0 0.0
      %1489 = vmatpush1.xpose.msra.mxu0 0.0
      %1490 = vmatprep.mubr.f32.mxu0 0.0
      %1491 = vmatmul.mubr.f32.gmra.mrb[0].mxu0 %v1421
      %v1492 = vpop.f32.mrb[0].mxu0
      %v1493 = vadd.f32 %v483, %v1492
      %v1494 = vpop.f32.mrb[0].mxu0
      %1495 = vdwg.mxu0
      %v1496 = vmul.f32 %v1493, 1.442695
      %v1497 = vpow.pop %v1496
      %v1498 = vsel %vm485, %v1497, 0.0
      %1499 = vadd.xlane.f32.xlu0 %v1498
      %v1500 = vpop.xlane.xlu0 %1499
      %v1501 = vrcp.pop %v1500
      %v1502 = vmul.f32 %v1497, %v1501
      %v1504 = vsel %vm485, %v1502, 0
      %1506 = vmatprep.subr.mxu0 0.0
      %1507 = vmatpush1.msra.mxu0 %v1417
      %1508 = vmatprep.subr.mxu0 0.0
      %1509 = vmatpush1.msra.mxu0 0.0
      %1510 = vmatprep.subr.mxu0 0.0
      %1511 = vmatpush1.msra.mxu0 0.0
      %1512 = vmatprep.subr.mxu0 0.0
      %1513 = vmatpush1.msra.mxu0 0.0
      %1514 = vmatprep.subr.mxu0 0.0
      %1515 = vmatpush1.msra.mxu0 0.0
      %1516 = vmatprep.subr.mxu0 0.0
      %1517 = vmatpush1.msra.mxu0 0.0
      %1518 = vmatprep.subr.mxu0 0.0
      %1519 = vmatpush1.msra.mxu0 0.0
      %1520 = vmatprep.subr.mxu0 0.0
      %1521 = vmatpush1.msra.mxu0 0.0
      %1522 = vmatprep.subr.mxu0 0.0
      %1523 = vmatpush1.msra.mxu0 0.0
      %1524 = vmatprep.subr.mxu0 0.0
      %1525 = vmatpush1.msra.mxu0 0.0
      %1526 = vmatprep.subr.mxu0 0.0
      %1527 = vmatpush1.msra.mxu0 0.0
      %1528 = vmatprep.subr.mxu0 0.0
      %1529 = vmatpush1.msra.mxu0 0.0
      %1530 = vmatprep.subr.mxu0 0.0
      %1531 = vmatpush1.msra.mxu0 0.0
      %1532 = vmatprep.subr.mxu0 0.0
      %1533 = vmatpush1.msra.mxu0 0.0
      %1534 = vmatprep.subr.mxu0 0.0
      %1535 = vmatpush1.msra.mxu0 0.0
      %1536 = vmatprep.subr.mxu0 0.0
      %1537 = vmatpush1.msra.mxu0 0.0
      %1538 = vmatprep.subr.mxu0 0.0
      %1539 = vmatpush1.msra.mxu0 0.0
      %1540 = vmatprep.subr.mxu0 0.0
      %1541 = vmatpush1.msra.mxu0 0.0
      %1542 = vmatprep.subr.mxu0 0.0
      %1543 = vmatpush1.msra.mxu0 0.0
      %1544 = vmatprep.subr.mxu0 0.0
      %1545 = vmatpush1.msra.mxu0 0.0
      %1546 = vmatprep.subr.mxu0 0.0
      %1547 = vmatpush1.msra.mxu0 0.0
      %1548 = vmatprep.subr.mxu0 0.0
      %1549 = vmatpush1.msra.mxu0 0.0
      %1550 = vmatprep.subr.mxu0 0.0
      %1551 = vmatpush1.msra.mxu0 0.0
      %1552 = vmatprep.subr.mxu0 0.0
      %1553 = vmatpush1.msra.mxu0 0.0
      %1554 = vmatprep.subr.mxu0 0.0
      %1555 = vmatpush1.msra.mxu0 0.0
      %1556 = vmatprep.subr.mxu0 0.0
      %1557 = vmatpush1.msra.mxu0 0.0
      %1558 = vmatprep.subr.mxu0 0.0
      %1559 = vmatpush1.msra.mxu0 0.0
      %1560 = vmatprep.subr.mxu0 0.0
      %1561 = vmatpush1.msra.mxu0 0.0
      %1562 = vmatprep.subr.mxu0 0.0
      %1563 = vmatpush1.msra.mxu0 0.0
      %1564 = vmatprep.subr.mxu0 0.0
      %1565 = vmatpush1.msra.mxu0 0.0
      %1566 = vmatprep.subr.mxu0 0.0
      %1567 = vmatpush1.msra.mxu0 0.0
      %1568 = vmatprep.subr.mxu0 0.0
      %1569 = vmatpush1.msra.mxu0 0.0
      %1570 = vmatprep.mubr.f32.mxu0 0.0
      %1571 = vmatmul.mubr.f32.gmra.mrb[0].mxu0 %v1504
      %v1572 = vpop.f32.mrb[0].mxu0
      %v1573 = vadd.f32 0.0, %v1572
      %v1574 = vpop.f32.mrb[0].mxu0
      %1575 = vdwg.mxu0
      %v1577 = vsel %vm485, %v1573, 0
      %1579 = vmatprep.subr.mxu0 0.0
      %1580 = vmatpush1.msra.mxu0 %v1185
      %1581 = vmatprep.subr.mxu0 0.0
      %1582 = vmatpush1.msra.mxu0 0.0
      %1583 = vmatprep.subr.mxu0 0.0
      %1584 = vmatpush1.msra.mxu0 0.0
      %1585 = vmatprep.subr.mxu0 0.0
      %1586 = vmatpush1.msra.mxu0 0.0
      %1587 = vmatprep.subr.mxu0 0.0
      %1588 = vmatpush1.msra.mxu0 0.0
      %1589 = vmatprep.subr.mxu0 0.0
      %1590 = vmatpush1.msra.mxu0 0.0
      %1591 = vmatprep.subr.mxu0 0.0
      %1592 = vmatpush1.msra.mxu0 0.0
      %1593 = vmatprep.subr.mxu0 0.0
      %1594 = vmatpush1.msra.mxu0 0.0
      %1595 = vmatprep.subr.mxu0 0.0
      %1596 = vmatpush1.msra.mxu0 0.0
      %1597 = vmatprep.subr.mxu0 0.0
      %1598 = vmatpush1.msra.mxu0 0.0
      %1599 = vmatprep.subr.mxu0 0.0
      %1600 = vmatpush1.msra.mxu0 0.0
      %1601 = vmatprep.subr.mxu0 0.0
      %1602 = vmatpush1.msra.mxu0 0.0
      %1603 = vmatprep.subr.mxu0 0.0
      %1604 = vmatpush1.msra.mxu0 0.0
      %1605 = vmatprep.subr.mxu0 0.0
      %1606 = vmatpush1.msra.mxu0 0.0
      %1607 = vmatprep.subr.mxu0 0.0
      %1608 = vmatpush1.msra.mxu0 0.0
      %1609 = vmatprep.subr.mxu0 0.0
      %1610 = vmatpush1.msra.mxu0 0.0
      %1611 = vmatprep.subr.mxu0 0.0
      %1612 = vmatpush1.msra.mxu0 0.0
      %1613 = vmatprep.subr.mxu0 0.0
      %1614 = vmatpush1.msra.mxu0 0.0
      %1615 = vmatprep.subr.mxu0 0.0
      %1616 = vmatpush1.msra.mxu0 0.0
      %1617 = vmatprep.subr.mxu0 0.0
      %1618 = vmatpush1.msra.mxu0 0.0
      %1619 = vmatprep.subr.mxu0 0.0
      %1620 = vmatpush1.msra.mxu0 0.0
      %1621 = vmatprep.subr.mxu0 0.0
      %1622 = vmatpush1.msra.mxu0 0.0
      %1623 = vmatprep.subr.mxu0 0.0
      %1624 = vmatpush1.msra.mxu0 0.0
      %1625 = vmatprep.subr.mxu0 0.0
      %1626 = vmatpush1.msra.mxu0 0.0
      %1627 = vmatprep.subr.mxu0 0.0
      %1628 = vmatpush1.msra.mxu0 0.0
      %1629 = vmatprep.subr.mxu0 0.0
      %1630 = vmatpush1.msra.mxu0 0.0
      %1631 = vmatprep.subr.mxu0 0.0
      %1632 = vmatpush1.msra.mxu0 0.0
      %1633 = vmatprep.subr.mxu0 0.0
      %1634 = vmatpush1.msra.mxu0 0.0
      %1635 = vmatprep.subr.mxu0 0.0
      %1636 = vmatpush1.msra.mxu0 0.0
      %1637 = vmatprep.subr.mxu0 0.0
      %1638 = vmatpush1.msra.mxu0 0.0
      %1639 = vmatprep.subr.mxu0 0.0
      %1640 = vmatpush1.msra.mxu0 0.0
      %1641 = vmatprep.subr.mxu0 0.0
      %1642 = vmatpush1.msra.mxu0 0.0
      %1643 = vmatprep.mubr.f32.mxu0 0.0
      %1644 = vmatmul.mubr.f32.gmra.mrb[0].mxu0 %v1577
      %v1645 = vpop.f32.mrb[0].mxu0
      %v1646 = vadd.f32 0.0, %v1645
      %v1647 = vpop.f32.mrb[0].mxu0
      %1648 = vdwg.mxu0
      %v1649 = vadd.f32 %v1179, %v1646
      %v1650 = vld [vmem:[%s2 + $0x18] sm:$0xff]
      %v1651 = vld [vmem:[%s2 + $0x38] sm:$0xff]
      %v1652 = vld [vmem:[%s2 + $0x58] sm:$0xff]
      %v1653 = vld [vmem:[%s2 + $0x78] sm:$0xff]
      %v1654 = vld [vmem:[%s2 + $0xe3] sm:$0x1]
      %v1655 = vlaneseq
      %v1656 = vshrl.u32 %v1655, 7
      %v1657 = vsub.s32 0, %v1656
      %v1658 = vrot.slane %v1654, %v1657
      %v1660 = vsel %vm213, %v1650, 0
      %1662 = vmatprep.subr.mxu0 0.0
      %1663 = vmatpush1.xpose.msra.mxu0 %v1660
      %1664 = vmatprep.subr.mxu0 0.0
      %1665 = vmatpush1.xpose.msra.mxu0 0.0
      %1666 = vmatprep.subr.mxu0 0.0
      %1667 = vmatpush1.xpose.msra.mxu0 0.0
      %1668 = vmatprep.subr.mxu0 0.0
      %1669 = vmatpush1.xpose.msra.mxu0 0.0
      %1670 = vmatprep.subr.mxu0 0.0
      %1671 = vmatpush1.xpose.msra.mxu0 0.0
      %1672 = vmatprep.subr.mxu0 0.0
      %1673 = vmatpush1.xpose.msra.mxu0 0.0
      %1674 = vmatprep.subr.mxu0 0.0
      %1675 = vmatpush1.xpose.msra.mxu0 0.0
      %1676 = vmatprep.subr.mxu0 0.0
      %1677 = vmatpush1.xpose.msra.mxu0 0.0
      %1678 = vmatprep.subr.mxu0 0.0
      %1679 = vmatpush1.xpose.msra.mxu0 0.0
      %1680 = vmatprep.subr.mxu0 0.0
      %1681 = vmatpush1.xpose.msra.mxu0 0.0
      %1682 = vmatprep.subr.mxu0 0.0
      %1683 = vmatpush1.xpose.msra.mxu0 0.0
      %1684 = vmatprep.subr.mxu0 0.0
      %1685 = vmatpush1.xpose.msra.mxu0 0.0
      %1686 = vmatprep.subr.mxu0 0.0
      %1687 = vmatpush1.xpose.msra.mxu0 0.0
      %1688 = vmatprep.subr.mxu0 0.0
      %1689 = vmatpush1.xpose.msra.mxu0 0.0
      %1690 = vmatprep.subr.mxu0 0.0
      %1691 = vmatpush1.xpose.msra.mxu0 0.0
      %1692 = vmatprep.subr.mxu0 0.0
      %1693 = vmatpush1.xpose.msra.mxu0 0.0
      %1694 = vmatprep.subr.mxu0 0.0
      %1695 = vmatpush1.xpose.msra.mxu0 0.0
      %1696 = vmatprep.subr.mxu0 0.0
      %1697 = vmatpush1.xpose.msra.mxu0 0.0
      %1698 = vmatprep.subr.mxu0 0.0
      %1699 = vmatpush1.xpose.msra.mxu0 0.0
      %1700 = vmatprep.subr.mxu0 0.0
      %1701 = vmatpush1.xpose.msra.mxu0 0.0
      %1702 = vmatprep.subr.mxu0 0.0
      %1703 = vmatpush1.xpose.msra.mxu0 0.0
      %1704 = vmatprep.subr.mxu0 0.0
      %1705 = vmatpush1.xpose.msra.mxu0 0.0
      %1706 = vmatprep.subr.mxu0 0.0
      %1707 = vmatpush1.xpose.msra.mxu0 0.0
      %1708 = vmatprep.subr.mxu0 0.0
      %1709 = vmatpush1.xpose.msra.mxu0 0.0
      %1710 = vmatprep.subr.mxu0 0.0
      %1711 = vmatpush1.xpose.msra.mxu0 0.0
      %1712 = vmatprep.subr.mxu0 0.0
      %1713 = vmatpush1.xpose.msra.mxu0 0.0
      %1714 = vmatprep.subr.mxu0 0.0
      %1715 = vmatpush1.xpose.msra.mxu0 0.0
      %1716 = vmatprep.subr.mxu0 0.0
      %1717 = vmatpush1.xpose.msra.mxu0 0.0
      %1718 = vmatprep.subr.mxu0 0.0
      %1719 = vmatpush1.xpose.msra.mxu0 0.0
      %1720 = vmatprep.subr.mxu0 0.0
      %1721 = vmatpush1.xpose.msra.mxu0 0.0
      %1722 = vmatprep.subr.mxu0 0.0
      %1723 = vmatpush1.xpose.msra.mxu0 0.0
      %1724 = vmatprep.subr.mxu0 0.0
      %1725 = vmatpush1.xpose.msra.mxu0 0.0
      %1726 = vmatprep.mubr.f32.mxu0 0.0
      %1727 = vmatmul.mubr.f32.gmra.mrb[0].mxu0 %v248
      %v1728 = vpop.f32.mrb[0].mxu0
      %v1729 = vadd.f32 %v1658, %v1728
      %v1730 = vpop.f32.mrb[0].mxu0
      %1731 = vdwg.mxu0
      %v1732 = vld [vmem:[%s2 + $0xe7] sm:$0x1]
      %v1733 = vlaneseq
      %v1734 = vshrl.u32 %v1733, 7
      %v1735 = vsub.s32 0, %v1734
      %v1736 = vrot.slane %v1732, %v1735
      %v1738 = vsel %vm213, %v1651, 0
      %1740 = vmatprep.subr.mxu0 0.0
      %1741 = vmatpush1.xpose.msra.mxu0 %v1738
      %1742 = vmatprep.subr.mxu0 0.0
      %1743 = vmatpush1.xpose.msra.mxu0 0.0
      %1744 = vmatprep.subr.mxu0 0.0
      %1745 = vmatpush1.xpose.msra.mxu0 0.0
      %1746 = vmatprep.subr.mxu0 0.0
      %1747 = vmatpush1.xpose.msra.mxu0 0.0
      %1748 = vmatprep.subr.mxu0 0.0
      %1749 = vmatpush1.xpose.msra.mxu0 0.0
      %1750 = vmatprep.subr.mxu0 0.0
      %1751 = vmatpush1.xpose.msra.mxu0 0.0
      %1752 = vmatprep.subr.mxu0 0.0
      %1753 = vmatpush1.xpose.msra.mxu0 0.0
      %1754 = vmatprep.subr.mxu0 0.0
      %1755 = vmatpush1.xpose.msra.mxu0 0.0
      %1756 = vmatprep.subr.mxu0 0.0
      %1757 = vmatpush1.xpose.msra.mxu0 0.0
      %1758 = vmatprep.subr.mxu0 0.0
      %1759 = vmatpush1.xpose.msra.mxu0 0.0
      %1760 = vmatprep.subr.mxu0 0.0
      %1761 = vmatpush1.xpose.msra.mxu0 0.0
      %1762 = vmatprep.subr.mxu0 0.0
      %1763 = vmatpush1.xpose.msra.mxu0 0.0
      %1764 = vmatprep.subr.mxu0 0.0
      %1765 = vmatpush1.xpose.msra.mxu0 0.0
      %1766 = vmatprep.subr.mxu0 0.0
      %1767 = vmatpush1.xpose.msra.mxu0 0.0
      %1768 = vmatprep.subr.mxu0 0.0
      %1769 = vmatpush1.xpose.msra.mxu0 0.0
      %1770 = vmatprep.subr.mxu0 0.0
      %1771 = vmatpush1.xpose.msra.mxu0 0.0
      %1772 = vmatprep.subr.mxu0 0.0
      %1773 = vmatpush1.xpose.msra.mxu0 0.0
      %1774 = vmatprep.subr.mxu0 0.0
      %1775 = vmatpush1.xpose.msra.mxu0 0.0
      %1776 = vmatprep.subr.mxu0 0.0
      %1777 = vmatpush1.xpose.msra.mxu0 0.0
      %1778 = vmatprep.subr.mxu0 0.0
      %1779 = vmatpush1.xpose.msra.mxu0 0.0
      %1780 = vmatprep.subr.mxu0 0.0
      %1781 = vmatpush1.xpose.msra.mxu0 0.0
      %1782 = vmatprep.subr.mxu0 0.0
      %1783 = vmatpush1.xpose.msra.mxu0 0.0
      %1784 = vmatprep.subr.mxu0 0.0
      %1785 = vmatpush1.xpose.msra.mxu0 0.0
      %1786 = vmatprep.subr.mxu0 0.0
      %1787 = vmatpush1.xpose.msra.mxu0 0.0
      %1788 = vmatprep.subr.mxu0 0.0
      %1789 = vmatpush1.xpose.msra.mxu0 0.0
      %1790 = vmatprep.subr.mxu0 0.0
      %1791 = vmatpush1.xpose.msra.mxu0 0.0
      %1792 = vmatprep.subr.mxu0 0.0
      %1793 = vmatpush1.xpose.msra.mxu0 0.0
      %1794 = vmatprep.subr.mxu0 0.0
      %1795 = vmatpush1.xpose.msra.mxu0 0.0
      %1796 = vmatprep.subr.mxu0 0.0
      %1797 = vmatpush1.xpose.msra.mxu0 0.0
      %1798 = vmatprep.subr.mxu0 0.0
      %1799 = vmatpush1.xpose.msra.mxu0 0.0
      %1800 = vmatprep.subr.mxu0 0.0
      %1801 = vmatpush1.xpose.msra.mxu0 0.0
      %1802 = vmatprep.subr.mxu0 0.0
      %1803 = vmatpush1.xpose.msra.mxu0 0.0
      %1804 = vmatprep.mubr.f32.mxu0 0.0
      %1805 = vmatmul.mubr.f32.gmra.mrb[0].mxu0 %v248
      %v1806 = vpop.f32.mrb[0].mxu0
      %v1807 = vadd.f32 %v1736, %v1806
      %v1808 = vpop.f32.mrb[0].mxu0
      %1809 = vdwg.mxu0
      %v1810 = vld [vmem:[%s2 + $0xeb] sm:$0x1]
      %v1811 = vlaneseq
      %v1812 = vshrl.u32 %v1811, 7
      %v1813 = vsub.s32 0, %v1812
      %v1814 = vrot.slane %v1810, %v1813
      %v1816 = vsel %vm213, %v1652, 0
      %1818 = vmatprep.subr.mxu0 0.0
      %1819 = vmatpush1.xpose.msra.mxu0 %v1816
      %1820 = vmatprep.subr.mxu0 0.0
      %1821 = vmatpush1.xpose.msra.mxu0 0.0
      %1822 = vmatprep.subr.mxu0 0.0
      %1823 = vmatpush1.xpose.msra.mxu0 0.0
      %1824 = vmatprep.subr.mxu0 0.0
      %1825 = vmatpush1.xpose.msra.mxu0 0.0
      %1826 = vmatprep.subr.mxu0 0.0
      %1827 = vmatpush1.xpose.msra.mxu0 0.0
      %1828 = vmatprep.subr.mxu0 0.0
      %1829 = vmatpush1.xpose.msra.mxu0 0.0
      %1830 = vmatprep.subr.mxu0 0.0
      %1831 = vmatpush1.xpose.msra.mxu0 0.0
      %1832 = vmatprep.subr.mxu0 0.0
      %1833 = vmatpush1.xpose.msra.mxu0 0.0
      %1834 = vmatprep.subr.mxu0 0.0
      %1835 = vmatpush1.xpose.msra.mxu0 0.0
      %1836 = vmatprep.subr.mxu0 0.0
      %1837 = vmatpush1.xpose.msra.mxu0 0.0
      %1838 = vmatprep.subr.mxu0 0.0
      %1839 = vmatpush1.xpose.msra.mxu0 0.0
      %1840 = vmatprep.subr.mxu0 0.0
      %1841 = vmatpush1.xpose.msra.mxu0 0.0
      %1842 = vmatprep.subr.mxu0 0.0
      %1843 = vmatpush1.xpose.msra.mxu0 0.0
      %1844 = vmatprep.subr.mxu0 0.0
      %1845 = vmatpush1.xpose.msra.mxu0 0.0
      %1846 = vmatprep.subr.mxu0 0.0
      %1847 = vmatpush1.xpose.msra.mxu0 0.0
      %1848 = vmatprep.subr.mxu0 0.0
      %1849 = vmatpush1.xpose.msra.mxu0 0.0
      %1850 = vmatprep.subr.mxu0 0.0
      %1851 = vmatpush1.xpose.msra.mxu0 0.0
      %1852 = vmatprep.subr.mxu0 0.0
      %1853 = vmatpush1.xpose.msra.mxu0 0.0
      %1854 = vmatprep.subr.mxu0 0.0
      %1855 = vmatpush1.xpose.msra.mxu0 0.0
      %1856 = vmatprep.subr.mxu0 0.0
      %1857 = vmatpush1.xpose.msra.mxu0 0.0
      %1858 = vmatprep.subr.mxu0 0.0
      %1859 = vmatpush1.xpose.msra.mxu0 0.0
      %1860 = vmatprep.subr.mxu0 0.0
      %1861 = vmatpush1.xpose.msra.mxu0 0.0
      %1862 = vmatprep.subr.mxu0 0.0
      %1863 = vmatpush1.xpose.msra.mxu0 0.0
      %1864 = vmatprep.subr.mxu0 0.0
      %1865 = vmatpush1.xpose.msra.mxu0 0.0
      %1866 = vmatprep.subr.mxu0 0.0
      %1867 = vmatpush1.xpose.msra.mxu0 0.0
      %1868 = vmatprep.subr.mxu0 0.0
      %1869 = vmatpush1.xpose.msra.mxu0 0.0
      %1870 = vmatprep.subr.mxu0 0.0
      %1871 = vmatpush1.xpose.msra.mxu0 0.0
      %1872 = vmatprep.subr.mxu0 0.0
      %1873 = vmatpush1.xpose.msra.mxu0 0.0
      %1874 = vmatprep.subr.mxu0 0.0
      %1875 = vmatpush1.xpose.msra.mxu0 0.0
      %1876 = vmatprep.subr.mxu0 0.0
      %1877 = vmatpush1.xpose.msra.mxu0 0.0
      %1878 = vmatprep.subr.mxu0 0.0
      %1879 = vmatpush1.xpose.msra.mxu0 0.0
      %1880 = vmatprep.subr.mxu0 0.0
      %1881 = vmatpush1.xpose.msra.mxu0 0.0
      %1882 = vmatprep.mubr.f32.mxu0 0.0
      %1883 = vmatmul.mubr.f32.gmra.mrb[0].mxu0 %v248
      %v1884 = vpop.f32.mrb[0].mxu0
      %v1885 = vadd.f32 %v1814, %v1884
      %v1886 = vpop.f32.mrb[0].mxu0
      %1887 = vdwg.mxu0
      %v1889 = vsel %vm485, %v1729, 0
      %v1892 = vsel %vm485, %v1807, 0
      %1894 = vmatprep.subr.mxu0 0.0
      %1895 = vmatpush1.xpose.msra.mxu0 %v1892
      %1896 = vmatprep.subr.mxu0 0.0
      %1897 = vmatpush1.xpose.msra.mxu0 0.0
      %1898 = vmatprep.subr.mxu0 0.0
      %1899 = vmatpush1.xpose.msra.mxu0 0.0
      %1900 = vmatprep.subr.mxu0 0.0
      %1901 = vmatpush1.xpose.msra.mxu0 0.0
      %1902 = vmatprep.subr.mxu0 0.0
      %1903 = vmatpush1.xpose.msra.mxu0 0.0
      %1904 = vmatprep.subr.mxu0 0.0
      %1905 = vmatpush1.xpose.msra.mxu0 0.0
      %1906 = vmatprep.subr.mxu0 0.0
      %1907 = vmatpush1.xpose.msra.mxu0 0.0
      %1908 = vmatprep.subr.mxu0 0.0
      %1909 = vmatpush1.xpose.msra.mxu0 0.0
      %1910 = vmatprep.subr.mxu0 0.0
      %1911 = vmatpush1.xpose.msra.mxu0 0.0
      %1912 = vmatprep.subr.mxu0 0.0
      %1913 = vmatpush1.xpose.msra.mxu0 0.0
      %1914 = vmatprep.subr.mxu0 0.0
      %1915 = vmatpush1.xpose.msra.mxu0 0.0
      %1916 = vmatprep.subr.mxu0 0.0
      %1917 = vmatpush1.xpose.msra.mxu0 0.0
      %1918 = vmatprep.subr.mxu0 0.0
      %1919 = vmatpush1.xpose.msra.mxu0 0.0
      %1920 = vmatprep.subr.mxu0 0.0
      %1921 = vmatpush1.xpose.msra.mxu0 0.0
      %1922 = vmatprep.subr.mxu0 0.0
      %1923 = vmatpush1.xpose.msra.mxu0 0.0
      %1924 = vmatprep.subr.mxu0 0.0
      %1925 = vmatpush1.xpose.msra.mxu0 0.0
      %1926 = vmatprep.subr.mxu0 0.0
      %1927 = vmatpush1.xpose.msra.mxu0 0.0
      %1928 = vmatprep.subr.mxu0 0.0
      %1929 = vmatpush1.xpose.msra.mxu0 0.0
      %1930 = vmatprep.subr.mxu0 0.0
      %1931 = vmatpush1.xpose.msra.mxu0 0.0
      %1932 = vmatprep.subr.mxu0 0.0
      %1933 = vmatpush1.xpose.msra.mxu0 0.0
      %1934 = vmatprep.subr.mxu0 0.0
      %1935 = vmatpush1.xpose.msra.mxu0 0.0
      %1936 = vmatprep.subr.mxu0 0.0
      %1937 = vmatpush1.xpose.msra.mxu0 0.0
      %1938 = vmatprep.subr.mxu0 0.0
      %1939 = vmatpush1.xpose.msra.mxu0 0.0
      %1940 = vmatprep.subr.mxu0 0.0
      %1941 = vmatpush1.xpose.msra.mxu0 0.0
      %1942 = vmatprep.subr.mxu0 0.0
      %1943 = vmatpush1.xpose.msra.mxu0 0.0
      %1944 = vmatprep.subr.mxu0 0.0
      %1945 = vmatpush1.xpose.msra.mxu0 0.0
      %1946 = vmatprep.subr.mxu0 0.0
      %1947 = vmatpush1.xpose.msra.mxu0 0.0
      %1948 = vmatprep.subr.mxu0 0.0
      %1949 = vmatpush1.xpose.msra.mxu0 0.0
      %1950 = vmatprep.subr.mxu0 0.0
      %1951 = vmatpush1.xpose.msra.mxu0 0.0
      %1952 = vmatprep.subr.mxu0 0.0
      %1953 = vmatpush1.xpose.msra.mxu0 0.0
      %1954 = vmatprep.subr.mxu0 0.0
      %1955 = vmatpush1.xpose.msra.mxu0 0.0
      %1956 = vmatprep.subr.mxu0 0.0
      %1957 = vmatpush1.xpose.msra.mxu0 0.0
      %1958 = vmatprep.mubr.f32.mxu0 0.0
      %1959 = vmatmul.mubr.f32.gmra.mrb[0].mxu0 %v1889
      %v1960 = vpop.f32.mrb[0].mxu0
      %v1961 = vadd.f32 %v483, %v1960
      %v1962 = vpop.f32.mrb[0].mxu0
      %1963 = vdwg.mxu0
      %v1964 = vmul.f32 %v1961, 1.442695
      %v1965 = vpow.pop %v1964
      %v1966 = vsel %vm485, %v1965, 0.0
      %1967 = vadd.xlane.f32.xlu0 %v1966
      %v1968 = vpop.xlane.xlu0 %1967
      %v1969 = vrcp.pop %v1968
      %v1970 = vmul.f32 %v1965, %v1969
      %v1972 = vsel %vm485, %v1970, 0
      %1974 = vmatprep.subr.mxu0 0.0
      %1975 = vmatpush1.msra.mxu0 %v1885
      %1976 = vmatprep.subr.mxu0 0.0
      %1977 = vmatpush1.msra.mxu0 0.0
      %1978 = vmatprep.subr.mxu0 0.0
      %1979 = vmatpush1.msra.mxu0 0.0
      %1980 = vmatprep.subr.mxu0 0.0
      %1981 = vmatpush1.msra.mxu0 0.0
      %1982 = vmatprep.subr.mxu0 0.0
      %1983 = vmatpush1.msra.mxu0 0.0
      %1984 = vmatprep.subr.mxu0 0.0
      %1985 = vmatpush1.msra.mxu0 0.0
      %1986 = vmatprep.subr.mxu0 0.0
      %1987 = vmatpush1.msra.mxu0 0.0
      %1988 = vmatprep.subr.mxu0 0.0
      %1989 = vmatpush1.msra.mxu0 0.0
      %1990 = vmatprep.subr.mxu0 0.0
      %1991 = vmatpush1.msra.mxu0 0.0
      %1992 = vmatprep.subr.mxu0 0.0
      %1993 = vmatpush1.msra.mxu0 0.0
      %1994 = vmatprep.subr.mxu0 0.0
      %1995 = vmatpush1.msra.mxu0 0.0
      %1996 = vmatprep.subr.mxu0 0.0
      %1997 = vmatpush1.msra.mxu0 0.0
      %1998 = vmatprep.subr.mxu0 0.0
      %1999 = vmatpush1.msra.mxu0 0.0
      %2000 = vmatprep.subr.mxu0 0.0
      %2001 = vmatpush1.msra.mxu0 0.0
      %2002 = vmatprep.subr.mxu0 0.0
      %2003 = vmatpush1.msra.mxu0 0.0
      %2004 = vmatprep.subr.mxu0 0.0
      %2005 = vmatpush1.msra.mxu0 0.0
      %2006 = vmatprep.subr.mxu0 0.0
      %2007 = vmatpush1.msra.mxu0 0.0
      %2008 = vmatprep.subr.mxu0 0.0
      %2009 = vmatpush1.msra.mxu0 0.0
      %2010 = vmatprep.subr.mxu0 0.0
      %2011 = vmatpush1.msra.mxu0 0.0
      %2012 = vmatprep.subr.mxu0 0.0
      %2013 = vmatpush1.msra.mxu0 0.0
      %2014 = vmatprep.subr.mxu0 0.0
      %2015 = vmatpush1.msra.mxu0 0.0
      %2016 = vmatprep.subr.mxu0 0.0
      %2017 = vmatpush1.msra.mxu0 0.0
      %2018 = vmatprep.subr.mxu0 0.0
      %2019 = vmatpush1.msra.mxu0 0.0
      %2020 = vmatprep.subr.mxu0 0.0
      %2021 = vmatpush1.msra.mxu0 0.0
      %2022 = vmatprep.subr.mxu0 0.0
      %2023 = vmatpush1.msra.mxu0 0.0
      %2024 = vmatprep.subr.mxu0 0.0
      %2025 = vmatpush1.msra.mxu0 0.0
      %2026 = vmatprep.subr.mxu0 0.0
      %2027 = vmatpush1.msra.mxu0 0.0
      %2028 = vmatprep.subr.mxu0 0.0
      %2029 = vmatpush1.msra.mxu0 0.0
      %2030 = vmatprep.subr.mxu0 0.0
      %2031 = vmatpush1.msra.mxu0 0.0
      %2032 = vmatprep.subr.mxu0 0.0
      %2033 = vmatpush1.msra.mxu0 0.0
      %2034 = vmatprep.subr.mxu0 0.0
      %2035 = vmatpush1.msra.mxu0 0.0
      %2036 = vmatprep.subr.mxu0 0.0
      %2037 = vmatpush1.msra.mxu0 0.0
      %2038 = vmatprep.mubr.f32.mxu0 0.0
      %2039 = vmatmul.mubr.f32.gmra.mrb[0].mxu0 %v1972
      %v2040 = vpop.f32.mrb[0].mxu0
      %v2041 = vadd.f32 0.0, %v2040
      %v2042 = vpop.f32.mrb[0].mxu0
      %2043 = vdwg.mxu0
      %v2045 = vsel %vm485, %v2041, 0
      %2047 = vmatprep.subr.mxu0 0.0
      %2048 = vmatpush1.msra.mxu0 %v1653
      %2049 = vmatprep.subr.mxu0 0.0
      %2050 = vmatpush1.msra.mxu0 0.0
      %2051 = vmatprep.subr.mxu0 0.0
      %2052 = vmatpush1.msra.mxu0 0.0
      %2053 = vmatprep.subr.mxu0 0.0
      %2054 = vmatpush1.msra.mxu0 0.0
      %2055 = vmatprep.subr.mxu0 0.0
      %2056 = vmatpush1.msra.mxu0 0.0
      %2057 = vmatprep.subr.mxu0 0.0
      %2058 = vmatpush1.msra.mxu0 0.0
      %2059 = vmatprep.subr.mxu0 0.0
      %2060 = vmatpush1.msra.mxu0 0.0
      %2061 = vmatprep.subr.mxu0 0.0
      %2062 = vmatpush1.msra.mxu0 0.0
      %2063 = vmatprep.subr.mxu0 0.0
      %2064 = vmatpush1.msra.mxu0 0.0
      %2065 = vmatprep.subr.mxu0 0.0
      %2066 = vmatpush1.msra.mxu0 0.0
      %2067 = vmatprep.subr.mxu0 0.0
      %2068 = vmatpush1.msra.mxu0 0.0
      %2069 = vmatprep.subr.mxu0 0.0
      %2070 = vmatpush1.msra.mxu0 0.0
      %2071 = vmatprep.subr.mxu0 0.0
      %2072 = vmatpush1.msra.mxu0 0.0
      %2073 = vmatprep.subr.mxu0 0.0
      %2074 = vmatpush1.msra.mxu0 0.0
      %2075 = vmatprep.subr.mxu0 0.0
      %2076 = vmatpush1.msra.mxu0 0.0
      %2077 = vmatprep.subr.mxu0 0.0
      %2078 = vmatpush1.msra.mxu0 0.0
      %2079 = vmatprep.subr.mxu0 0.0
      %2080 = vmatpush1.msra.mxu0 0.0
      %2081 = vmatprep.subr.mxu0 0.0
      %2082 = vmatpush1.msra.mxu0 0.0
      %2083 = vmatprep.subr.mxu0 0.0
      %2084 = vmatpush1.msra.mxu0 0.0
      %2085 = vmatprep.subr.mxu0 0.0
      %2086 = vmatpush1.msra.mxu0 0.0
      %2087 = vmatprep.subr.mxu0 0.0
      %2088 = vmatpush1.msra.mxu0 0.0
      %2089 = vmatprep.subr.mxu0 0.0
      %2090 = vmatpush1.msra.mxu0 0.0
      %2091 = vmatprep.subr.mxu0 0.0
      %2092 = vmatpush1.msra.mxu0 0.0
      %2093 = vmatprep.subr.mxu0 0.0
      %2094 = vmatpush1.msra.mxu0 0.0
      %2095 = vmatprep.subr.mxu0 0.0
      %2096 = vmatpush1.msra.mxu0 0.0
      %2097 = vmatprep.subr.mxu0 0.0
      %2098 = vmatpush1.msra.mxu0 0.0
      %2099 = vmatprep.subr.mxu0 0.0
      %2100 = vmatpush1.msra.mxu0 0.0
      %2101 = vmatprep.subr.mxu0 0.0
      %2102 = vmatpush1.msra.mxu0 0.0
      %2103 = vmatprep.subr.mxu0 0.0
      %2104 = vmatpush1.msra.mxu0 0.0
      %2105 = vmatprep.subr.mxu0 0.0
      %2106 = vmatpush1.msra.mxu0 0.0
      %2107 = vmatprep.subr.mxu0 0.0
      %2108 = vmatpush1.msra.mxu0 0.0
      %2109 = vmatprep.subr.mxu0 0.0
      %2110 = vmatpush1.msra.mxu0 0.0
      %2111 = vmatprep.mubr.f32.mxu0 0.0
      %2112 = vmatmul.mubr.f32.gmra.mrb[0].mxu0 %v2045
      %v2113 = vpop.f32.mrb[0].mxu0
      %v2114 = vadd.f32 0.0, %v2113
      %v2115 = vpop.f32.mrb[0].mxu0
      %2116 = vdwg.mxu0
      %v2117 = vadd.f32 %v1649, %v2114
      %v2118 = vld [vmem:[%s2 + $0xec] sm:$0x1]
      %v2119 = vlaneseq
      %v2120 = vshrl.u32 %v2119, 7
      %v2121 = vsub.s32 0, %v2120
      %v2122 = vrot.slane %v2118, %v2121
      %v2123 = vadd.f32 %v2117, %v2122
      %v2124 = vadd.f32 %v237, %v2123
      %v2125 = vld [vmem:[%s2 + $0xed] sm:$0x1]
      %v2126 = vld [vmem:[%s2 + $0xee] sm:$0x1]
      %v2127 = vsel %vm213, %v2124, 0.0
      %2128 = vadd.xlane.f32.xlu0 %v2127
      %v2129 = vpop.xlane.xlu0 %2128
      %v2130 = vmul.f32 %v2129, %v217
      %v2131 = vsub.f32 %v2124, %v2130
      %v2132 = vmul.f32 %v2131, %v2131
      %v2133 = vsel %vm213, %v2132, 0.0
      %2134 = vadd.xlane.f32.xlu0 %v2133
      %v2135 = vpop.xlane.xlu0 %2134
      %v2136 = vmul.f32 %v2135, %v217
      %v2137 = vadd.f32 %v2136, 1e-05
      %v2138 = vrsqrt.pop %v2137
      %v2139 = vmul.f32 %v2131, %v2138
      %v2140 = vlaneseq
      %v2141 = vshrl.u32 %v2140, 7
      %v2142 = vsub.s32 0, %v2141
      %v2143 = vrot.slane %v2125, %v2142
      %v2144 = vmul.f32 %v2139, %v2143
      %v2145 = vlaneseq
      %v2146 = vshrl.u32 %v2145, 7
      %v2147 = vsub.s32 0, %v2146
      %v2148 = vrot.slane %v2126, %v2147
      %v2149 = vadd.f32 %v2144, %v2148
      %v2150 = vld [vmem:[%s2 + $0x80] sm:$0xff]
      %v2151 = vld [vmem:[%s2 + $0x88] sm:$0xff]
      %v2152 = vld [vmem:[%s2 + $0x90] sm:$0xff]
      %v2153 = vld [vmem:[%s2 + $0x98] sm:$0xff]
      %v2154 = vld [vmem:[%s2 + $0xef] sm:$0x1]
      %v2155 = vlaneseq
      %v2156 = vshrl.u32 %v2155, 7
      %v2157 = vsub.s32 0, %v2156
      %v2158 = vrot.slane %v2154, %v2157
      %v2160 = vsel %vm213, %v2149, 0
      %2162 = vmatprep.subr.mxu0 0.0
      %2163 = vmatpush1.msra.mxu0 %v2150
      %2164 = vmatprep.subr.mxu0 0.0
      %2165 = vmatpush1.msra.mxu0 %v2151
      %2166 = vmatprep.subr.mxu0 0.0
      %2167 = vmatpush1.msra.mxu0 %v2152
      %2168 = vmatprep.subr.mxu0 0.0
      %2169 = vmatpush1.msra.mxu0 %v2153
      %2170 = vmatprep.subr.mxu0 0.0
      %2171 = vmatpush1.msra.mxu0 0.0
      %2172 = vmatprep.subr.mxu0 0.0
      %2173 = vmatpush1.msra.mxu0 0.0
      %2174 = vmatprep.subr.mxu0 0.0
      %2175 = vmatpush1.msra.mxu0 0.0
      %2176 = vmatprep.subr.mxu0 0.0
      %2177 = vmatpush1.msra.mxu0 0.0
      %2178 = vmatprep.subr.mxu0 0.0
      %2179 = vmatpush1.msra.mxu0 0.0
      %2180 = vmatprep.subr.mxu0 0.0
      %2181 = vmatpush1.msra.mxu0 0.0
      %2182 = vmatprep.subr.mxu0 0.0
      %2183 = vmatpush1.msra.mxu0 0.0
      %2184 = vmatprep.subr.mxu0 0.0
      %2185 = vmatpush1.msra.mxu0 0.0
      %2186 = vmatprep.subr.mxu0 0.0
      %2187 = vmatpush1.msra.mxu0 0.0
      %2188 = vmatprep.subr.mxu0 0.0
      %2189 = vmatpush1.msra.mxu0 0.0
      %2190 = vmatprep.subr.mxu0 0.0
      %2191 = vmatpush1.msra.mxu0 0.0
      %2192 = vmatprep.subr.mxu0 0.0
      %2193 = vmatpush1.msra.mxu0 0.0
      %2194 = vmatprep.subr.mxu0 0.0
      %2195 = vmatpush1.msra.mxu0 0.0
      %2196 = vmatprep.subr.mxu0 0.0
      %2197 = vmatpush1.msra.mxu0 0.0
      %2198 = vmatprep.subr.mxu0 0.0
      %2199 = vmatpush1.msra.mxu0 0.0
      %2200 = vmatprep.subr.mxu0 0.0
      %2201 = vmatpush1.msra.mxu0 0.0
      %2202 = vmatprep.subr.mxu0 0.0
      %2203 = vmatpush1.msra.mxu0 0.0
      %2204 = vmatprep.subr.mxu0 0.0
      %2205 = vmatpush1.msra.mxu0 0.0
      %2206 = vmatprep.subr.mxu0 0.0
      %2207 = vmatpush1.msra.mxu0 0.0
      %2208 = vmatprep.subr.mxu0 0.0
      %2209 = vmatpush1.msra.mxu0 0.0
      %2210 = vmatprep.subr.mxu0 0.0
      %2211 = vmatpush1.msra.mxu0 0.0
      %2212 = vmatprep.subr.mxu0 0.0
      %2213 = vmatpush1.msra.mxu0 0.0
      %2214 = vmatprep.subr.mxu0 0.0
      %2215 = vmatpush1.msra.mxu0 0.0
      %2216 = vmatprep.subr.mxu0 0.0
      %2217 = vmatpush1.msra.mxu0 0.0
      %2218 = vmatprep.subr.mxu0 0.0
      %2219 = vmatpush1.msra.mxu0 0.0
      %2220 = vmatprep.subr.mxu0 0.0
      %2221 = vmatpush1.msra.mxu0 0.0
      %2222 = vmatprep.subr.mxu0 0.0
      %2223 = vmatpush1.msra.mxu0 0.0
      %2224 = vmatprep.subr.mxu0 0.0
      %2225 = vmatpush1.msra.mxu0 0.0
      %2226 = vmatprep.mubr.f32.mxu0 0.0
      %2227 = vmatmul.mubr.f32.gmra.mrb[0].mxu0 %v2160
      %v2228 = vpop.f32.mrb[0].mxu0
      %v2229 = vadd.f32 %v2158, %v2228
      %v2230 = vpop.f32.mrb[0].mxu0
      %2231 = vdwg.mxu0
      %v2232 = vmul.f32 %v2229, %v2229
      %v2233 = vmul.f32 %v2229, %v2232
      %v2234 = vmul.f32 %v2233, 0.044715
      %v2235 = vadd.f32 %v2229, %v2234
      %v2236 = vmul.f32 %v2235, 0.7978846
      %v2237 = vtanh.pop %v2236
      %v2238 = vadd.f32 %v2237, 1.0
      %v2239 = vmul.f32 %v2238, 0.5
      %v2240 = vmul.f32 %v2229, %v2239
      %v2241 = vld [vmem:[%s2 + $0xa0] sm:$0xff]
      %v2242 = vld [vmem:[%s2 + $0xa8] sm:$0xff]
      %v2243 = vld [vmem:[%s2 + $0xb0] sm:$0xff]
      %v2244 = vld [vmem:[%s2 + $0xb8] sm:$0xff]
      %v2245 = vld [vmem:[%s2 + $0xc0] sm:$0xff]
      %v2246 = vld [vmem:[%s2 + $0xc8] sm:$0xff]
      %v2247 = vld [vmem:[%s2 + $0xd0] sm:$0xff]
      %v2248 = vld [vmem:[%s2 + $0xd8] sm:$0xff]
      %v2249 = vld [vmem:[%s2 + $0xf0] sm:$0x1]
      %v2250 = vlaneseq
      %v2251 = vshrl.u32 %v2250, 7
      %v2252 = vsub.s32 0, %v2251
      %v2253 = vrot.slane %v2249, %v2252
      %vm2254 = vcmask 523264
      %v2256 = vsel %vm2254, %v2240, 0
      %2258 = vmatprep.subr.mxu0 0.0
      %2259 = vmatpush1.msra.mxu0 %v2241
      %2260 = vmatprep.subr.mxu0 0.0
      %2261 = vmatpush1.msra.mxu0 %v2242
      %2262 = vmatprep.subr.mxu0 0.0
      %2263 = vmatpush1.msra.mxu0 %v2243
      %2264 = vmatprep.subr.mxu0 0.0
      %2265 = vmatpush1.msra.mxu0 %v2244
      %2266 = vmatprep.subr.mxu0 0.0
      %2267 = vmatpush1.msra.mxu0 %v2245
      %2268 = vmatprep.subr.mxu0 0.0
      %2269 = vmatpush1.msra.mxu0 %v2246
      %2270 = vmatprep.subr.mxu0 0.0
      %2271 = vmatpush1.msra.mxu0 %v2247
      %2272 = vmatprep.subr.mxu0 0.0
      %2273 = vmatpush1.msra.mxu0 %v2248
      %2274 = vmatprep.subr.mxu0 0.0
      %2275 = vmatpush1.msra.mxu0 0.0
      %2276 = vmatprep.subr.mxu0 0.0
      %2277 = vmatpush1.msra.mxu0 0.0
      %2278 = vmatprep.subr.mxu0 0.0
      %2279 = vmatpush1.msra.mxu0 0.0
      %2280 = vmatprep.subr.mxu0 0.0
      %2281 = vmatpush1.msra.mxu0 0.0
      %2282 = vmatprep.subr.mxu0 0.0
      %2283 = vmatpush1.msra.mxu0 0.0
      %2284 = vmatprep.subr.mxu0 0.0
      %2285 = vmatpush1.msra.mxu0 0.0
      %2286 = vmatprep.subr.mxu0 0.0
      %2287 = vmatpush1.msra.mxu0 0.0
      %2288 = vmatprep.subr.mxu0 0.0
      %2289 = vmatpush1.msra.mxu0 0.0
      %2290 = vmatprep.subr.mxu0 0.0
      %2291 = vmatpush1.msra.mxu0 0.0
      %2292 = vmatprep.subr.mxu0 0.0
      %2293 = vmatpush1.msra.mxu0 0.0
      %2294 = vmatprep.subr.mxu0 0.0
      %2295 = vmatpush1.msra.mxu0 0.0
      %2296 = vmatprep.subr.mxu0 0.0
      %2297 = vmatpush1.msra.mxu0 0.0
      %2298 = vmatprep.subr.mxu0 0.0
      %2299 = vmatpush1.msra.mxu0 0.0
      %2300 = vmatprep.subr.mxu0 0.0
      %2301 = vmatpush1.msra.mxu0 0.0
      %2302 = vmatprep.subr.mxu0 0.0
      %2303 = vmatpush1.msra.mxu0 0.0
      %2304 = vmatprep.subr.mxu0 0.0
      %2305 = vmatpush1.msra.mxu0 0.0
      %2306 = vmatprep.subr.mxu0 0.0
      %2307 = vmatpush1.msra.mxu0 0.0
      %2308 = vmatprep.subr.mxu0 0.0
      %2309 = vmatpush1.msra.mxu0 0.0
      %2310 = vmatprep.subr.mxu0 0.0
      %2311 = vmatpush1.msra.mxu0 0.0
      %2312 = vmatprep.subr.mxu0 0.0
      %2313 = vmatpush1.msra.mxu0 0.0
      %2314 = vmatprep.subr.mxu0 0.0
      %2315 = vmatpush1.msra.mxu0 0.0
      %2316 = vmatprep.subr.mxu0 0.0
      %2317 = vmatpush1.msra.mxu0 0.0
      %2318 = vmatprep.subr.mxu0 0.0
      %2319 = vmatpush1.msra.mxu0 0.0
      %2320 = vmatprep.subr.mxu0 0.0
      %2321 = vmatpush1.msra.mxu0 0.0
      %2322 = vmatprep.mubr.f32.mxu0 0.0
      %2323 = vmatmul.mubr.f32.gmra.mrb[0].mxu0 %v2256
      %v2324 = vpop.f32.mrb[0].mxu0
      %v2325 = vadd.f32 %v2253, %v2324
      %v2326 = vpop.f32.mrb[0].mxu0
      %2327 = vdwg.mxu0
      %v2328 = vadd.f32 %v2149, %v2325
      %v2329 = vld [vmem:[%s2 + $0xf1] sm:$0x1]
      %v2330 = vld [vmem:[%s2 + $0xf2] sm:$0x1]
      %v2331 = vsel %vm213, %v2328, 0.0
      %2332 = vadd.xlane.f32.xlu0 %v2331
      %v2333 = vpop.xlane.xlu0 %2332
      %v2334 = vmul.f32 %v2333, %v217
      %v2335 = vsub.f32 %v2328, %v2334
      %v2336 = vmul.f32 %v2335, %v2335
      %v2337 = vsel %vm213, %v2336, 0.0
      %2338 = vadd.xlane.f32.xlu0 %v2337
      %v2339 = vpop.xlane.xlu0 %2338
      %v2340 = vmul.f32 %v2339, %v217
      %v2341 = vadd.f32 %v2340, 1e-05
      %v2342 = vrsqrt.pop %v2341
      %v2343 = vmul.f32 %v2335, %v2342
      %v2344 = vlaneseq
      %v2345 = vshrl.u32 %v2344, 7
      %v2346 = vsub.s32 0, %v2345
      %v2347 = vrot.slane %v2329, %v2346
      %v2348 = vmul.f32 %v2343, %v2347
      %v2349 = vlaneseq
      %v2350 = vshrl.u32 %v2349, 7
      %v2351 = vsub.s32 0, %v2350
      %v2352 = vrot.slane %v2330, %v2351
      %v2353 = vadd.f32 %v2348, %v2352
      %s2354 = scalar_lea.vmem %s2, 248
      %v2355 = vld [vmem:[%s2354] sm:$0xff]
      %v2356 = vld [vmem:[%s2354 + $0x20] sm:$0xff]
      %v2357 = vld [vmem:[%s2354 + $0x40] sm:$0xff]
      %v2358 = vld [vmem:[%s2354 + $0x60] sm:$0xff]
      %v2359 = vld [vmem:[%s2354 + $0xe0] sm:$0x1]
      %v2360 = vlaneseq
      %v2361 = vshrl.u32 %v2360, 7
      %v2362 = vsub.s32 0, %v2361
      %v2363 = vrot.slane %v2359, %v2362
      %v2365 = vsel %vm213, %v2353, 0
      %v2368 = vsel %vm213, %v2355, 0
      %2370 = vmatprep.subr.mxu0 0.0
      %2371 = vmatpush1.xpose.msra.mxu0 %v2368
      %2372 = vmatprep.subr.mxu0 0.0
      %2373 = vmatpush1.xpose.msra.mxu0 0.0
      %2374 = vmatprep.subr.mxu0 0.0
      %2375 = vmatpush1.xpose.msra.mxu0 0.0
      %2376 = vmatprep.subr.mxu0 0.0
      %2377 = vmatpush1.xpose.msra.mxu0 0.0
      %2378 = vmatprep.subr.mxu0 0.0
      %2379 = vmatpush1.xpose.msra.mxu0 0.0
      %2380 = vmatprep.subr.mxu0 0.0
      %2381 = vmatpush1.xpose.msra.mxu0 0.0
      %2382 = vmatprep.subr.mxu0 0.0
      %2383 = vmatpush1.xpose.msra.mxu0 0.0
      %2384 = vmatprep.subr.mxu0 0.0
      %2385 = vmatpush1.xpose.msra.mxu0 0.0
      %2386 = vmatprep.subr.mxu0 0.0
      %2387 = vmatpush1.xpose.msra.mxu0 0.0
      %2388 = vmatprep.subr.mxu0 0.0
      %2389 = vmatpush1.xpose.msra.mxu0 0.0
      %2390 = vmatprep.subr.mxu0 0.0
      %2391 = vmatpush1.xpose.msra.mxu0 0.0
      %2392 = vmatprep.subr.mxu0 0.0
      %2393 = vmatpush1.xpose.msra.mxu0 0.0
      %2394 = vmatprep.subr.mxu0 0.0
      %2395 = vmatpush1.xpose.msra.mxu0 0.0
      %2396 = vmatprep.subr.mxu0 0.0
      %2397 = vmatpush1.xpose.msra.mxu0 0.0
      %2398 = vmatprep.subr.mxu0 0.0
      %2399 = vmatpush1.xpose.msra.mxu0 0.0
      %2400 = vmatprep.subr.mxu0 0.0
      %2401 = vmatpush1.xpose.msra.mxu0 0.0
      %2402 = vmatprep.subr.mxu0 0.0
      %2403 = vmatpush1.xpose.msra.mxu0 0.0
      %2404 = vmatprep.subr.mxu0 0.0
      %2405 = vmatpush1.xpose.msra.mxu0 0.0
      %2406 = vmatprep.subr.mxu0 0.0
      %2407 = vmatpush1.xpose.msra.mxu0 0.0
      %2408 = vmatprep.subr.mxu0 0.0
      %2409 = vmatpush1.xpose.msra.mxu0 0.0
      %2410 = vmatprep.subr.mxu0 0.0
      %2411 = vmatpush1.xpose.msra.mxu0 0.0
      %2412 = vmatprep.subr.mxu0 0.0
      %2413 = vmatpush1.xpose.msra.mxu0 0.0
      %2414 = vmatprep.subr.mxu0 0.0
      %2415 = vmatpush1.xpose.msra.mxu0 0.0
      %2416 = vmatprep.subr.mxu0 0.0
      %2417 = vmatpush1.xpose.msra.mxu0 0.0
      %2418 = vmatprep.subr.mxu0 0.0
      %2419 = vmatpush1.xpose.msra.mxu0 0.0
      %2420 = vmatprep.subr.mxu0 0.0
      %2421 = vmatpush1.xpose.msra.mxu0 0.0
      %2422 = vmatprep.subr.mxu0 0.0
      %2423 = vmatpush1.xpose.msra.mxu0 0.0
      %2424 = vmatprep.subr.mxu0 0.0
      %2425 = vmatpush1.xpose.msra.mxu0 0.0
      %2426 = vmatprep.subr.mxu0 0.0
      %2427 = vmatpush1.xpose.msra.mxu0 0.0
      %2428 = vmatprep.subr.mxu0 0.0
      %2429 = vmatpush1.xpose.msra.mxu0 0.0
      %2430 = vmatprep.subr.mxu0 0.0
      %2431 = vmatpush1.xpose.msra.mxu0 0.0
      %2432 = vmatprep.subr.mxu0 0.0
      %2433 = vmatpush1.xpose.msra.mxu0 0.0
      %2434 = vmatprep.mubr.f32.mxu0 0.0
      %2435 = vmatmul.mubr.f32.gmra.mrb[0].mxu0 %v2365
      %v2436 = vpop.f32.mrb[0].mxu0
      %v2437 = vadd.f32 %v2363, %v2436
      %v2438 = vpop.f32.mrb[0].mxu0
      %2439 = vdwg.mxu0
      %v2440 = vld [vmem:[%s2354 + $0xe4] sm:$0x1]
      %v2441 = vlaneseq
      %v2442 = vshrl.u32 %v2441, 7
      %v2443 = vsub.s32 0, %v2442
      %v2444 = vrot.slane %v2440, %v2443
      %v2446 = vsel %vm213, %v2356, 0
      %2448 = vmatprep.subr.mxu0 0.0
      %2449 = vmatpush1.xpose.msra.mxu0 %v2446
      %2450 = vmatprep.subr.mxu0 0.0
      %2451 = vmatpush1.xpose.msra.mxu0 0.0
      %2452 = vmatprep.subr.mxu0 0.0
      %2453 = vmatpush1.xpose.msra.mxu0 0.0
      %2454 = vmatprep.subr.mxu0 0.0
      %2455 = vmatpush1.xpose.msra.mxu0 0.0
      %2456 = vmatprep.subr.mxu0 0.0
      %2457 = vmatpush1.xpose.msra.mxu0 0.0
      %2458 = vmatprep.subr.mxu0 0.0
      %2459 = vmatpush1.xpose.msra.mxu0 0.0
      %2460 = vmatprep.subr.mxu0 0.0
      %2461 = vmatpush1.xpose.msra.mxu0 0.0
      %2462 = vmatprep.subr.mxu0 0.0
      %2463 = vmatpush1.xpose.msra.mxu0 0.0
      %2464 = vmatprep.subr.mxu0 0.0
      %2465 = vmatpush1.xpose.msra.mxu0 0.0
      %2466 = vmatprep.subr.mxu0 0.0
      %2467 = vmatpush1.xpose.msra.mxu0 0.0
      %2468 = vmatprep.subr.mxu0 0.0
      %2469 = vmatpush1.xpose.msra.mxu0 0.0
      %2470 = vmatprep.subr.mxu0 0.0
      %2471 = vmatpush1.xpose.msra.mxu0 0.0
      %2472 = vmatprep.subr.mxu0 0.0
      %2473 = vmatpush1.xpose.msra.mxu0 0.0
      %2474 = vmatprep.subr.mxu0 0.0
      %2475 = vmatpush1.xpose.msra.mxu0 0.0
      %2476 = vmatprep.subr.mxu0 0.0
      %2477 = vmatpush1.xpose.msra.mxu0 0.0
      %2478 = vmatprep.subr.mxu0 0.0
      %2479 = vmatpush1.xpose.msra.mxu0 0.0
      %2480 = vmatprep.subr.mxu0 0.0
      %2481 = vmatpush1.xpose.msra.mxu0 0.0
      %2482 = vmatprep.subr.mxu0 0.0
      %2483 = vmatpush1.xpose.msra.mxu0 0.0
      %2484 = vmatprep.subr.mxu0 0.0
      %2485 = vmatpush1.xpose.msra.mxu0 0.0
      %2486 = vmatprep.subr.mxu0 0.0
      %2487 = vmatpush1.xpose.msra.mxu0 0.0
      %2488 = vmatprep.subr.mxu0 0.0
      %2489 = vmatpush1.xpose.msra.mxu0 0.0
      %2490 = vmatprep.subr.mxu0 0.0
      %2491 = vmatpush1.xpose.msra.mxu0 0.0
      %2492 = vmatprep.subr.mxu0 0.0
      %2493 = vmatpush1.xpose.msra.mxu0 0.0
      %2494 = vmatprep.subr.mxu0 0.0
      %2495 = vmatpush1.xpose.msra.mxu0 0.0
      %2496 = vmatprep.subr.mxu0 0.0
      %2497 = vmatpush1.xpose.msra.mxu0 0.0
      %2498 = vmatprep.subr.mxu0 0.0
      %2499 = vmatpush1.xpose.msra.mxu0 0.0
      %2500 = vmatprep.subr.mxu0 0.0
      %2501 = vmatpush1.xpose.msra.mxu0 0.0
      %2502 = vmatprep.subr.mxu0 0.0
      %2503 = vmatpush1.xpose.msra.mxu0 0.0
      %2504 = vmatprep.subr.mxu0 0.0
      %2505 = vmatpush1.xpose.msra.mxu0 0.0
      %2506 = vmatprep.subr.mxu0 0.0
      %2507 = vmatpush1.xpose.msra.mxu0 0.0
      %2508 = vmatprep.subr.mxu0 0.0
      %2509 = vmatpush1.xpose.msra.mxu0 0.0
      %2510 = vmatprep.subr.mxu0 0.0
      %2511 = vmatpush1.xpose.msra.mxu0 0.0
      %2512 = vmatprep.mubr.f32.mxu0 0.0
      %2513 = vmatmul.mubr.f32.gmra.mrb[0].mxu0 %v2365
      %v2514 = vpop.f32.mrb[0].mxu0
      %v2515 = vadd.f32 %v2444, %v2514
      %v2516 = vpop.f32.mrb[0].mxu0
      %2517 = vdwg.mxu0
      %v2518 = vld [vmem:[%s2354 + $0xe8] sm:$0x1]
      %v2519 = vlaneseq
      %v2520 = vshrl.u32 %v2519, 7
      %v2521 = vsub.s32 0, %v2520
      %v2522 = vrot.slane %v2518, %v2521
      %v2524 = vsel %vm213, %v2357, 0
      %2526 = vmatprep.subr.mxu0 0.0
      %2527 = vmatpush1.xpose.msra.mxu0 %v2524
      %2528 = vmatprep.subr.mxu0 0.0
      %2529 = vmatpush1.xpose.msra.mxu0 0.0
      %2530 = vmatprep.subr.mxu0 0.0
      %2531 = vmatpush1.xpose.msra.mxu0 0.0
      %2532 = vmatprep.subr.mxu0 0.0
      %2533 = vmatpush1.xpose.msra.mxu0 0.0
      %2534 = vmatprep.subr.mxu0 0.0
      %2535 = vmatpush1.xpose.msra.mxu0 0.0
      %2536 = vmatprep.subr.mxu0 0.0
      %2537 = vmatpush1.xpose.msra.mxu0 0.0
      %2538 = vmatprep.subr.mxu0 0.0
      %2539 = vmatpush1.xpose.msra.mxu0 0.0
      %2540 = vmatprep.subr.mxu0 0.0
      %2541 = vmatpush1.xpose.msra.mxu0 0.0
      %2542 = vmatprep.subr.mxu0 0.0
      %2543 = vmatpush1.xpose.msra.mxu0 0.0
      %2544 = vmatprep.subr.mxu0 0.0
      %2545 = vmatpush1.xpose.msra.mxu0 0.0
      %2546 = vmatprep.subr.mxu0 0.0
      %2547 = vmatpush1.xpose.msra.mxu0 0.0
      %2548 = vmatprep.subr.mxu0 0.0
      %2549 = vmatpush1.xpose.msra.mxu0 0.0
      %2550 = vmatprep.subr.mxu0 0.0
      %2551 = vmatpush1.xpose.msra.mxu0 0.0
      %2552 = vmatprep.subr.mxu0 0.0
      %2553 = vmatpush1.xpose.msra.mxu0 0.0
      %2554 = vmatprep.subr.mxu0 0.0
      %2555 = vmatpush1.xpose.msra.mxu0 0.0
      %2556 = vmatprep.subr.mxu0 0.0
      %2557 = vmatpush1.xpose.msra.mxu0 0.0
      %2558 = vmatprep.subr.mxu0 0.0
      %2559 = vmatpush1.xpose.msra.mxu0 0.0
      %2560 = vmatprep.subr.mxu0 0.0
      %2561 = vmatpush1.xpose.msra.mxu0 0.0
      %2562 = vmatprep.subr.mxu0 0.0
      %2563 = vmatpush1.xpose.msra.mxu0 0.0
      %2564 = vmatprep.subr.mxu0 0.0
      %2565 = vmatpush1.xpose.msra.mxu0 0.0
      %2566 = vmatprep.subr.mxu0 0.0
      %2567 = vmatpush1.xpose.msra.mxu0 0.0
      %2568 = vmatprep.subr.mxu0 0.0
      %2569 = vmatpush1.xpose.msra.mxu0 0.0
      %2570 = vmatprep.subr.mxu0 0.0
      %2571 = vmatpush1.xpose.msra.mxu0 0.0
      %2572 = vmatprep.subr.mxu0 0.0
      %2573 = vmatpush1.xpose.msra.mxu0 0.0
      %2574 = vmatprep.subr.mxu0 0.0
      %2575 = vmatpush1.xpose.msra.mxu0 0.0
      %2576 = vmatprep.subr.mxu0 0.0
      %2577 = vmatpush1.xpose.msra.mxu0 0.0
      %2578 = vmatprep.subr.mxu0 0.0
      %2579 = vmatpush1.xpose.msra.mxu0 0.0
      %2580 = vmatprep.subr.mxu0 0.0
      %2581 = vmatpush1.xpose.msra.mxu0 0.0
      %2582 = vmatprep.subr.mxu0 0.0
      %2583 = vmatpush1.xpose.msra.mxu0 0.0
      %2584 = vmatprep.subr.mxu0 0.0
      %2585 = vmatpush1.xpose.msra.mxu0 0.0
      %2586 = vmatprep.subr.mxu0 0.0
      %2587 = vmatpush1.xpose.msra.mxu0 0.0
      %2588 = vmatprep.subr.mxu0 0.0
      %2589 = vmatpush1.xpose.msra.mxu0 0.0
      %2590 = vmatprep.mubr.f32.mxu0 0.0
      %2591 = vmatmul.mubr.f32.gmra.mrb[0].mxu0 %v2365
      %v2592 = vpop.f32.mrb[0].mxu0
      %v2593 = vadd.f32 %v2522, %v2592
      %v2594 = vpop.f32.mrb[0].mxu0
      %2595 = vdwg.mxu0
      %v2597 = vsel %vm485, %v2437, 0
      %v2600 = vsel %vm485, %v2515, 0
      %2602 = vmatprep.subr.mxu0 0.0
      %2603 = vmatpush1.xpose.msra.mxu0 %v2600
      %2604 = vmatprep.subr.mxu0 0.0
      %2605 = vmatpush1.xpose.msra.mxu0 0.0
      %2606 = vmatprep.subr.mxu0 0.0
      %2607 = vmatpush1.xpose.msra.mxu0 0.0
      %2608 = vmatprep.subr.mxu0 0.0
      %2609 = vmatpush1.xpose.msra.mxu0 0.0
      %2610 = vmatprep.subr.mxu0 0.0
      %2611 = vmatpush1.xpose.msra.mxu0 0.0
      %2612 = vmatprep.subr.mxu0 0.0
      %2613 = vmatpush1.xpose.msra.mxu0 0.0
      %2614 = vmatprep.subr.mxu0 0.0
      %2615 = vmatpush1.xpose.msra.mxu0 0.0
      %2616 = vmatprep.subr.mxu0 0.0
      %2617 = vmatpush1.xpose.msra.mxu0 0.0
      %2618 = vmatprep.subr.mxu0 0.0
      %2619 = vmatpush1.xpose.msra.mxu0 0.0
      %2620 = vmatprep.subr.mxu0 0.0
      %2621 = vmatpush1.xpose.msra.mxu0 0.0
      %2622 = vmatprep.subr.mxu0 0.0
      %2623 = vmatpush1.xpose.msra.mxu0 0.0
      %2624 = vmatprep.subr.mxu0 0.0
      %2625 = vmatpush1.xpose.msra.mxu0 0.0
      %2626 = vmatprep.subr.mxu0 0.0
      %2627 = vmatpush1.xpose.msra.mxu0 0.0
      %2628 = vmatprep.subr.mxu0 0.0
      %2629 = vmatpush1.xpose.msra.mxu0 0.0
      %2630 = vmatprep.subr.mxu0 0.0
      %2631 = vmatpush1.xpose.msra.mxu0 0.0
      %2632 = vmatprep.subr.mxu0 0.0
      %2633 = vmatpush1.xpose.msra.mxu0 0.0
      %2634 = vmatprep.subr.mxu0 0.0
      %2635 = vmatpush1.xpose.msra.mxu0 0.0
      %2636 = vmatprep.subr.mxu0 0.0
      %2637 = vmatpush1.xpose.msra.mxu0 0.0
      %2638 = vmatprep.subr.mxu0 0.0
      %2639 = vmatpush1.xpose.msra.mxu0 0.0
      %2640 = vmatprep.subr.mxu0 0.0
      %2641 = vmatpush1.xpose.msra.mxu0 0.0
      %2642 = vmatprep.subr.mxu0 0.0
      %2643 = vmatpush1.xpose.msra.mxu0 0.0
      %2644 = vmatprep.subr.mxu0 0.0
      %2645 = vmatpush1.xpose.msra.mxu0 0.0
      %2646 = vmatprep.subr.mxu0 0.0
      %2647 = vmatpush1.xpose.msra.mxu0 0.0
      %2648 = vmatprep.subr.mxu0 0.0
      %2649 = vmatpush1.xpose.msra.mxu0 0.0
      %2650 = vmatprep.subr.mxu0 0.0
      %2651 = vmatpush1.xpose.msra.mxu0 0.0
      %2652 = vmatprep.subr.mxu0 0.0
      %2653 = vmatpush1.xpose.msra.mxu0 0.0
      %2654 = vmatprep.subr.mxu0 0.0
      %2655 = vmatpush1.xpose.msra.mxu0 0.0
      %2656 = vmatprep.subr.mxu0 0.0
      %2657 = vmatpush1.xpose.msra.mxu0 0.0
      %2658 = vmatprep.subr.mxu0 0.0
      %2659 = vmatpush1.xpose.msra.mxu0 0.0
      %2660 = vmatprep.subr.mxu0 0.0
      %2661 = vmatpush1.xpose.msra.mxu0 0.0
      %2662 = vmatprep.subr.mxu0 0.0
      %2663 = vmatpush1.xpose.msra.mxu0 0.0
      %2664 = vmatprep.subr.mxu0 0.0
      %2665 = vmatpush1.xpose.msra.mxu0 0.0
      %2666 = vmatprep.mubr.f32.mxu0 0.0
      %2667 = vmatmul.mubr.f32.gmra.mrb[0].mxu0 %v2597
      %v2668 = vpop.f32.mrb[0].mxu0
      %v2669 = vadd.f32 %v483, %v2668
      %v2670 = vpop.f32.mrb[0].mxu0
      %2671 = vdwg.mxu0
      %v2672 = vmul.f32 %v2669, 1.442695
      %v2673 = vpow.pop %v2672
      %v2674 = vsel %vm485, %v2673, 0.0
      %2675 = vadd.xlane.f32.xlu0 %v2674
      %v2676 = vpop.xlane.xlu0 %2675
      %v2677 = vrcp.pop %v2676
      %v2678 = vmul.f32 %v2673, %v2677
      %v2680 = vsel %vm485, %v2678, 0
      %2682 = vmatprep.subr.mxu0 0.0
      %2683 = vmatpush1.msra.mxu0 %v2593
      %2684 = vmatprep.subr.mxu0 0.0
      %2685 = vmatpush1.msra.mxu0 0.0
      %2686 = vmatprep.subr.mxu0 0.0
      %2687 = vmatpush1.msra.mxu0 0.0
      %2688 = vmatprep.subr.mxu0 0.0
      %2689 = vmatpush1.msra.mxu0 0.0
      %2690 = vmatprep.subr.mxu0 0.0
      %2691 = vmatpush1.msra.mxu0 0.0
      %2692 = vmatprep.subr.mxu0 0.0
      %2693 = vmatpush1.msra.mxu0 0.0
      %2694 = vmatprep.subr.mxu0 0.0
      %2695 = vmatpush1.msra.mxu0 0.0
      %2696 = vmatprep.subr.mxu0 0.0
      %2697 = vmatpush1.msra.mxu0 0.0
      %2698 = vmatprep.subr.mxu0 0.0
      %2699 = vmatpush1.msra.mxu0 0.0
      %2700 = vmatprep.subr.mxu0 0.0
      %2701 = vmatpush1.msra.mxu0 0.0
      %2702 = vmatprep.subr.mxu0 0.0
      %2703 = vmatpush1.msra.mxu0 0.0
      %2704 = vmatprep.subr.mxu0 0.0
      %2705 = vmatpush1.msra.mxu0 0.0
      %2706 = vmatprep.subr.mxu0 0.0
      %2707 = vmatpush1.msra.mxu0 0.0
      %2708 = vmatprep.subr.mxu0 0.0
      %2709 = vmatpush1.msra.mxu0 0.0
      %2710 = vmatprep.subr.mxu0 0.0
      %2711 = vmatpush1.msra.mxu0 0.0
      %2712 = vmatprep.subr.mxu0 0.0
      %2713 = vmatpush1.msra.mxu0 0.0
      %2714 = vmatprep.subr.mxu0 0.0
      %2715 = vmatpush1.msra.mxu0 0.0
      %2716 = vmatprep.subr.mxu0 0.0
      %2717 = vmatpush1.msra.mxu0 0.0
      %2718 = vmatprep.subr.mxu0 0.0
      %2719 = vmatpush1.msra.mxu0 0.0
      %2720 = vmatprep.subr.mxu0 0.0
      %2721 = vmatpush1.msra.mxu0 0.0
      %2722 = vmatprep.subr.mxu0 0.0
      %2723 = vmatpush1.msra.mxu0 0.0
      %2724 = vmatprep.subr.mxu0 0.0
      %2725 = vmatpush1.msra.mxu0 0.0
      %2726 = vmatprep.subr.mxu0 0.0
      %2727 = vmatpush1.msra.mxu0 0.0
      %2728 = vmatprep.subr.mxu0 0.0
      %2729 = vmatpush1.msra.mxu0 0.0
      %2730 = vmatprep.subr.mxu0 0.0
      %2731 = vmatpush1.msra.mxu0 0.0
      %2732 = vmatprep.subr.mxu0 0.0
      %2733 = vmatpush1.msra.mxu0 0.0
      %2734 = vmatprep.subr.mxu0 0.0
      %2735 = vmatpush1.msra.mxu0 0.0
      %2736 = vmatprep.subr.mxu0 0.0
      %2737 = vmatpush1.msra.mxu0 0.0
      %2738 = vmatprep.subr.mxu0 0.0
      %2739 = vmatpush1.msra.mxu0 0.0
      %2740 = vmatprep.subr.mxu0 0.0
      %2741 = vmatpush1.msra.mxu0 0.0
      %2742 = vmatprep.subr.mxu0 0.0
      %2743 = vmatpush1.msra.mxu0 0.0
      %2744 = vmatprep.subr.mxu0 0.0
      %2745 = vmatpush1.msra.mxu0 0.0
      %2746 = vmatprep.mubr.f32.mxu0 0.0
      %2747 = vmatmul.mubr.f32.gmra.mrb[0].mxu0 %v2680
      %v2748 = vpop.f32.mrb[0].mxu0
      %v2749 = vadd.f32 0.0, %v2748
      %v2750 = vpop.f32.mrb[0].mxu0
      %2751 = vdwg.mxu0
      %v2752 = vld [vmem:[%s2354 + $0x8] sm:$0xff]
      %v2753 = vld [vmem:[%s2354 + $0x28] sm:$0xff]
      %v2754 = vld [vmem:[%s2354 + $0x48] sm:$0xff]
      %v2755 = vld [vmem:[%s2354 + $0x68] sm:$0xff]
      %v2756 = vld [vmem:[%s2354 + $0xe1] sm:$0x1]
      %v2757 = vlaneseq
      %v2758 = vshrl.u32 %v2757, 7
      %v2759 = vsub.s32 0, %v2758
      %v2760 = vrot.slane %v2756, %v2759
      %v2762 = vsel %vm213, %v2752, 0
      %2764 = vmatprep.subr.mxu0 0.0
      %2765 = vmatpush1.xpose.msra.mxu0 %v2762
      %2766 = vmatprep.subr.mxu0 0.0
      %2767 = vmatpush1.xpose.msra.mxu0 0.0
      %2768 = vmatprep.subr.mxu0 0.0
      %2769 = vmatpush1.xpose.msra.mxu0 0.0
      %2770 = vmatprep.subr.mxu0 0.0
      %2771 = vmatpush1.xpose.msra.mxu0 0.0
      %2772 = vmatprep.subr.mxu0 0.0
      %2773 = vmatpush1.xpose.msra.mxu0 0.0
      %2774 = vmatprep.subr.mxu0 0.0
      %2775 = vmatpush1.xpose.msra.mxu0 0.0
      %2776 = vmatprep.subr.mxu0 0.0
      %2777 = vmatpush1.xpose.msra.mxu0 0.0
      %2778 = vmatprep.subr.mxu0 0.0
      %2779 = vmatpush1.xpose.msra.mxu0 0.0
      %2780 = vmatprep.subr.mxu0 0.0
      %2781 = vmatpush1.xpose.msra.mxu0 0.0
      %2782 = vmatprep.subr.mxu0 0.0
      %2783 = vmatpush1.xpose.msra.mxu0 0.0
      %2784 = vmatprep.subr.mxu0 0.0
      %2785 = vmatpush1.xpose.msra.mxu0 0.0
      %2786 = vmatprep.subr.mxu0 0.0
      %2787 = vmatpush1.xpose.msra.mxu0 0.0
      %2788 = vmatprep.subr.mxu0 0.0
      %2789 = vmatpush1.xpose.msra.mxu0 0.0
      %2790 = vmatprep.subr.mxu0 0.0
      %2791 = vmatpush1.xpose.msra.mxu0 0.0
      %2792 = vmatprep.subr.mxu0 0.0
      %2793 = vmatpush1.xpose.msra.mxu0 0.0
      %2794 = vmatprep.subr.mxu0 0.0
      %2795 = vmatpush1.xpose.msra.mxu0 0.0
      %2796 = vmatprep.subr.mxu0 0.0
      %2797 = vmatpush1.xpose.msra.mxu0 0.0
      %2798 = vmatprep.subr.mxu0 0.0
      %2799 = vmatpush1.xpose.msra.mxu0 0.0
      %2800 = vmatprep.subr.mxu0 0.0
      %2801 = vmatpush1.xpose.msra.mxu0 0.0
      %2802 = vmatprep.subr.mxu0 0.0
      %2803 = vmatpush1.xpose.msra.mxu0 0.0
      %2804 = vmatprep.subr.mxu0 0.0
      %2805 = vmatpush1.xpose.msra.mxu0 0.0
      %2806 = vmatprep.subr.mxu0 0.0
      %2807 = vmatpush1.xpose.msra.mxu0 0.0
      %2808 = vmatprep.subr.mxu0 0.0
      %2809 = vmatpush1.xpose.msra.mxu0 0.0
      %2810 = vmatprep.subr.mxu0 0.0
      %2811 = vmatpush1.xpose.msra.mxu0 0.0
      %2812 = vmatprep.subr.mxu0 0.0
      %2813 = vmatpush1.xpose.msra.mxu0 0.0
      %2814 = vmatprep.subr.mxu0 0.0
      %2815 = vmatpush1.xpose.msra.mxu0 0.0
      %2816 = vmatprep.subr.mxu0 0.0
      %2817 = vmatpush1.xpose.msra.mxu0 0.0
      %2818 = vmatprep.subr.mxu0 0.0
      %2819 = vmatpush1.xpose.msra.mxu0 0.0
      %2820 = vmatprep.subr.mxu0 0.0
      %2821 = vmatpush1.xpose.msra.mxu0 0.0
      %2822 = vmatprep.subr.mxu0 0.0
      %2823 = vmatpush1.xpose.msra.mxu0 0.0
      %2824 = vmatprep.subr.mxu0 0.0
      %2825 = vmatpush1.xpose.msra.mxu0 0.0
      %2826 = vmatprep.subr.mxu0 0.0
      %2827 = vmatpush1.xpose.msra.mxu0 0.0
      %2828 = vmatprep.mubr.f32.mxu0 0.0
      %2829 = vmatmul.mubr.f32.gmra.mrb[0].mxu0 %v2365
      %v2830 = vpop.f32.mrb[0].mxu0
      %v2831 = vadd.f32 %v2760, %v2830
      %v2832 = vpop.f32.mrb[0].mxu0
      %2833 = vdwg.mxu0
      %v2834 = vld [vmem:[%s2354 + $0xe5] sm:$0x1]
      %v2835 = vlaneseq
      %v2836 = vshrl.u32 %v2835, 7
      %v2837 = vsub.s32 0, %v2836
      %v2838 = vrot.slane %v2834, %v2837
      %v2840 = vsel %vm213, %v2753, 0
      %2842 = vmatprep.subr.mxu0 0.0
      %2843 = vmatpush1.xpose.msra.mxu0 %v2840
      %2844 = vmatprep.subr.mxu0 0.0
      %2845 = vmatpush1.xpose.msra.mxu0 0.0
      %2846 = vmatprep.subr.mxu0 0.0
      %2847 = vmatpush1.xpose.msra.mxu0 0.0
      %2848 = vmatprep.subr.mxu0 0.0
      %2849 = vmatpush1.xpose.msra.mxu0 0.0
      %2850 = vmatprep.subr.mxu0 0.0
      %2851 = vmatpush1.xpose.msra.mxu0 0.0
      %2852 = vmatprep.subr.mxu0 0.0
      %2853 = vmatpush1.xpose.msra.mxu0 0.0
      %2854 = vmatprep.subr.mxu0 0.0
      %2855 = vmatpush1.xpose.msra.mxu0 0.0
      %2856 = vmatprep.subr.mxu0 0.0
      %2857 = vmatpush1.xpose.msra.mxu0 0.0
      %2858 = vmatprep.subr.mxu0 0.0
      %2859 = vmatpush1.xpose.msra.mxu0 0.0
      %2860 = vmatprep.subr.mxu0 0.0
      %2861 = vmatpush1.xpose.msra.mxu0 0.0
      %2862 = vmatprep.subr.mxu0 0.0
      %2863 = vmatpush1.xpose.msra.mxu0 0.0
      %2864 = vmatprep.subr.mxu0 0.0
      %2865 = vmatpush1.xpose.msra.mxu0 0.0
      %2866 = vmatprep.subr.mxu0 0.0
      %2867 = vmatpush1.xpose.msra.mxu0 0.0
      %2868 = vmatprep.subr.mxu0 0.0
      %2869 = vmatpush1.xpose.msra.mxu0 0.0
      %2870 = vmatprep.subr.mxu0 0.0
      %2871 = vmatpush1.xpose.msra.mxu0 0.0
      %2872 = vmatprep.subr.mxu0 0.0
      %2873 = vmatpush1.xpose.msra.mxu0 0.0
      %2874 = vmatprep.subr.mxu0 0.0
      %2875 = vmatpush1.xpose.msra.mxu0 0.0
      %2876 = vmatprep.subr.mxu0 0.0
      %2877 = vmatpush1.xpose.msra.mxu0 0.0
      %2878 = vmatprep.subr.mxu0 0.0
      %2879 = vmatpush1.xpose.msra.mxu0 0.0
      %2880 = vmatprep.subr.mxu0 0.0
      %2881 = vmatpush1.xpose.msra.mxu0 0.0
      %2882 = vmatprep.subr.mxu0 0.0
      %2883 = vmatpush1.xpose.msra.mxu0 0.0
      %2884 = vmatprep.subr.mxu0 0.0
      %2885 = vmatpush1.xpose.msra.mxu0 0.0
      %2886 = vmatprep.subr.mxu0 0.0
      %2887 = vmatpush1.xpose.msra.mxu0 0.0
      %2888 = vmatprep.subr.mxu0 0.0
      %2889 = vmatpush1.xpose.msra.mxu0 0.0
      %2890 = vmatprep.subr.mxu0 0.0
      %2891 = vmatpush1.xpose.msra.mxu0 0.0
      %2892 = vmatprep.subr.mxu0 0.0
      %2893 = vmatpush1.xpose.msra.mxu0 0.0
      %2894 = vmatprep.subr.mxu0 0.0
      %2895 = vmatpush1.xpose.msra.mxu0 0.0
      %2896 = vmatprep.subr.mxu0 0.0
      %2897 = vmatpush1.xpose.msra.mxu0 0.0
      %2898 = vmatprep.subr.mxu0 0.0
      %2899 = vmatpush1.xpose.msra.mxu0 0.0
      %2900 = vmatprep.subr.mxu0 0.0
      %2901 = vmatpush1.xpose.msra.mxu0 0.0
      %2902 = vmatprep.subr.mxu0 0.0
      %2903 = vmatpush1.xpose.msra.mxu0 0.0
      %2904 = vmatprep.subr.mxu0 0.0
      %2905 = vmatpush1.xpose.msra.mxu0 0.0
      %2906 = vmatprep.mubr.f32.mxu0 0.0
      %2907 = vmatmul.mubr.f32.gmra.mrb[0].mxu0 %v2365
      %v2908 = vpop.f32.mrb[0].mxu0
      %v2909 = vadd.f32 %v2838, %v2908
      %v2910 = vpop.f32.mrb[0].mxu0
      %2911 = vdwg.mxu0
      %v2912 = vld [vmem:[%s2354 + $0xe9] sm:$0x1]
      %v2913 = vlaneseq
      %v2914 = vshrl.u32 %v2913, 7
      %v2915 = vsub.s32 0, %v2914
      %v2916 = vrot.slane %v2912, %v2915
      %v2918 = vsel %vm213, %v2754, 0
      %2920 = vmatprep.subr.mxu0 0.0
      %2921 = vmatpush1.xpose.msra.mxu0 %v2918
      %2922 = vmatprep.subr.mxu0 0.0
      %2923 = vmatpush1.xpose.msra.mxu0 0.0
      %2924 = vmatprep.subr.mxu0 0.0
      %2925 = vmatpush1.xpose.msra.mxu0 0.0
      %2926 = vmatprep.subr.mxu0 0.0
      %2927 = vmatpush1.xpose.msra.mxu0 0.0
      %2928 = vmatprep.subr.mxu0 0.0
      %2929 = vmatpush1.xpose.msra.mxu0 0.0
      %2930 = vmatprep.subr.mxu0 0.0
      %2931 = vmatpush1.xpose.msra.mxu0 0.0
      %2932 = vmatprep.subr.mxu0 0.0
      %2933 = vmatpush1.xpose.msra.mxu0 0.0
      %2934 = vmatprep.subr.mxu0 0.0
      %2935 = vmatpush1.xpose.msra.mxu0 0.0
      %2936 = vmatprep.subr.mxu0 0.0
      %2937 = vmatpush1.xpose.msra.mxu0 0.0
      %2938 = vmatprep.subr.mxu0 0.0
      %2939 = vmatpush1.xpose.msra.mxu0 0.0
      %2940 = vmatprep.subr.mxu0 0.0
      %2941 = vmatpush1.xpose.msra.mxu0 0.0
      %2942 = vmatprep.subr.mxu0 0.0
      %2943 = vmatpush1.xpose.msra.mxu0 0.0
      %2944 = vmatprep.subr.mxu0 0.0
      %2945 = vmatpush1.xpose.msra.mxu0 0.0
      %2946 = vmatprep.subr.mxu0 0.0
      %2947 = vmatpush1.xpose.msra.mxu0 0.0
      %2948 = vmatprep.subr.mxu0 0.0
      %2949 = vmatpush1.xpose.msra.mxu0 0.0
      %2950 = vmatprep.subr.mxu0 0.0
      %2951 = vmatpush1.xpose.msra.mxu0 0.0
      %2952 = vmatprep.subr.mxu0 0.0
      %2953 = vmatpush1.xpose.msra.mxu0 0.0
      %2954 = vmatprep.subr.mxu0 0.0
      %2955 = vmatpush1.xpose.msra.mxu0 0.0
      %2956 = vmatprep.subr.mxu0 0.0
      %2957 = vmatpush1.xpose.msra.mxu0 0.0
      %2958 = vmatprep.subr.mxu0 0.0
      %2959 = vmatpush1.xpose.msra.mxu0 0.0
      %2960 = vmatprep.subr.mxu0 0.0
      %2961 = vmatpush1.xpose.msra.mxu0 0.0
      %2962 = vmatprep.subr.mxu0 0.0
      %2963 = vmatpush1.xpose.msra.mxu0 0.0
      %2964 = vmatprep.subr.mxu0 0.0
      %2965 = vmatpush1.xpose.msra.mxu0 0.0
      %2966 = vmatprep.subr.mxu0 0.0
      %2967 = vmatpush1.xpose.msra.mxu0 0.0
      %2968 = vmatprep.subr.mxu0 0.0
      %2969 = vmatpush1.xpose.msra.mxu0 0.0
      %2970 = vmatprep.subr.mxu0 0.0
      %2971 = vmatpush1.xpose.msra.mxu0 0.0
      %2972 = vmatprep.subr.mxu0 0.0
      %2973 = vmatpush1.xpose.msra.mxu0 0.0
      %2974 = vmatprep.subr.mxu0 0.0
      %2975 = vmatpush1.xpose.msra.mxu0 0.0
      %2976 = vmatprep.subr.mxu0 0.0
      %2977 = vmatpush1.xpose.msra.mxu0 0.0
      %2978 = vmatprep.subr.mxu0 0.0
      %2979 = vmatpush1.xpose.msra.mxu0 0.0
      %2980 = vmatprep.subr.mxu0 0.0
      %2981 = vmatpush1.xpose.msra.mxu0 0.0
      %2982 = vmatprep.subr.mxu0 0.0
      %2983 = vmatpush1.xpose.msra.mxu0 0.0
      %2984 = vmatprep.mubr.f32.mxu0 0.0
      %2985 = vmatmul.mubr.f32.gmra.mrb[0].mxu0 %v2365
      %v2986 = vpop.f32.mrb[0].mxu0
      %v2987 = vadd.f32 %v2916, %v2986
      %v2988 = vpop.f32.mrb[0].mxu0
      %2989 = vdwg.mxu0
      %v2991 = vsel %vm485, %v2831, 0
      %v2994 = vsel %vm485, %v2909, 0
      %2996 = vmatprep.subr.mxu0 0.0
      %2997 = vmatpush1.xpose.msra.mxu0 %v2994
      %2998 = vmatprep.subr.mxu0 0.0
      %2999 = vmatpush1.xpose.msra.mxu0 0.0
      %3000 = vmatprep.subr.mxu0 0.0
      %3001 = vmatpush1.xpose.msra.mxu0 0.0
      %3002 = vmatprep.subr.mxu0 0.0
      %3003 = vmatpush1.xpose.msra.mxu0 0.0
      %3004 = vmatprep.subr.mxu0 0.0
      %3005 = vmatpush1.xpose.msra.mxu0 0.0
      %3006 = vmatprep.subr.mxu0 0.0
      %3007 = vmatpush1.xpose.msra.mxu0 0.0
      %3008 = vmatprep.subr.mxu0 0.0
      %3009 = vmatpush1.xpose.msra.mxu0 0.0
      %3010 = vmatprep.subr.mxu0 0.0
      %3011 = vmatpush1.xpose.msra.mxu0 0.0
      %3012 = vmatprep.subr.mxu0 0.0
      %3013 = vmatpush1.xpose.msra.mxu0 0.0
      %3014 = vmatprep.subr.mxu0 0.0
      %3015 = vmatpush1.xpose.msra.mxu0 0.0
      %3016 = vmatprep.subr.mxu0 0.0
      %3017 = vmatpush1.xpose.msra.mxu0 0.0
      %3018 = vmatprep.subr.mxu0 0.0
      %3019 = vmatpush1.xpose.msra.mxu0 0.0
      %3020 = vmatprep.subr.mxu0 0.0
      %3021 = vmatpush1.xpose.msra.mxu0 0.0
      %3022 = vmatprep.subr.mxu0 0.0
      %3023 = vmatpush1.xpose.msra.mxu0 0.0
      %3024 = vmatprep.subr.mxu0 0.0
      %3025 = vmatpush1.xpose.msra.mxu0 0.0
      %3026 = vmatprep.subr.mxu0 0.0
      %3027 = vmatpush1.xpose.msra.mxu0 0.0
      %3028 = vmatprep.subr.mxu0 0.0
      %3029 = vmatpush1.xpose.msra.mxu0 0.0
      %3030 = vmatprep.subr.mxu0 0.0
      %3031 = vmatpush1.xpose.msra.mxu0 0.0
      %3032 = vmatprep.subr.mxu0 0.0
      %3033 = vmatpush1.xpose.msra.mxu0 0.0
      %3034 = vmatprep.subr.mxu0 0.0
      %3035 = vmatpush1.xpose.msra.mxu0 0.0
      %3036 = vmatprep.subr.mxu0 0.0
      %3037 = vmatpush1.xpose.msra.mxu0 0.0
      %3038 = vmatprep.subr.mxu0 0.0
      %3039 = vmatpush1.xpose.msra.mxu0 0.0
      %3040 = vmatprep.subr.mxu0 0.0
      %3041 = vmatpush1.xpose.msra.mxu0 0.0
      %3042 = vmatprep.subr.mxu0 0.0
      %3043 = vmatpush1.xpose.msra.mxu0 0.0
      %3044 = vmatprep.subr.mxu0 0.0
      %3045 = vmatpush1.xpose.msra.mxu0 0.0
      %3046 = vmatprep.subr.mxu0 0.0
      %3047 = vmatpush1.xpose.msra.mxu0 0.0
      %3048 = vmatprep.subr.mxu0 0.0
      %3049 = vmatpush1.xpose.msra.mxu0 0.0
      %3050 = vmatprep.subr.mxu0 0.0
      %3051 = vmatpush1.xpose.msra.mxu0 0.0
      %3052 = vmatprep.subr.mxu0 0.0
      %3053 = vmatpush1.xpose.msra.mxu0 0.0
      %3054 = vmatprep.subr.mxu0 0.0
      %3055 = vmatpush1.xpose.msra.mxu0 0.0
      %3056 = vmatprep.subr.mxu0 0.0
      %3057 = vmatpush1.xpose.msra.mxu0 0.0
      %3058 = vmatprep.subr.mxu0 0.0
      %3059 = vmatpush1.xpose.msra.mxu0 0.0
      %3060 = vmatprep.mubr.f32.mxu0 0.0
      %3061 = vmatmul.mubr.f32.gmra.mrb[0].mxu0 %v2991
      %v3062 = vpop.f32.mrb[0].mxu0
      %v3063 = vadd.f32 %v483, %v3062
      %v3064 = vpop.f32.mrb[0].mxu0
      %3065 = vdwg.mxu0
      %v3066 = vmul.f32 %v3063, 1.442695
      %v3067 = vpow.pop %v3066
      %v3068 = vsel %vm485, %v3067, 0.0
      %3069 = vadd.xlane.f32.xlu0 %v3068
      %v3070 = vpop.xlane.xlu0 %3069
      %v3071 = vrcp.pop %v3070
      %v3072 = vmul.f32 %v3067, %v3071
      %v3074 = vsel %vm485, %v3072, 0
      %3076 = vmatprep.subr.mxu0 0.0
      %3077 = vmatpush1.msra.mxu0 %v2987
      %3078 = vmatprep.subr.mxu0 0.0
      %3079 = vmatpush1.msra.mxu0 0.0
      %3080 = vmatprep.subr.mxu0 0.0
      %3081 = vmatpush1.msra.mxu0 0.0
      %3082 = vmatprep.subr.mxu0 0.0
      %3083 = vmatpush1.msra.mxu0 0.0
      %3084 = vmatprep.subr.mxu0 0.0
      %3085 = vmatpush1.msra.mxu0 0.0
      %3086 = vmatprep.subr.mxu0 0.0
      %3087 = vmatpush1.msra.mxu0 0.0
      %3088 = vmatprep.subr.mxu0 0.0
      %3089 = vmatpush1.msra.mxu0 0.0
      %3090 = vmatprep.subr.mxu0 0.0
      %3091 = vmatpush1.msra.mxu0 0.0
      %3092 = vmatprep.subr.mxu0 0.0
      %3093 = vmatpush1.msra.mxu0 0.0
      %3094 = vmatprep.subr.mxu0 0.0
      %3095 = vmatpush1.msra.mxu0 0.0
      %3096 = vmatprep.subr.mxu0 0.0
      %3097 = vmatpush1.msra.mxu0 0.0
      %3098 = vmatprep.subr.mxu0 0.0
      %3099 = vmatpush1.msra.mxu0 0.0
      %3100 = vmatprep.subr.mxu0 0.0
      %3101 = vmatpush1.msra.mxu0 0.0
      %3102 = vmatprep.subr.mxu0 0.0
      %3103 = vmatpush1.msra.mxu0 0.0
      %3104 = vmatprep.subr.mxu0 0.0
      %3105 = vmatpush1.msra.mxu0 0.0
      %3106 = vmatprep.subr.mxu0 0.0
      %3107 = vmatpush1.msra.mxu0 0.0
      %3108 = vmatprep.subr.mxu0 0.0
      %3109 = vmatpush1.msra.mxu0 0.0
      %3110 = vmatprep.subr.mxu0 0.0
      %3111 = vmatpush1.msra.mxu0 0.0
      %3112 = vmatprep.subr.mxu0 0.0
      %3113 = vmatpush1.msra.mxu0 0.0
      %3114 = vmatprep.subr.mxu0 0.0
      %3115 = vmatpush1.msra.mxu0 0.0
      %3116 = vmatprep.subr.mxu0 0.0
      %3117 = vmatpush1.msra.mxu0 0.0
      %3118 = vmatprep.subr.mxu0 0.0
      %3119 = vmatpush1.msra.mxu0 0.0
      %3120 = vmatprep.subr.mxu0 0.0
      %3121 = vmatpush1.msra.mxu0 0.0
      %3122 = vmatprep.subr.mxu0 0.0
      %3123 = vmatpush1.msra.mxu0 0.0
      %3124 = vmatprep.subr.mxu0 0.0
      %3125 = vmatpush1.msra.mxu0 0.0
      %3126 = vmatprep.subr.mxu0 0.0
      %3127 = vmatpush1.msra.mxu0 0.0
      %3128 = vmatprep.subr.mxu0 0.0
      %3129 = vmatpush1.msra.mxu0 0.0
      %3130 = vmatprep.subr.mxu0 0.0
      %3131 = vmatpush1.msra.mxu0 0.0
      %3132 = vmatprep.subr.mxu0 0.0
      %3133 = vmatpush1.msra.mxu0 0.0
      %3134 = vmatprep.subr.mxu0 0.0
      %3135 = vmatpush1.msra.mxu0 0.0
      %3136 = vmatprep.subr.mxu0 0.0
      %3137 = vmatpush1.msra.mxu0 0.0
      %3138 = vmatprep.subr.mxu0 0.0
      %3139 = vmatpush1.msra.mxu0 0.0
      %3140 = vmatprep.mubr.f32.mxu0 0.0
      %3141 = vmatmul.mubr.f32.gmra.mrb[0].mxu0 %v3074
      %v3142 = vpop.f32.mrb[0].mxu0
      %v3143 = vadd.f32 0.0, %v3142
      %v3144 = vpop.f32.mrb[0].mxu0
      %3145 = vdwg.mxu0
      %v3147 = vsel %vm485, %v3143, 0
      %3149 = vmatprep.subr.mxu0 0.0
      %3150 = vmatpush1.msra.mxu0 %v2755
      %3151 = vmatprep.subr.mxu0 0.0
      %3152 = vmatpush1.msra.mxu0 0.0
      %3153 = vmatprep.subr.mxu0 0.0
      %3154 = vmatpush1.msra.mxu0 0.0
      %3155 = vmatprep.subr.mxu0 0.0
      %3156 = vmatpush1.msra.mxu0 0.0
      %3157 = vmatprep.subr.mxu0 0.0
      %3158 = vmatpush1.msra.mxu0 0.0
      %3159 = vmatprep.subr.mxu0 0.0
      %3160 = vmatpush1.msra.mxu0 0.0
      %3161 = vmatprep.subr.mxu0 0.0
      %3162 = vmatpush1.msra.mxu0 0.0
      %3163 = vmatprep.subr.mxu0 0.0
      %3164 = vmatpush1.msra.mxu0 0.0
      %3165 = vmatprep.subr.mxu0 0.0
      %3166 = vmatpush1.msra.mxu0 0.0
      %3167 = vmatprep.subr.mxu0 0.0
      %3168 = vmatpush1.msra.mxu0 0.0
      %3169 = vmatprep.subr.mxu0 0.0
      %3170 = vmatpush1.msra.mxu0 0.0
      %3171 = vmatprep.subr.mxu0 0.0
      %3172 = vmatpush1.msra.mxu0 0.0
      %3173 = vmatprep.subr.mxu0 0.0
      %3174 = vmatpush1.msra.mxu0 0.0
      %3175 = vmatprep.subr.mxu0 0.0
      %3176 = vmatpush1.msra.mxu0 0.0
      %3177 = vmatprep.subr.mxu0 0.0
      %3178 = vmatpush1.msra.mxu0 0.0
      %3179 = vmatprep.subr.mxu0 0.0
      %3180 = vmatpush1.msra.mxu0 0.0
      %3181 = vmatprep.subr.mxu0 0.0
      %3182 = vmatpush1.msra.mxu0 0.0
      %3183 = vmatprep.subr.mxu0 0.0
      %3184 = vmatpush1.msra.mxu0 0.0
      %3185 = vmatprep.subr.mxu0 0.0
      %3186 = vmatpush1.msra.mxu0 0.0
      %3187 = vmatprep.subr.mxu0 0.0
      %3188 = vmatpush1.msra.mxu0 0.0
      %3189 = vmatprep.subr.mxu0 0.0
      %3190 = vmatpush1.msra.mxu0 0.0
      %3191 = vmatprep.subr.mxu0 0.0
      %3192 = vmatpush1.msra.mxu0 0.0
      %3193 = vmatprep.subr.mxu0 0.0
      %3194 = vmatpush1.msra.mxu0 0.0
      %3195 = vmatprep.subr.mxu0 0.0
      %3196 = vmatpush1.msra.mxu0 0.0
      %3197 = vmatprep.subr.mxu0 0.0
      %3198 = vmatpush1.msra.mxu0 0.0
      %3199 = vmatprep.subr.mxu0 0.0
      %3200 = vmatpush1.msra.mxu0 0.0
      %3201 = vmatprep.subr.mxu0 0.0
      %3202 = vmatpush1.msra.mxu0 0.0
      %3203 = vmatprep.subr.mxu0 0.0
      %3204 = vmatpush1.msra.mxu0 0.0
      %3205 = vmatprep.subr.mxu0 0.0
      %3206 = vmatpush1.msra.mxu0 0.0
      %3207 = vmatprep.subr.mxu0 0.0
      %3208 = vmatpush1.msra.mxu0 0.0
      %3209 = vmatprep.subr.mxu0 0.0
      %3210 = vmatpush1.msra.mxu0 0.0
      %3211 = vmatprep.subr.mxu0 0.0
      %3212 = vmatpush1.msra.mxu0 0.0
      %3213 = vmatprep.mubr.f32.mxu0 0.0
      %3214 = vmatmul.mubr.f32.gmra.mrb[0].mxu0 %v3147
      %v3215 = vpop.f32.mrb[0].mxu0
      %v3216 = vadd.f32 0.0, %v3215
      %v3217 = vpop.f32.mrb[0].mxu0
      %3218 = vdwg.mxu0
      %v3220 = vsel %vm485, %v2749, 0
      %3222 = vmatprep.subr.mxu0 0.0
      %3223 = vmatpush1.msra.mxu0 %v2358
      %3224 = vmatprep.subr.mxu0 0.0
      %3225 = vmatpush1.msra.mxu0 0.0
      %3226 = vmatprep.subr.mxu0 0.0
      %3227 = vmatpush1.msra.mxu0 0.0
      %3228 = vmatprep.subr.mxu0 0.0
      %3229 = vmatpush1.msra.mxu0 0.0
      %3230 = vmatprep.subr.mxu0 0.0
      %3231 = vmatpush1.msra.mxu0 0.0
      %3232 = vmatprep.subr.mxu0 0.0
      %3233 = vmatpush1.msra.mxu0 0.0
      %3234 = vmatprep.subr.mxu0 0.0
      %3235 = vmatpush1.msra.mxu0 0.0
      %3236 = vmatprep.subr.mxu0 0.0
      %3237 = vmatpush1.msra.mxu0 0.0
      %3238 = vmatprep.subr.mxu0 0.0
      %3239 = vmatpush1.msra.mxu0 0.0
      %3240 = vmatprep.subr.mxu0 0.0
      %3241 = vmatpush1.msra.mxu0 0.0
      %3242 = vmatprep.subr.mxu0 0.0
      %3243 = vmatpush1.msra.mxu0 0.0
      %3244 = vmatprep.subr.mxu0 0.0
      %3245 = vmatpush1.msra.mxu0 0.0
      %3246 = vmatprep.subr.mxu0 0.0
      %3247 = vmatpush1.msra.mxu0 0.0
      %3248 = vmatprep.subr.mxu0 0.0
      %3249 = vmatpush1.msra.mxu0 0.0
      %3250 = vmatprep.subr.mxu0 0.0
      %3251 = vmatpush1.msra.mxu0 0.0
      %3252 = vmatprep.subr.mxu0 0.0
      %3253 = vmatpush1.msra.mxu0 0.0
      %3254 = vmatprep.subr.mxu0 0.0
      %3255 = vmatpush1.msra.mxu0 0.0
      %3256 = vmatprep.subr.mxu0 0.0
      %3257 = vmatpush1.msra.mxu0 0.0
      %3258 = vmatprep.subr.mxu0 0.0
      %3259 = vmatpush1.msra.mxu0 0.0
      %3260 = vmatprep.subr.mxu0 0.0
      %3261 = vmatpush1.msra.mxu0 0.0
      %3262 = vmatprep.subr.mxu0 0.0
      %3263 = vmatpush1.msra.mxu0 0.0
      %3264 = vmatprep.subr.mxu0 0.0
      %3265 = vmatpush1.msra.mxu0 0.0
      %3266 = vmatprep.subr.mxu0 0.0
      %3267 = vmatpush1.msra.mxu0 0.0
      %3268 = vmatprep.subr.mxu0 0.0
      %3269 = vmatpush1.msra.mxu0 0.0
      %3270 = vmatprep.subr.mxu0 0.0
      %3271 = vmatpush1.msra.mxu0 0.0
      %3272 = vmatprep.subr.mxu0 0.0
      %3273 = vmatpush1.msra.mxu0 0.0
      %3274 = vmatprep.subr.mxu0 0.0
      %3275 = vmatpush1.msra.mxu0 0.0
      %3276 = vmatprep.subr.mxu0 0.0
      %3277 = vmatpush1.msra.mxu0 0.0
      %3278 = vmatprep.subr.mxu0 0.0
      %3279 = vmatpush1.msra.mxu0 0.0
      %3280 = vmatprep.subr.mxu0 0.0
      %3281 = vmatpush1.msra.mxu0 0.0
      %3282 = vmatprep.subr.mxu0 0.0
      %3283 = vmatpush1.msra.mxu0 0.0
      %3284 = vmatprep.subr.mxu0 0.0
      %3285 = vmatpush1.msra.mxu0 0.0
      %3286 = vmatprep.mubr.f32.mxu0 0.0
      %3287 = vmatmul.mubr.f32.gmra.mrb[0].mxu0 %v3220
      %v3288 = vpop.f32.mrb[0].mxu0
      %v3289 = vadd.f32 %v3216, %v3288
      %v3290 = vpop.f32.mrb[0].mxu0
      %3291 = vdwg.mxu0
      %v3292 = vld [vmem:[%s2354 + $0x10] sm:$0xff]
      %v3293 = vld [vmem:[%s2354 + $0x30] sm:$0xff]
      %v3294 = vld [vmem:[%s2354 + $0x50] sm:$0xff]
      %v3295 = vld [vmem:[%s2354 + $0x70] sm:$0xff]
      %v3296 = vld [vmem:[%s2354 + $0xe2] sm:$0x1]
      %v3297 = vlaneseq
      %v3298 = vshrl.u32 %v3297, 7
      %v3299 = vsub.s32 0, %v3298
      %v3300 = vrot.slane %v3296, %v3299
      %v3302 = vsel %vm213, %v3292, 0
      %3304 = vmatprep.subr.mxu0 0.0
      %3305 = vmatpush1.xpose.msra.mxu0 %v3302
      %3306 = vmatprep.subr.mxu0 0.0
      %3307 = vmatpush1.xpose.msra.mxu0 0.0
      %3308 = vmatprep.subr.mxu0 0.0
      %3309 = vmatpush1.xpose.msra.mxu0 0.0
      %3310 = vmatprep.subr.mxu0 0.0
      %3311 = vmatpush1.xpose.msra.mxu0 0.0
      %3312 = vmatprep.subr.mxu0 0.0
      %3313 = vmatpush1.xpose.msra.mxu0 0.0
      %3314 = vmatprep.subr.mxu0 0.0
      %3315 = vmatpush1.xpose.msra.mxu0 0.0
      %3316 = vmatprep.subr.mxu0 0.0
      %3317 = vmatpush1.xpose.msra.mxu0 0.0
      %3318 = vmatprep.subr.mxu0 0.0
      %3319 = vmatpush1.xpose.msra.mxu0 0.0
      %3320 = vmatprep.subr.mxu0 0.0
      %3321 = vmatpush1.xpose.msra.mxu0 0.0
      %3322 = vmatprep.subr.mxu0 0.0
      %3323 = vmatpush1.xpose.msra.mxu0 0.0
      %3324 = vmatprep.subr.mxu0 0.0
      %3325 = vmatpush1.xpose.msra.mxu0 0.0
      %3326 = vmatprep.subr.mxu0 0.0
      %3327 = vmatpush1.xpose.msra.mxu0 0.0
      %3328 = vmatprep.subr.mxu0 0.0
      %3329 = vmatpush1.xpose.msra.mxu0 0.0
      %3330 = vmatprep.subr.mxu0 0.0
      %3331 = vmatpush1.xpose.msra.mxu0 0.0
      %3332 = vmatprep.subr.mxu0 0.0
      %3333 = vmatpush1.xpose.msra.mxu0 0.0
      %3334 = vmatprep.subr.mxu0 0.0
      %3335 = vmatpush1.xpose.msra.mxu0 0.0
      %3336 = vmatprep.subr.mxu0 0.0
      %3337 = vmatpush1.xpose.msra.mxu0 0.0
      %3338 = vmatprep.subr.mxu0 0.0
      %3339 = vmatpush1.xpose.msra.mxu0 0.0
      %3340 = vmatprep.subr.mxu0 0.0
      %3341 = vmatpush1.xpose.msra.mxu0 0.0
      %3342 = vmatprep.subr.mxu0 0.0
      %3343 = vmatpush1.xpose.msra.mxu0 0.0
      %3344 = vmatprep.subr.mxu0 0.0
      %3345 = vmatpush1.xpose.msra.mxu0 0.0
      %3346 = vmatprep.subr.mxu0 0.0
      %3347 = vmatpush1.xpose.msra.mxu0 0.0
      %3348 = vmatprep.subr.mxu0 0.0
      %3349 = vmatpush1.xpose.msra.mxu0 0.0
      %3350 = vmatprep.subr.mxu0 0.0
      %3351 = vmatpush1.xpose.msra.mxu0 0.0
      %3352 = vmatprep.subr.mxu0 0.0
      %3353 = vmatpush1.xpose.msra.mxu0 0.0
      %3354 = vmatprep.subr.mxu0 0.0
      %3355 = vmatpush1.xpose.msra.mxu0 0.0
      %3356 = vmatprep.subr.mxu0 0.0
      %3357 = vmatpush1.xpose.msra.mxu0 0.0
      %3358 = vmatprep.subr.mxu0 0.0
      %3359 = vmatpush1.xpose.msra.mxu0 0.0
      %3360 = vmatprep.subr.mxu0 0.0
      %3361 = vmatpush1.xpose.msra.mxu0 0.0
      %3362 = vmatprep.subr.mxu0 0.0
      %3363 = vmatpush1.xpose.msra.mxu0 0.0
      %3364 = vmatprep.subr.mxu0 0.0
      %3365 = vmatpush1.xpose.msra.mxu0 0.0
      %3366 = vmatprep.subr.mxu0 0.0
      %3367 = vmatpush1.xpose.msra.mxu0 0.0
      %3368 = vmatprep.mubr.f32.mxu0 0.0
      %3369 = vmatmul.mubr.f32.gmra.mrb[0].mxu0 %v2365
      %v3370 = vpop.f32.mrb[0].mxu0
      %v3371 = vadd.f32 %v3300, %v3370
      %v3372 = vpop.f32.mrb[0].mxu0
      %3373 = vdwg.mxu0
      %v3374 = vld [vmem:[%s2354 + $0xe6] sm:$0x1]
      %v3375 = vlaneseq
      %v3376 = vshrl.u32 %v3375, 7
      %v3377 = vsub.s32 0, %v3376
      %v3378 = vrot.slane %v3374, %v3377
      %v3380 = vsel %vm213, %v3293, 0
      %3382 = vmatprep.subr.mxu0 0.0
      %3383 = vmatpush1.xpose.msra.mxu0 %v3380
      %3384 = vmatprep.subr.mxu0 0.0
      %3385 = vmatpush1.xpose.msra.mxu0 0.0
      %3386 = vmatprep.subr.mxu0 0.0
      %3387 = vmatpush1.xpose.msra.mxu0 0.0
      %3388 = vmatprep.subr.mxu0 0.0
      %3389 = vmatpush1.xpose.msra.mxu0 0.0
      %3390 = vmatprep.subr.mxu0 0.0
      %3391 = vmatpush1.xpose.msra.mxu0 0.0
      %3392 = vmatprep.subr.mxu0 0.0
      %3393 = vmatpush1.xpose.msra.mxu0 0.0
      %3394 = vmatprep.subr.mxu0 0.0
      %3395 = vmatpush1.xpose.msra.mxu0 0.0
      %3396 = vmatprep.subr.mxu0 0.0
      %3397 = vmatpush1.xpose.msra.mxu0 0.0
      %3398 = vmatprep.subr.mxu0 0.0
      %3399 = vmatpush1.xpose.msra.mxu0 0.0
      %3400 = vmatprep.subr.mxu0 0.0
      %3401 = vmatpush1.xpose.msra.mxu0 0.0
      %3402 = vmatprep.subr.mxu0 0.0
      %3403 = vmatpush1.xpose.msra.mxu0 0.0
      %3404 = vmatprep.subr.mxu0 0.0
      %3405 = vmatpush1.xpose.msra.mxu0 0.0
      %3406 = vmatprep.subr.mxu0 0.0
      %3407 = vmatpush1.xpose.msra.mxu0 0.0
      %3408 = vmatprep.subr.mxu0 0.0
      %3409 = vmatpush1.xpose.msra.mxu0 0.0
      %3410 = vmatprep.subr.mxu0 0.0
      %3411 = vmatpush1.xpose.msra.mxu0 0.0
      %3412 = vmatprep.subr.mxu0 0.0
      %3413 = vmatpush1.xpose.msra.mxu0 0.0
      %3414 = vmatprep.subr.mxu0 0.0
      %3415 = vmatpush1.xpose.msra.mxu0 0.0
      %3416 = vmatprep.subr.mxu0 0.0
      %3417 = vmatpush1.xpose.msra.mxu0 0.0
      %3418 = vmatprep.subr.mxu0 0.0
      %3419 = vmatpush1.xpose.msra.mxu0 0.0
      %3420 = vmatprep.subr.mxu0 0.0
      %3421 = vmatpush1.xpose.msra.mxu0 0.0
      %3422 = vmatprep.subr.mxu0 0.0
      %3423 = vmatpush1.xpose.msra.mxu0 0.0
      %3424 = vmatprep.subr.mxu0 0.0
      %3425 = vmatpush1.xpose.msra.mxu0 0.0
      %3426 = vmatprep.subr.mxu0 0.0
      %3427 = vmatpush1.xpose.msra.mxu0 0.0
      %3428 = vmatprep.subr.mxu0 0.0
      %3429 = vmatpush1.xpose.msra.mxu0 0.0
      %3430 = vmatprep.subr.mxu0 0.0
      %3431 = vmatpush1.xpose.msra.mxu0 0.0
      %3432 = vmatprep.subr.mxu0 0.0
      %3433 = vmatpush1.xpose.msra.mxu0 0.0
      %3434 = vmatprep.subr.mxu0 0.0
      %3435 = vmatpush1.xpose.msra.mxu0 0.0
      %3436 = vmatprep.subr.mxu0 0.0
      %3437 = vmatpush1.xpose.msra.mxu0 0.0
      %3438 = vmatprep.subr.mxu0 0.0
      %3439 = vmatpush1.xpose.msra.mxu0 0.0
      %3440 = vmatprep.subr.mxu0 0.0
      %3441 = vmatpush1.xpose.msra.mxu0 0.0
      %3442 = vmatprep.subr.mxu0 0.0
      %3443 = vmatpush1.xpose.msra.mxu0 0.0
      %3444 = vmatprep.subr.mxu0 0.0
      %3445 = vmatpush1.xpose.msra.mxu0 0.0
      %3446 = vmatprep.mubr.f32.mxu0 0.0
      %3447 = vmatmul.mubr.f32.gmra.mrb[0].mxu0 %v2365
      %v3448 = vpop.f32.mrb[0].mxu0
      %v3449 = vadd.f32 %v3378, %v3448
      %v3450 = vpop.f32.mrb[0].mxu0
      %3451 = vdwg.mxu0
      %v3452 = vld [vmem:[%s2354 + $0xea] sm:$0x1]
      %v3453 = vlaneseq
      %v3454 = vshrl.u32 %v3453, 7
      %v3455 = vsub.s32 0, %v3454
      %v3456 = vrot.slane %v3452, %v3455
      %v3458 = vsel %vm213, %v3294, 0
      %3460 = vmatprep.subr.mxu0 0.0
      %3461 = vmatpush1.xpose.msra.mxu0 %v3458
      %3462 = vmatprep.subr.mxu0 0.0
      %3463 = vmatpush1.xpose.msra.mxu0 0.0
      %3464 = vmatprep.subr.mxu0 0.0
      %3465 = vmatpush1.xpose.msra.mxu0 0.0
      %3466 = vmatprep.subr.mxu0 0.0
      %3467 = vmatpush1.xpose.msra.mxu0 0.0
      %3468 = vmatprep.subr.mxu0 0.0
      %3469 = vmatpush1.xpose.msra.mxu0 0.0
      %3470 = vmatprep.subr.mxu0 0.0
      %3471 = vmatpush1.xpose.msra.mxu0 0.0
      %3472 = vmatprep.subr.mxu0 0.0
      %3473 = vmatpush1.xpose.msra.mxu0 0.0
      %3474 = vmatprep.subr.mxu0 0.0
      %3475 = vmatpush1.xpose.msra.mxu0 0.0
      %3476 = vmatprep.subr.mxu0 0.0
      %3477 = vmatpush1.xpose.msra.mxu0 0.0
      %3478 = vmatprep.subr.mxu0 0.0
      %3479 = vmatpush1.xpose.msra.mxu0 0.0
      %3480 = vmatprep.subr.mxu0 0.0
      %3481 = vmatpush1.xpose.msra.mxu0 0.0
      %3482 = vmatprep.subr.mxu0 0.0
      %3483 = vmatpush1.xpose.msra.mxu0 0.0
      %3484 = vmatprep.subr.mxu0 0.0
      %3485 = vmatpush1.xpose.msra.mxu0 0.0
      %3486 = vmatprep.subr.mxu0 0.0
      %3487 = vmatpush1.xpose.msra.mxu0 0.0
      %3488 = vmatprep.subr.mxu0 0.0
      %3489 = vmatpush1.xpose.msra.mxu0 0.0
      %3490 = vmatprep.subr.mxu0 0.0
      %3491 = vmatpush1.xpose.msra.mxu0 0.0
      %3492 = vmatprep.subr.mxu0 0.0
      %3493 = vmatpush1.xpose.msra.mxu0 0.0
      %3494 = vmatprep.subr.mxu0 0.0
      %3495 = vmatpush1.xpose.msra.mxu0 0.0
      %3496 = vmatprep.subr.mxu0 0.0
      %3497 = vmatpush1.xpose.msra.mxu0 0.0
      %3498 = vmatprep.subr.mxu0 0.0
      %3499 = vmatpush1.xpose.msra.mxu0 0.0
      %3500 = vmatprep.subr.mxu0 0.0
      %3501 = vmatpush1.xpose.msra.mxu0 0.0
      %3502 = vmatprep.subr.mxu0 0.0
      %3503 = vmatpush1.xpose.msra.mxu0 0.0
      %3504 = vmatprep.subr.mxu0 0.0
      %3505 = vmatpush1.xpose.msra.mxu0 0.0
      %3506 = vmatprep.subr.mxu0 0.0
      %3507 = vmatpush1.xpose.msra.mxu0 0.0
      %3508 = vmatprep.subr.mxu0 0.0
      %3509 = vmatpush1.xpose.msra.mxu0 0.0
      %3510 = vmatprep.subr.mxu0 0.0
      %3511 = vmatpush1.xpose.msra.mxu0 0.0
      %3512 = vmatprep.subr.mxu0 0.0
      %3513 = vmatpush1.xpose.msra.mxu0 0.0
      %3514 = vmatprep.subr.mxu0 0.0
      %3515 = vmatpush1.xpose.msra.mxu0 0.0
      %3516 = vmatprep.subr.mxu0 0.0
      %3517 = vmatpush1.xpose.msra.mxu0 0.0
      %3518 = vmatprep.subr.mxu0 0.0
      %3519 = vmatpush1.xpose.msra.mxu0 0.0
      %3520 = vmatprep.subr.mxu0 0.0
      %3521 = vmatpush1.xpose.msra.mxu0 0.0
      %3522 = vmatprep.subr.mxu0 0.0
      %3523 = vmatpush1.xpose.msra.mxu0 0.0
      %3524 = vmatprep.mubr.f32.mxu0 0.0
      %3525 = vmatmul.mubr.f32.gmra.mrb[0].mxu0 %v2365
      %v3526 = vpop.f32.mrb[0].mxu0
      %v3527 = vadd.f32 %v3456, %v3526
      %v3528 = vpop.f32.mrb[0].mxu0
      %3529 = vdwg.mxu0
      %v3531 = vsel %vm485, %v3371, 0
      %v3534 = vsel %vm485, %v3449, 0
      %3536 = vmatprep.subr.mxu0 0.0
      %3537 = vmatpush1.xpose.msra.mxu0 %v3534
      %3538 = vmatprep.subr.mxu0 0.0
      %3539 = vmatpush1.xpose.msra.mxu0 0.0
      %3540 = vmatprep.subr.mxu0 0.0
      %3541 = vmatpush1.xpose.msra.mxu0 0.0
      %3542 = vmatprep.subr.mxu0 0.0
      %3543 = vmatpush1.xpose.msra.mxu0 0.0
      %3544 = vmatprep.subr.mxu0 0.0
      %3545 = vmatpush1.xpose.msra.mxu0 0.0
      %3546 = vmatprep.subr.mxu0 0.0
      %3547 = vmatpush1.xpose.msra.mxu0 0.0
      %3548 = vmatprep.subr.mxu0 0.0
      %3549 = vmatpush1.xpose.msra.mxu0 0.0
      %3550 = vmatprep.subr.mxu0 0.0
      %3551 = vmatpush1.xpose.msra.mxu0 0.0
      %3552 = vmatprep.subr.mxu0 0.0
      %3553 = vmatpush1.xpose.msra.mxu0 0.0
      %3554 = vmatprep.subr.mxu0 0.0
      %3555 = vmatpush1.xpose.msra.mxu0 0.0
      %3556 = vmatprep.subr.mxu0 0.0
      %3557 = vmatpush1.xpose.msra.mxu0 0.0
      %3558 = vmatprep.subr.mxu0 0.0
      %3559 = vmatpush1.xpose.msra.mxu0 0.0
      %3560 = vmatprep.subr.mxu0 0.0
      %3561 = vmatpush1.xpose.msra.mxu0 0.0
      %3562 = vmatprep.subr.mxu0 0.0
      %3563 = vmatpush1.xpose.msra.mxu0 0.0
      %3564 = vmatprep.subr.mxu0 0.0
      %3565 = vmatpush1.xpose.msra.mxu0 0.0
      %3566 = vmatprep.subr.mxu0 0.0
      %3567 = vmatpush1.xpose.msra.mxu0 0.0
      %3568 = vmatprep.subr.mxu0 0.0
      %3569 = vmatpush1.xpose.msra.mxu0 0.0
      %3570 = vmatprep.subr.mxu0 0.0
      %3571 = vmatpush1.xpose.msra.mxu0 0.0
      %3572 = vmatprep.subr.mxu0 0.0
      %3573 = vmatpush1.xpose.msra.mxu0 0.0
      %3574 = vmatprep.subr.mxu0 0.0
      %3575 = vmatpush1.xpose.msra.mxu0 0.0
      %3576 = vmatprep.subr.mxu0 0.0
      %3577 = vmatpush1.xpose.msra.mxu0 0.0
      %3578 = vmatprep.subr.mxu0 0.0
      %3579 = vmatpush1.xpose.msra.mxu0 0.0
      %3580 = vmatprep.subr.mxu0 0.0
      %3581 = vmatpush1.xpose.msra.mxu0 0.0
      %3582 = vmatprep.subr.mxu0 0.0
      %3583 = vmatpush1.xpose.msra.mxu0 0.0
      %3584 = vmatprep.subr.mxu0 0.0
      %3585 = vmatpush1.xpose.msra.mxu0 0.0
      %3586 = vmatprep.subr.mxu0 0.0
      %3587 = vmatpush1.xpose.msra.mxu0 0.0
      %3588 = vmatprep.subr.mxu0 0.0
      %3589 = vmatpush1.xpose.msra.mxu0 0.0
      %3590 = vmatprep.subr.mxu0 0.0
      %3591 = vmatpush1.xpose.msra.mxu0 0.0
      %3592 = vmatprep.subr.mxu0 0.0
      %3593 = vmatpush1.xpose.msra.mxu0 0.0
      %3594 = vmatprep.subr.mxu0 0.0
      %3595 = vmatpush1.xpose.msra.mxu0 0.0
      %3596 = vmatprep.subr.mxu0 0.0
      %3597 = vmatpush1.xpose.msra.mxu0 0.0
      %3598 = vmatprep.subr.mxu0 0.0
      %3599 = vmatpush1.xpose.msra.mxu0 0.0
      %3600 = vmatprep.mubr.f32.mxu0 0.0
      %3601 = vmatmul.mubr.f32.gmra.mrb[0].mxu0 %v3531
      %v3602 = vpop.f32.mrb[0].mxu0
      %v3603 = vadd.f32 %v483, %v3602
      %v3604 = vpop.f32.mrb[0].mxu0
      %3605 = vdwg.mxu0
      %v3606 = vmul.f32 %v3603, 1.442695
      %v3607 = vpow.pop %v3606
      %v3608 = vsel %vm485, %v3607, 0.0
      %3609 = vadd.xlane.f32.xlu0 %v3608
      %v3610 = vpop.xlane.xlu0 %3609
      %v3611 = vrcp.pop %v3610
      %v3612 = vmul.f32 %v3607, %v3611
      %v3614 = vsel %vm485, %v3612, 0
      %3616 = vmatprep.subr.mxu0 0.0
      %3617 = vmatpush1.msra.mxu0 %v3527
      %3618 = vmatprep.subr.mxu0 0.0
      %3619 = vmatpush1.msra.mxu0 0.0
      %3620 = vmatprep.subr.mxu0 0.0
      %3621 = vmatpush1.msra.mxu0 0.0
      %3622 = vmatprep.subr.mxu0 0.0
      %3623 = vmatpush1.msra.mxu0 0.0
      %3624 = vmatprep.subr.mxu0 0.0
      %3625 = vmatpush1.msra.mxu0 0.0
      %3626 = vmatprep.subr.mxu0 0.0
      %3627 = vmatpush1.msra.mxu0 0.0
      %3628 = vmatprep.subr.mxu0 0.0
      %3629 = vmatpush1.msra.mxu0 0.0
      %3630 = vmatprep.subr.mxu0 0.0
      %3631 = vmatpush1.msra.mxu0 0.0
      %3632 = vmatprep.subr.mxu0 0.0
      %3633 = vmatpush1.msra.mxu0 0.0
      %3634 = vmatprep.subr.mxu0 0.0
      %3635 = vmatpush1.msra.mxu0 0.0
      %3636 = vmatprep.subr.mxu0 0.0
      %3637 = vmatpush1.msra.mxu0 0.0
      %3638 = vmatprep.subr.mxu0 0.0
      %3639 = vmatpush1.msra.mxu0 0.0
      %3640 = vmatprep.subr.mxu0 0.0
      %3641 = vmatpush1.msra.mxu0 0.0
      %3642 = vmatprep.subr.mxu0 0.0
      %3643 = vmatpush1.msra.mxu0 0.0
      %3644 = vmatprep.subr.mxu0 0.0
      %3645 = vmatpush1.msra.mxu0 0.0
      %3646 = vmatprep.subr.mxu0 0.0
      %3647 = vmatpush1.msra.mxu0 0.0
      %3648 = vmatprep.subr.mxu0 0.0
      %3649 = vmatpush1.msra.mxu0 0.0
      %3650 = vmatprep.subr.mxu0 0.0
      %3651 = vmatpush1.msra.mxu0 0.0
      %3652 = vmatprep.subr.mxu0 0.0
      %3653 = vmatpush1.msra.mxu0 0.0
      %3654 = vmatprep.subr.mxu0 0.0
      %3655 = vmatpush1.msra.mxu0 0.0
      %3656 = vmatprep.subr.mxu0 0.0
      %3657 = vmatpush1.msra.mxu0 0.0
      %3658 = vmatprep.subr.mxu0 0.0
      %3659 = vmatpush1.msra.mxu0 0.0
      %3660 = vmatprep.subr.mxu0 0.0
      %3661 = vmatpush1.msra.mxu0 0.0
      %3662 = vmatprep.subr.mxu0 0.0
      %3663 = vmatpush1.msra.mxu0 0.0
      %3664 = vmatprep.subr.mxu0 0.0
      %3665 = vmatpush1.msra.mxu0 0.0
      %3666 = vmatprep.subr.mxu0 0.0
      %3667 = vmatpush1.msra.mxu0 0.0
      %3668 = vmatprep.subr.mxu0 0.0
      %3669 = vmatpush1.msra.mxu0 0.0
      %3670 = vmatprep.subr.mxu0 0.0
      %3671 = vmatpush1.msra.mxu0 0.0
      %3672 = vmatprep.subr.mxu0 0.0
      %3673 = vmatpush1.msra.mxu0 0.0
      %3674 = vmatprep.subr.mxu0 0.0
      %3675 = vmatpush1.msra.mxu0 0.0
      %3676 = vmatprep.subr.mxu0 0.0
      %3677 = vmatpush1.msra.mxu0 0.0
      %3678 = vmatprep.subr.mxu0 0.0
      %3679 = vmatpush1.msra.mxu0 0.0
      %3680 = vmatprep.mubr.f32.mxu0 0.0
      %3681 = vmatmul.mubr.f32.gmra.mrb[0].mxu0 %v3614
      %v3682 = vpop.f32.mrb[0].mxu0
      %v3683 = vadd.f32 0.0, %v3682
      %v3684 = vpop.f32.mrb[0].mxu0
      %3685 = vdwg.mxu0
      %v3687 = vsel %vm485, %v3683, 0
      %3689 = vmatprep.subr.mxu0 0.0
      %3690 = vmatpush1.msra.mxu0 %v3295
      %3691 = vmatprep.subr.mxu0 0.0
      %3692 = vmatpush1.msra.mxu0 0.0
      %3693 = vmatprep.subr.mxu0 0.0
      %3694 = vmatpush1.msra.mxu0 0.0
      %3695 = vmatprep.subr.mxu0 0.0
      %3696 = vmatpush1.msra.mxu0 0.0
      %3697 = vmatprep.subr.mxu0 0.0
      %3698 = vmatpush1.msra.mxu0 0.0
      %3699 = vmatprep.subr.mxu0 0.0
      %3700 = vmatpush1.msra.mxu0 0.0
      %3701 = vmatprep.subr.mxu0 0.0
      %3702 = vmatpush1.msra.mxu0 0.0
      %3703 = vmatprep.subr.mxu0 0.0
      %3704 = vmatpush1.msra.mxu0 0.0
      %3705 = vmatprep.subr.mxu0 0.0
      %3706 = vmatpush1.msra.mxu0 0.0
      %3707 = vmatprep.subr.mxu0 0.0
      %3708 = vmatpush1.msra.mxu0 0.0
      %3709 = vmatprep.subr.mxu0 0.0
      %3710 = vmatpush1.msra.mxu0 0.0
      %3711 = vmatprep.subr.mxu0 0.0
      %3712 = vmatpush1.msra.mxu0 0.0
      %3713 = vmatprep.subr.mxu0 0.0
      %3714 = vmatpush1.msra.mxu0 0.0
      %3715 = vmatprep.subr.mxu0 0.0
      %3716 = vmatpush1.msra.mxu0 0.0
      %3717 = vmatprep.subr.mxu0 0.0
      %3718 = vmatpush1.msra.mxu0 0.0
      %3719 = vmatprep.subr.mxu0 0.0
      %3720 = vmatpush1.msra.mxu0 0.0
      %3721 = vmatprep.subr.mxu0 0.0
      %3722 = vmatpush1.msra.mxu0 0.0
      %3723 = vmatprep.subr.mxu0 0.0
      %3724 = vmatpush1.msra.mxu0 0.0
      %3725 = vmatprep.subr.mxu0 0.0
      %3726 = vmatpush1.msra.mxu0 0.0
      %3727 = vmatprep.subr.mxu0 0.0
      %3728 = vmatpush1.msra.mxu0 0.0
      %3729 = vmatprep.subr.mxu0 0.0
      %3730 = vmatpush1.msra.mxu0 0.0
      %3731 = vmatprep.subr.mxu0 0.0
      %3732 = vmatpush1.msra.mxu0 0.0
      %3733 = vmatprep.subr.mxu0 0.0
      %3734 = vmatpush1.msra.mxu0 0.0
      %3735 = vmatprep.subr.mxu0 0.0
      %3736 = vmatpush1.msra.mxu0 0.0
      %3737 = vmatprep.subr.mxu0 0.0
      %3738 = vmatpush1.msra.mxu0 0.0
      %3739 = vmatprep.subr.mxu0 0.0
      %3740 = vmatpush1.msra.mxu0 0.0
      %3741 = vmatprep.subr.mxu0 0.0
      %3742 = vmatpush1.msra.mxu0 0.0
      %3743 = vmatprep.subr.mxu0 0.0
      %3744 = vmatpush1.msra.mxu0 0.0
      %3745 = vmatprep.subr.mxu0 0.0
      %3746 = vmatpush1.msra.mxu0 0.0
      %3747 = vmatprep.subr.mxu0 0.0
      %3748 = vmatpush1.msra.mxu0 0.0
      %3749 = vmatprep.subr.mxu0 0.0
      %3750 = vmatpush1.msra.mxu0 0.0
      %3751 = vmatprep.subr.mxu0 0.0
      %3752 = vmatpush1.msra.mxu0 0.0
      %3753 = vmatprep.mubr.f32.mxu0 0.0
      %3754 = vmatmul.mubr.f32.gmra.mrb[0].mxu0 %v3687
      %v3755 = vpop.f32.mrb[0].mxu0
      %v3756 = vadd.f32 0.0, %v3755
      %v3757 = vpop.f32.mrb[0].mxu0
      %3758 = vdwg.mxu0
      %v3759 = vadd.f32 %v3289, %v3756
      %v3760 = vld [vmem:[%s2354 + $0x18] sm:$0xff]
      %v3761 = vld [vmem:[%s2354 + $0x38] sm:$0xff]
      %v3762 = vld [vmem:[%s2354 + $0x58] sm:$0xff]
      %v3763 = vld [vmem:[%s2354 + $0x78] sm:$0xff]
      %v3764 = vld [vmem:[%s2354 + $0xe3] sm:$0x1]
      %v3765 = vlaneseq
      %v3766 = vshrl.u32 %v3765, 7
      %v3767 = vsub.s32 0, %v3766
      %v3768 = vrot.slane %v3764, %v3767
      %v3770 = vsel %vm213, %v3760, 0
      %3772 = vmatprep.subr.mxu0 0.0
      %3773 = vmatpush1.xpose.msra.mxu0 %v3770
      %3774 = vmatprep.subr.mxu0 0.0
      %3775 = vmatpush1.xpose.msra.mxu0 0.0
      %3776 = vmatprep.subr.mxu0 0.0
      %3777 = vmatpush1.xpose.msra.mxu0 0.0
      %3778 = vmatprep.subr.mxu0 0.0
      %3779 = vmatpush1.xpose.msra.mxu0 0.0
      %3780 = vmatprep.subr.mxu0 0.0
      %3781 = vmatpush1.xpose.msra.mxu0 0.0
      %3782 = vmatprep.subr.mxu0 0.0
      %3783 = vmatpush1.xpose.msra.mxu0 0.0
      %3784 = vmatprep.subr.mxu0 0.0
      %3785 = vmatpush1.xpose.msra.mxu0 0.0
      %3786 = vmatprep.subr.mxu0 0.0
      %3787 = vmatpush1.xpose.msra.mxu0 0.0
      %3788 = vmatprep.subr.mxu0 0.0
      %3789 = vmatpush1.xpose.msra.mxu0 0.0
      %3790 = vmatprep.subr.mxu0 0.0
      %3791 = vmatpush1.xpose.msra.mxu0 0.0
      %3792 = vmatprep.subr.mxu0 0.0
      %3793 = vmatpush1.xpose.msra.mxu0 0.0
      %3794 = vmatprep.subr.mxu0 0.0
      %3795 = vmatpush1.xpose.msra.mxu0 0.0
      %3796 = vmatprep.subr.mxu0 0.0
      %3797 = vmatpush1.xpose.msra.mxu0 0.0
      %3798 = vmatprep.subr.mxu0 0.0
      %3799 = vmatpush1.xpose.msra.mxu0 0.0
      %3800 = vmatprep.subr.mxu0 0.0
      %3801 = vmatpush1.xpose.msra.mxu0 0.0
      %3802 = vmatprep.subr.mxu0 0.0
      %3803 = vmatpush1.xpose.msra.mxu0 0.0
      %3804 = vmatprep.subr.mxu0 0.0
      %3805 = vmatpush1.xpose.msra.mxu0 0.0
      %3806 = vmatprep.subr.mxu0 0.0
      %3807 = vmatpush1.xpose.msra.mxu0 0.0
      %3808 = vmatprep.subr.mxu0 0.0
      %3809 = vmatpush1.xpose.msra.mxu0 0.0
      %3810 = vmatprep.subr.mxu0 0.0
      %3811 = vmatpush1.xpose.msra.mxu0 0.0
      %3812 = vmatprep.subr.mxu0 0.0
      %3813 = vmatpush1.xpose.msra.mxu0 0.0
      %3814 = vmatprep.subr.mxu0 0.0
      %3815 = vmatpush1.xpose.msra.mxu0 0.0
      %3816 = vmatprep.subr.mxu0 0.0
      %3817 = vmatpush1.xpose.msra.mxu0 0.0
      %3818 = vmatprep.subr.mxu0 0.0
      %3819 = vmatpush1.xpose.msra.mxu0 0.0
      %3820 = vmatprep.subr.mxu0 0.0
      %3821 = vmatpush1.xpose.msra.mxu0 0.0
      %3822 = vmatprep.subr.mxu0 0.0
      %3823 = vmatpush1.xpose.msra.mxu0 0.0
      %3824 = vmatprep.subr.mxu0 0.0
      %3825 = vmatpush1.xpose.msra.mxu0 0.0
      %3826 = vmatprep.subr.mxu0 0.0
      %3827 = vmatpush1.xpose.msra.mxu0 0.0
      %3828 = vmatprep.subr.mxu0 0.0
      %3829 = vmatpush1.xpose.msra.mxu0 0.0
      %3830 = vmatprep.subr.mxu0 0.0
      %3831 = vmatpush1.xpose.msra.mxu0 0.0
      %3832 = vmatprep.subr.mxu0 0.0
      %3833 = vmatpush1.xpose.msra.mxu0 0.0
      %3834 = vmatprep.subr.mxu0 0.0
      %3835 = vmatpush1.xpose.msra.mxu0 0.0
      %3836 = vmatprep.mubr.f32.mxu0 0.0
      %3837 = vmatmul.mubr.f32.gmra.mrb[0].mxu0 %v2365
      %v3838 = vpop.f32.mrb[0].mxu0
      %v3839 = vadd.f32 %v3768, %v3838
      %v3840 = vpop.f32.mrb[0].mxu0
      %3841 = vdwg.mxu0
      %v3842 = vld [vmem:[%s2354 + $0xe7] sm:$0x1]
      %v3843 = vlaneseq
      %v3844 = vshrl.u32 %v3843, 7
      %v3845 = vsub.s32 0, %v3844
      %v3846 = vrot.slane %v3842, %v3845
      %v3848 = vsel %vm213, %v3761, 0
      %3850 = vmatprep.subr.mxu0 0.0
      %3851 = vmatpush1.xpose.msra.mxu0 %v3848
      %3852 = vmatprep.subr.mxu0 0.0
      %3853 = vmatpush1.xpose.msra.mxu0 0.0
      %3854 = vmatprep.subr.mxu0 0.0
      %3855 = vmatpush1.xpose.msra.mxu0 0.0
      %3856 = vmatprep.subr.mxu0 0.0
      %3857 = vmatpush1.xpose.msra.mxu0 0.0
      %3858 = vmatprep.subr.mxu0 0.0
      %3859 = vmatpush1.xpose.msra.mxu0 0.0
      %3860 = vmatprep.subr.mxu0 0.0
      %3861 = vmatpush1.xpose.msra.mxu0 0.0
      %3862 = vmatprep.subr.mxu0 0.0
      %3863 = vmatpush1.xpose.msra.mxu0 0.0
      %3864 = vmatprep.subr.mxu0 0.0
      %3865 = vmatpush1.xpose.msra.mxu0 0.0
      %3866 = vmatprep.subr.mxu0 0.0
      %3867 = vmatpush1.xpose.msra.mxu0 0.0
      %3868 = vmatprep.subr.mxu0 0.0
      %3869 = vmatpush1.xpose.msra.mxu0 0.0
      %3870 = vmatprep.subr.mxu0 0.0
      %3871 = vmatpush1.xpose.msra.mxu0 0.0
      %3872 = vmatprep.subr.mxu0 0.0
      %3873 = vmatpush1.xpose.msra.mxu0 0.0
      %3874 = vmatprep.subr.mxu0 0.0
      %3875 = vmatpush1.xpose.msra.mxu0 0.0
      %3876 = vmatprep.subr.mxu0 0.0
      %3877 = vmatpush1.xpose.msra.mxu0 0.0
      %3878 = vmatprep.subr.mxu0 0.0
      %3879 = vmatpush1.xpose.msra.mxu0 0.0
      %3880 = vmatprep.subr.mxu0 0.0
      %3881 = vmatpush1.xpose.msra.mxu0 0.0
      %3882 = vmatprep.subr.mxu0 0.0
      %3883 = vmatpush1.xpose.msra.mxu0 0.0
      %3884 = vmatprep.subr.mxu0 0.0
      %3885 = vmatpush1.xpose.msra.mxu0 0.0
      %3886 = vmatprep.subr.mxu0 0.0
      %3887 = vmatpush1.xpose.msra.mxu0 0.0
      %3888 = vmatprep.subr.mxu0 0.0
      %3889 = vmatpush1.xpose.msra.mxu0 0.0
      %3890 = vmatprep.subr.mxu0 0.0
      %3891 = vmatpush1.xpose.msra.mxu0 0.0
      %3892 = vmatprep.subr.mxu0 0.0
      %3893 = vmatpush1.xpose.msra.mxu0 0.0
      %3894 = vmatprep.subr.mxu0 0.0
      %3895 = vmatpush1.xpose.msra.mxu0 0.0
      %3896 = vmatprep.subr.mxu0 0.0
      %3897 = vmatpush1.xpose.msra.mxu0 0.0
      %3898 = vmatprep.subr.mxu0 0.0
      %3899 = vmatpush1.xpose.msra.mxu0 0.0
      %3900 = vmatprep.subr.mxu0 0.0
      %3901 = vmatpush1.xpose.msra.mxu0 0.0
      %3902 = vmatprep.subr.mxu0 0.0
      %3903 = vmatpush1.xpose.msra.mxu0 0.0
      %3904 = vmatprep.subr.mxu0 0.0
      %3905 = vmatpush1.xpose.msra.mxu0 0.0
      %3906 = vmatprep.subr.mxu0 0.0
      %3907 = vmatpush1.xpose.msra.mxu0 0.0
      %3908 = vmatprep.subr.mxu0 0.0
      %3909 = vmatpush1.xpose.msra.mxu0 0.0
      %3910 = vmatprep.subr.mxu0 0.0
      %3911 = vmatpush1.xpose.msra.mxu0 0.0
      %3912 = vmatprep.subr.mxu0 0.0
      %3913 = vmatpush1.xpose.msra.mxu0 0.0
      %3914 = vmatprep.mubr.f32.mxu0 0.0
      %3915 = vmatmul.mubr.f32.gmra.mrb[0].mxu0 %v2365
      %v3916 = vpop.f32.mrb[0].mxu0
      %v3917 = vadd.f32 %v3846, %v3916
      %v3918 = vpop.f32.mrb[0].mxu0
      %3919 = vdwg.mxu0
      %v3920 = vld [vmem:[%s2354 + $0xeb] sm:$0x1]
      %v3921 = vlaneseq
      %v3922 = vshrl.u32 %v3921, 7
      %v3923 = vsub.s32 0, %v3922
      %v3924 = vrot.slane %v3920, %v3923
      %v3926 = vsel %vm213, %v3762, 0
      %3928 = vmatprep.subr.mxu0 0.0
      %3929 = vmatpush1.xpose.msra.mxu0 %v3926
      %3930 = vmatprep.subr.mxu0 0.0
      %3931 = vmatpush1.xpose.msra.mxu0 0.0
      %3932 = vmatprep.subr.mxu0 0.0
      %3933 = vmatpush1.xpose.msra.mxu0 0.0
      %3934 = vmatprep.subr.mxu0 0.0
      %3935 = vmatpush1.xpose.msra.mxu0 0.0
      %3936 = vmatprep.subr.mxu0 0.0
      %3937 = vmatpush1.xpose.msra.mxu0 0.0
      %3938 = vmatprep.subr.mxu0 0.0
      %3939 = vmatpush1.xpose.msra.mxu0 0.0
      %3940 = vmatprep.subr.mxu0 0.0
      %3941 = vmatpush1.xpose.msra.mxu0 0.0
      %3942 = vmatprep.subr.mxu0 0.0
      %3943 = vmatpush1.xpose.msra.mxu0 0.0
      %3944 = vmatprep.subr.mxu0 0.0
      %3945 = vmatpush1.xpose.msra.mxu0 0.0
      %3946 = vmatprep.subr.mxu0 0.0
      %3947 = vmatpush1.xpose.msra.mxu0 0.0
      %3948 = vmatprep.subr.mxu0 0.0
      %3949 = vmatpush1.xpose.msra.mxu0 0.0
      %3950 = vmatprep.subr.mxu0 0.0
      %3951 = vmatpush1.xpose.msra.mxu0 0.0
      %3952 = vmatprep.subr.mxu0 0.0
      %3953 = vmatpush1.xpose.msra.mxu0 0.0
      %3954 = vmatprep.subr.mxu0 0.0
      %3955 = vmatpush1.xpose.msra.mxu0 0.0
      %3956 = vmatprep.subr.mxu0 0.0
      %3957 = vmatpush1.xpose.msra.mxu0 0.0
      %3958 = vmatprep.subr.mxu0 0.0
      %3959 = vmatpush1.xpose.msra.mxu0 0.0
      %3960 = vmatprep.subr.mxu0 0.0
      %3961 = vmatpush1.xpose.msra.mxu0 0.0
      %3962 = vmatprep.subr.mxu0 0.0
      %3963 = vmatpush1.xpose.msra.mxu0 0.0
      %3964 = vmatprep.subr.mxu0 0.0
      %3965 = vmatpush1.xpose.msra.mxu0 0.0
      %3966 = vmatprep.subr.mxu0 0.0
      %3967 = vmatpush1.xpose.msra.mxu0 0.0
      %3968 = vmatprep.subr.mxu0 0.0
      %3969 = vmatpush1.xpose.msra.mxu0 0.0
      %3970 = vmatprep.subr.mxu0 0.0
      %3971 = vmatpush1.xpose.msra.mxu0 0.0
      %3972 = vmatprep.subr.mxu0 0.0
      %3973 = vmatpush1.xpose.msra.mxu0 0.0
      %3974 = vmatprep.subr.mxu0 0.0
      %3975 = vmatpush1.xpose.msra.mxu0 0.0
      %3976 = vmatprep.subr.mxu0 0.0
      %3977 = vmatpush1.xpose.msra.mxu0 0.0
      %3978 = vmatprep.subr.mxu0 0.0
      %3979 = vmatpush1.xpose.msra.mxu0 0.0
      %3980 = vmatprep.subr.mxu0 0.0
      %3981 = vmatpush1.xpose.msra.mxu0 0.0
      %3982 = vmatprep.subr.mxu0 0.0
      %3983 = vmatpush1.xpose.msra.mxu0 0.0
      %3984 = vmatprep.subr.mxu0 0.0
      %3985 = vmatpush1.xpose.msra.mxu0 0.0
      %3986 = vmatprep.subr.mxu0 0.0
      %3987 = vmatpush1.xpose.msra.mxu0 0.0
      %3988 = vmatprep.subr.mxu0 0.0
      %3989 = vmatpush1.xpose.msra.mxu0 0.0
      %3990 = vmatprep.subr.mxu0 0.0
      %3991 = vmatpush1.xpose.msra.mxu0 0.0
      %3992 = vmatprep.mubr.f32.mxu0 0.0
      %3993 = vmatmul.mubr.f32.gmra.mrb[0].mxu0 %v2365
      %v3994 = vpop.f32.mrb[0].mxu0
      %v3995 = vadd.f32 %v3924, %v3994
      %v3996 = vpop.f32.mrb[0].mxu0
      %3997 = vdwg.mxu0
      %v3999 = vsel %vm485, %v3839, 0
      %v4002 = vsel %vm485, %v3917, 0
      %4004 = vmatprep.subr.mxu0 0.0
      %4005 = vmatpush1.xpose.msra.mxu0 %v4002
      %4006 = vmatprep.subr.mxu0 0.0
      %4007 = vmatpush1.xpose.msra.mxu0 0.0
      %4008 = vmatprep.subr.mxu0 0.0
      %4009 = vmatpush1.xpose.msra.mxu0 0.0
      %4010 = vmatprep.subr.mxu0 0.0
      %4011 = vmatpush1.xpose.msra.mxu0 0.0
      %4012 = vmatprep.subr.mxu0 0.0
      %4013 = vmatpush1.xpose.msra.mxu0 0.0
      %4014 = vmatprep.subr.mxu0 0.0
      %4015 = vmatpush1.xpose.msra.mxu0 0.0
      %4016 = vmatprep.subr.mxu0 0.0
      %4017 = vmatpush1.xpose.msra.mxu0 0.0
      %4018 = vmatprep.subr.mxu0 0.0
      %4019 = vmatpush1.xpose.msra.mxu0 0.0
      %4020 = vmatprep.subr.mxu0 0.0
      %4021 = vmatpush1.xpose.msra.mxu0 0.0
      %4022 = vmatprep.subr.mxu0 0.0
      %4023 = vmatpush1.xpose.msra.mxu0 0.0
      %4024 = vmatprep.subr.mxu0 0.0
      %4025 = vmatpush1.xpose.msra.mxu0 0.0
      %4026 = vmatprep.subr.mxu0 0.0
      %4027 = vmatpush1.xpose.msra.mxu0 0.0
      %4028 = vmatprep.subr.mxu0 0.0
      %4029 = vmatpush1.xpose.msra.mxu0 0.0
      %4030 = vmatprep.subr.mxu0 0.0
      %4031 = vmatpush1.xpose.msra.mxu0 0.0
      %4032 = vmatprep.subr.mxu0 0.0
      %4033 = vmatpush1.xpose.msra.mxu0 0.0
      %4034 = vmatprep.subr.mxu0 0.0
      %4035 = vmatpush1.xpose.msra.mxu0 0.0
      %4036 = vmatprep.subr.mxu0 0.0
      %4037 = vmatpush1.xpose.msra.mxu0 0.0
      %4038 = vmatprep.subr.mxu0 0.0
      %4039 = vmatpush1.xpose.msra.mxu0 0.0
      %4040 = vmatprep.subr.mxu0 0.0
      %4041 = vmatpush1.xpose.msra.mxu0 0.0
      %4042 = vmatprep.subr.mxu0 0.0
      %4043 = vmatpush1.xpose.msra.mxu0 0.0
      %4044 = vmatprep.subr.mxu0 0.0
      %4045 = vmatpush1.xpose.msra.mxu0 0.0
      %4046 = vmatprep.subr.mxu0 0.0
      %4047 = vmatpush1.xpose.msra.mxu0 0.0
      %4048 = vmatprep.subr.mxu0 0.0
      %4049 = vmatpush1.xpose.msra.mxu0 0.0
      %4050 = vmatprep.subr.mxu0 0.0
      %4051 = vmatpush1.xpose.msra.mxu0 0.0
      %4052 = vmatprep.subr.mxu0 0.0
      %4053 = vmatpush1.xpose.msra.mxu0 0.0
      %4054 = vmatprep.subr.mxu0 0.0
      %4055 = vmatpush1.xpose.msra.mxu0 0.0
      %4056 = vmatprep.subr.mxu0 0.0
      %4057 = vmatpush1.xpose.msra.mxu0 0.0
      %4058 = vmatprep.subr.mxu0 0.0
      %4059 = vmatpush1.xpose.msra.mxu0 0.0
      %4060 = vmatprep.subr.mxu0 0.0
      %4061 = vmatpush1.xpose.msra.mxu0 0.0
      %4062 = vmatprep.subr.mxu0 0.0
      %4063 = vmatpush1.xpose.msra.mxu0 0.0
      %4064 = vmatprep.subr.mxu0 0.0
      %4065 = vmatpush1.xpose.msra.mxu0 0.0
      %4066 = vmatprep.subr.mxu0 0.0
      %4067 = vmatpush1.xpose.msra.mxu0 0.0
      %4068 = vmatprep.mubr.f32.mxu0 0.0
      %4069 = vmatmul.mubr.f32.gmra.mrb[0].mxu0 %v3999
      %v4070 = vpop.f32.mrb[0].mxu0
      %v4071 = vadd.f32 %v483, %v4070
      %v4072 = vpop.f32.mrb[0].mxu0
      %4073 = vdwg.mxu0
      %v4074 = vmul.f32 %v4071, 1.442695
      %v4075 = vpow.pop %v4074
      %v4076 = vsel %vm485, %v4075, 0.0
      %4077 = vadd.xlane.f32.xlu0 %v4076
      %v4078 = vpop.xlane.xlu0 %4077
      %v4079 = vrcp.pop %v4078
      %v4080 = vmul.f32 %v4075, %v4079
      %v4082 = vsel %vm485, %v4080, 0
      %4084 = vmatprep.subr.mxu0 0.0
      %4085 = vmatpush1.msra.mxu0 %v3995
      %4086 = vmatprep.subr.mxu0 0.0
      %4087 = vmatpush1.msra.mxu0 0.0
      %4088 = vmatprep.subr.mxu0 0.0
      %4089 = vmatpush1.msra.mxu0 0.0
      %4090 = vmatprep.subr.mxu0 0.0
      %4091 = vmatpush1.msra.mxu0 0.0
      %4092 = vmatprep.subr.mxu0 0.0
      %4093 = vmatpush1.msra.mxu0 0.0
      %4094 = vmatprep.subr.mxu0 0.0
      %4095 = vmatpush1.msra.mxu0 0.0
      %4096 = vmatprep.subr.mxu0 0.0
      %4097 = vmatpush1.msra.mxu0 0.0
      %4098 = vmatprep.subr.mxu0 0.0
      %4099 = vmatpush1.msra.mxu0 0.0
      %4100 = vmatprep.subr.mxu0 0.0
      %4101 = vmatpush1.msra.mxu0 0.0
      %4102 = vmatprep.subr.mxu0 0.0
      %4103 = vmatpush1.msra.mxu0 0.0
      %4104 = vmatprep.subr.mxu0 0.0
      %4105 = vmatpush1.msra.mxu0 0.0
      %4106 = vmatprep.subr.mxu0 0.0
      %4107 = vmatpush1.msra.mxu0 0.0
      %4108 = vmatprep.subr.mxu0 0.0
      %4109 = vmatpush1.msra.mxu0 0.0
      %4110 = vmatprep.subr.mxu0 0.0
      %4111 = vmatpush1.msra.mxu0 0.0
      %4112 = vmatprep.subr.mxu0 0.0
      %4113 = vmatpush1.msra.mxu0 0.0
      %4114 = vmatprep.subr.mxu0 0.0
      %4115 = vmatpush1.msra.mxu0 0.0
      %4116 = vmatprep.subr.mxu0 0.0
      %4117 = vmatpush1.msra.mxu0 0.0
      %4118 = vmatprep.subr.mxu0 0.0
      %4119 = vmatpush1.msra.mxu0 0.0
      %4120 = vmatprep.subr.mxu0 0.0
      %4121 = vmatpush1.msra.mxu0 0.0
      %4122 = vmatprep.subr.mxu0 0.0
      %4123 = vmatpush1.msra.mxu0 0.0
      %4124 = vmatprep.subr.mxu0 0.0
      %4125 = vmatpush1.msra.mxu0 0.0
      %4126 = vmatprep.subr.mxu0 0.0
      %4127 = vmatpush1.msra.mxu0 0.0
      %4128 = vmatprep.subr.mxu0 0.0
      %4129 = vmatpush1.msra.mxu0 0.0
      %4130 = vmatprep.subr.mxu0 0.0
      %4131 = vmatpush1.msra.mxu0 0.0
      %4132 = vmatprep.subr.mxu0 0.0
      %4133 = vmatpush1.msra.mxu0 0.0
      %4134 = vmatprep.subr.mxu0 0.0
      %4135 = vmatpush1.msra.mxu0 0.0
      %4136 = vmatprep.subr.mxu0 0.0
      %4137 = vmatpush1.msra.mxu0 0.0
      %4138 = vmatprep.subr.mxu0 0.0
      %4139 = vmatpush1.msra.mxu0 0.0
      %4140 = vmatprep.subr.mxu0 0.0
      %4141 = vmatpush1.msra.mxu0 0.0
      %4142 = vmatprep.subr.mxu0 0.0
      %4143 = vmatpush1.msra.mxu0 0.0
      %4144 = vmatprep.subr.mxu0 0.0
      %4145 = vmatpush1.msra.mxu0 0.0
      %4146 = vmatprep.subr.mxu0 0.0
      %4147 = vmatpush1.msra.mxu0 0.0
      %4148 = vmatprep.mubr.f32.mxu0 0.0
      %4149 = vmatmul.mubr.f32.gmra.mrb[0].mxu0 %v4082
      %v4150 = vpop.f32.mrb[0].mxu0
      %v4151 = vadd.f32 0.0, %v4150
      %v4152 = vpop.f32.mrb[0].mxu0
      %4153 = vdwg.mxu0
      %v4155 = vsel %vm485, %v4151, 0
      %4157 = vmatprep.subr.mxu0 0.0
      %4158 = vmatpush1.msra.mxu0 %v3763
      %4159 = vmatprep.subr.mxu0 0.0
      %4160 = vmatpush1.msra.mxu0 0.0
      %4161 = vmatprep.subr.mxu0 0.0
      %4162 = vmatpush1.msra.mxu0 0.0
      %4163 = vmatprep.subr.mxu0 0.0
      %4164 = vmatpush1.msra.mxu0 0.0
      %4165 = vmatprep.subr.mxu0 0.0
      %4166 = vmatpush1.msra.mxu0 0.0
      %4167 = vmatprep.subr.mxu0 0.0
      %4168 = vmatpush1.msra.mxu0 0.0
      %4169 = vmatprep.subr.mxu0 0.0
      %4170 = vmatpush1.msra.mxu0 0.0
      %4171 = vmatprep.subr.mxu0 0.0
      %4172 = vmatpush1.msra.mxu0 0.0
      %4173 = vmatprep.subr.mxu0 0.0
      %4174 = vmatpush1.msra.mxu0 0.0
      %4175 = vmatprep.subr.mxu0 0.0
      %4176 = vmatpush1.msra.mxu0 0.0
      %4177 = vmatprep.subr.mxu0 0.0
      %4178 = vmatpush1.msra.mxu0 0.0
      %4179 = vmatprep.subr.mxu0 0.0
      %4180 = vmatpush1.msra.mxu0 0.0
      %4181 = vmatprep.subr.mxu0 0.0
      %4182 = vmatpush1.msra.mxu0 0.0
      %4183 = vmatprep.subr.mxu0 0.0
      %4184 = vmatpush1.msra.mxu0 0.0
      %4185 = vmatprep.subr.mxu0 0.0
      %4186 = vmatpush1.msra.mxu0 0.0
      %4187 = vmatprep.subr.mxu0 0.0
      %4188 = vmatpush1.msra.mxu0 0.0
      %4189 = vmatprep.subr.mxu0 0.0
      %4190 = vmatpush1.msra.mxu0 0.0
      %4191 = vmatprep.subr.mxu0 0.0
      %4192 = vmatpush1.msra.mxu0 0.0
      %4193 = vmatprep.subr.mxu0 0.0
      %4194 = vmatpush1.msra.mxu0 0.0
      %4195 = vmatprep.subr.mxu0 0.0
      %4196 = vmatpush1.msra.mxu0 0.0
      %4197 = vmatprep.subr.mxu0 0.0
      %4198 = vmatpush1.msra.mxu0 0.0
      %4199 = vmatprep.subr.mxu0 0.0
      %4200 = vmatpush1.msra.mxu0 0.0
      %4201 = vmatprep.subr.mxu0 0.0
      %4202 = vmatpush1.msra.mxu0 0.0
      %4203 = vmatprep.subr.mxu0 0.0
      %4204 = vmatpush1.msra.mxu0 0.0
      %4205 = vmatprep.subr.mxu0 0.0
      %4206 = vmatpush1.msra.mxu0 0.0
      %4207 = vmatprep.subr.mxu0 0.0
      %4208 = vmatpush1.msra.mxu0 0.0
      %4209 = vmatprep.subr.mxu0 0.0
      %4210 = vmatpush1.msra.mxu0 0.0
      %4211 = vmatprep.subr.mxu0 0.0
      %4212 = vmatpush1.msra.mxu0 0.0
      %4213 = vmatprep.subr.mxu0 0.0
      %4214 = vmatpush1.msra.mxu0 0.0
      %4215 = vmatprep.subr.mxu0 0.0
      %4216 = vmatpush1.msra.mxu0 0.0
      %4217 = vmatprep.subr.mxu0 0.0
      %4218 = vmatpush1.msra.mxu0 0.0
      %4219 = vmatprep.subr.mxu0 0.0
      %4220 = vmatpush1.msra.mxu0 0.0
      %4221 = vmatprep.mubr.f32.mxu0 0.0
      %4222 = vmatmul.mubr.f32.gmra.mrb[0].mxu0 %v4155
      %v4223 = vpop.f32.mrb[0].mxu0
      %v4224 = vadd.f32 0.0, %v4223
      %v4225 = vpop.f32.mrb[0].mxu0
      %4226 = vdwg.mxu0
      %v4227 = vadd.f32 %v3759, %v4224
      %v4228 = vld [vmem:[%s2354 + $0xec] sm:$0x1]
      %v4229 = vlaneseq
      %v4230 = vshrl.u32 %v4229, 7
      %v4231 = vsub.s32 0, %v4230
      %v4232 = vrot.slane %v4228, %v4231
      %v4233 = vadd.f32 %v4227, %v4232
      %v4234 = vadd.f32 %v2353, %v4233
      %v4235 = vld [vmem:[%s2354 + $0xed] sm:$0x1]
      %v4236 = vld [vmem:[%s2354 + $0xee] sm:$0x1]
      %v4237 = vsel %vm213, %v4234, 0.0
      %4238 = vadd.xlane.f32.xlu0 %v4237
      %v4239 = vpop.xlane.xlu0 %4238
      %v4240 = vmul.f32 %v4239, %v217
      %v4241 = vsub.f32 %v4234, %v4240
      %v4242 = vmul.f32 %v4241, %v4241
      %v4243 = vsel %vm213, %v4242, 0.0
      %4244 = vadd.xlane.f32.xlu0 %v4243
      %v4245 = vpop.xlane.xlu0 %4244
      %v4246 = vmul.f32 %v4245, %v217
      %v4247 = vadd.f32 %v4246, 1e-05
      %v4248 = vrsqrt.pop %v4247
      %v4249 = vmul.f32 %v4241, %v4248
      %v4250 = vlaneseq
      %v4251 = vshrl.u32 %v4250, 7
      %v4252 = vsub.s32 0, %v4251
      %v4253 = vrot.slane %v4235, %v4252
      %v4254 = vmul.f32 %v4249, %v4253
      %v4255 = vlaneseq
      %v4256 = vshrl.u32 %v4255, 7
      %v4257 = vsub.s32 0, %v4256
      %v4258 = vrot.slane %v4236, %v4257
      %v4259 = vadd.f32 %v4254, %v4258
      %v4260 = vld [vmem:[%s2354 + $0x80] sm:$0xff]
      %v4261 = vld [vmem:[%s2354 + $0x88] sm:$0xff]
      %v4262 = vld [vmem:[%s2354 + $0x90] sm:$0xff]
      %v4263 = vld [vmem:[%s2354 + $0x98] sm:$0xff]
      %v4264 = vld [vmem:[%s2354 + $0xef] sm:$0x1]
      %v4265 = vlaneseq
      %v4266 = vshrl.u32 %v4265, 7
      %v4267 = vsub.s32 0, %v4266
      %v4268 = vrot.slane %v4264, %v4267
      %v4270 = vsel %vm213, %v4259, 0
      %4272 = vmatprep.subr.mxu0 0.0
      %4273 = vmatpush1.msra.mxu0 %v4260
      %4274 = vmatprep.subr.mxu0 0.0
      %4275 = vmatpush1.msra.mxu0 %v4261
      %4276 = vmatprep.subr.mxu0 0.0
      %4277 = vmatpush1.msra.mxu0 %v4262
      %4278 = vmatprep.subr.mxu0 0.0
      %4279 = vmatpush1.msra.mxu0 %v4263
      %4280 = vmatprep.subr.mxu0 0.0
      %4281 = vmatpush1.msra.mxu0 0.0
      %4282 = vmatprep.subr.mxu0 0.0
      %4283 = vmatpush1.msra.mxu0 0.0
      %4284 = vmatprep.subr.mxu0 0.0
      %4285 = vmatpush1.msra.mxu0 0.0
      %4286 = vmatprep.subr.mxu0 0.0
      %4287 = vmatpush1.msra.mxu0 0.0
      %4288 = vmatprep.subr.mxu0 0.0
      %4289 = vmatpush1.msra.mxu0 0.0
      %4290 = vmatprep.subr.mxu0 0.0
      %4291 = vmatpush1.msra.mxu0 0.0
      %4292 = vmatprep.subr.mxu0 0.0
      %4293 = vmatpush1.msra.mxu0 0.0
      %4294 = vmatprep.subr.mxu0 0.0
      %4295 = vmatpush1.msra.mxu0 0.0
      %4296 = vmatprep.subr.mxu0 0.0
      %4297 = vmatpush1.msra.mxu0 0.0
      %4298 = vmatprep.subr.mxu0 0.0
      %4299 = vmatpush1.msra.mxu0 0.0
      %4300 = vmatprep.subr.mxu0 0.0
      %4301 = vmatpush1.msra.mxu0 0.0
      %4302 = vmatprep.subr.mxu0 0.0
      %4303 = vmatpush1.msra.mxu0 0.0
      %4304 = vmatprep.subr.mxu0 0.0
      %4305 = vmatpush1.msra.mxu0 0.0
      %4306 = vmatprep.subr.mxu0 0.0
      %4307 = vmatpush1.msra.mxu0 0.0
      %4308 = vmatprep.subr.mxu0 0.0
      %4309 = vmatpush1.msra.mxu0 0.0
      %4310 = vmatprep.subr.mxu0 0.0
      %4311 = vmatpush1.msra.mxu0 0.0
      %4312 = vmatprep.subr.mxu0 0.0
      %4313 = vmatpush1.msra.mxu0 0.0
      %4314 = vmatprep.subr.mxu0 0.0
      %4315 = vmatpush1.msra.mxu0 0.0
      %4316 = vmatprep.subr.mxu0 0.0
      %4317 = vmatpush1.msra.mxu0 0.0
      %4318 = vmatprep.subr.mxu0 0.0
      %4319 = vmatpush1.msra.mxu0 0.0
      %4320 = vmatprep.subr.mxu0 0.0
      %4321 = vmatpush1.msra.mxu0 0.0
      %4322 = vmatprep.subr.mxu0 0.0
      %4323 = vmatpush1.msra.mxu0 0.0
      %4324 = vmatprep.subr.mxu0 0.0
      %4325 = vmatpush1.msra.mxu0 0.0
      %4326 = vmatprep.subr.mxu0 0.0
      %4327 = vmatpush1.msra.mxu0 0.0
      %4328 = vmatprep.subr.mxu0 0.0
      %4329 = vmatpush1.msra.mxu0 0.0
      %4330 = vmatprep.subr.mxu0 0.0
      %4331 = vmatpush1.msra.mxu0 0.0
      %4332 = vmatprep.subr.mxu0 0.0
      %4333 = vmatpush1.msra.mxu0 0.0
      %4334 = vmatprep.subr.mxu0 0.0
      %4335 = vmatpush1.msra.mxu0 0.0
      %4336 = vmatprep.mubr.f32.mxu0 0.0
      %4337 = vmatmul.mubr.f32.gmra.mrb[0].mxu0 %v4270
      %v4338 = vpop.f32.mrb[0].mxu0
      %v4339 = vadd.f32 %v4268, %v4338
      %v4340 = vpop.f32.mrb[0].mxu0
      %4341 = vdwg.mxu0
      %v4342 = vmul.f32 %v4339, %v4339
      %v4343 = vmul.f32 %v4339, %v4342
      %v4344 = vmul.f32 %v4343, 0.044715
      %v4345 = vadd.f32 %v4339, %v4344
      %v4346 = vmul.f32 %v4345, 0.7978846
      %v4347 = vtanh.pop %v4346
      %v4348 = vadd.f32 %v4347, 1.0
      %v4349 = vmul.f32 %v4348, 0.5
      %v4350 = vmul.f32 %v4339, %v4349
      %v4351 = vld [vmem:[%s2354 + $0xa0] sm:$0xff]
      %v4352 = vld [vmem:[%s2354 + $0xa8] sm:$0xff]
      %v4353 = vld [vmem:[%s2354 + $0xb0] sm:$0xff]
      %v4354 = vld [vmem:[%s2354 + $0xb8] sm:$0xff]
      %v4355 = vld [vmem:[%s2354 + $0xc0] sm:$0xff]
      %v4356 = vld [vmem:[%s2354 + $0xc8] sm:$0xff]
      %v4357 = vld [vmem:[%s2354 + $0xd0] sm:$0xff]
      %v4358 = vld [vmem:[%s2354 + $0xd8] sm:$0xff]
      %v4359 = vld [vmem:[%s2354 + $0xf0] sm:$0x1]
      %v4360 = vlaneseq
      %v4361 = vshrl.u32 %v4360, 7
      %v4362 = vsub.s32 0, %v4361
      %v4363 = vrot.slane %v4359, %v4362
      %v4365 = vsel %vm2254, %v4350, 0
      %4367 = vmatprep.subr.mxu0 0.0
      %4368 = vmatpush1.msra.mxu0 %v4351
      %4369 = vmatprep.subr.mxu0 0.0
      %4370 = vmatpush1.msra.mxu0 %v4352
      %4371 = vmatprep.subr.mxu0 0.0
      %4372 = vmatpush1.msra.mxu0 %v4353
      %4373 = vmatprep.subr.mxu0 0.0
      %4374 = vmatpush1.msra.mxu0 %v4354
      %4375 = vmatprep.subr.mxu0 0.0
      %4376 = vmatpush1.msra.mxu0 %v4355
      %4377 = vmatprep.subr.mxu0 0.0
      %4378 = vmatpush1.msra.mxu0 %v4356
      %4379 = vmatprep.subr.mxu0 0.0
      %4380 = vmatpush1.msra.mxu0 %v4357
      %4381 = vmatprep.subr.mxu0 0.0
      %4382 = vmatpush1.msra.mxu0 %v4358
      %4383 = vmatprep.subr.mxu0 0.0
      %4384 = vmatpush1.msra.mxu0 0.0
      %4385 = vmatprep.subr.mxu0 0.0
      %4386 = vmatpush1.msra.mxu0 0.0
      %4387 = vmatprep.subr.mxu0 0.0
      %4388 = vmatpush1.msra.mxu0 0.0
      %4389 = vmatprep.subr.mxu0 0.0
      %4390 = vmatpush1.msra.mxu0 0.0
      %4391 = vmatprep.subr.mxu0 0.0
      %4392 = vmatpush1.msra.mxu0 0.0
      %4393 = vmatprep.subr.mxu0 0.0
      %4394 = vmatpush1.msra.mxu0 0.0
      %4395 = vmatprep.subr.mxu0 0.0
      %4396 = vmatpush1.msra.mxu0 0.0
      %4397 = vmatprep.subr.mxu0 0.0
      %4398 = vmatpush1.msra.mxu0 0.0
      %4399 = vmatprep.subr.mxu0 0.0
      %4400 = vmatpush1.msra.mxu0 0.0
      %4401 = vmatprep.subr.mxu0 0.0
      %4402 = vmatpush1.msra.mxu0 0.0
      %4403 = vmatprep.subr.mxu0 0.0
      %4404 = vmatpush1.msra.mxu0 0.0
      %4405 = vmatprep.subr.mxu0 0.0
      %4406 = vmatpush1.msra.mxu0 0.0
      %4407 = vmatprep.subr.mxu0 0.0
      %4408 = vmatpush1.msra.mxu0 0.0
      %4409 = vmatprep.subr.mxu0 0.0
      %4410 = vmatpush1.msra.mxu0 0.0
      %4411 = vmatprep.subr.mxu0 0.0
      %4412 = vmatpush1.msra.mxu0 0.0
      %4413 = vmatprep.subr.mxu0 0.0
      %4414 = vmatpush1.msra.mxu0 0.0
      %4415 = vmatprep.subr.mxu0 0.0
      %4416 = vmatpush1.msra.mxu0 0.0
      %4417 = vmatprep.subr.mxu0 0.0
      %4418 = vmatpush1.msra.mxu0 0.0
      %4419 = vmatprep.subr.mxu0 0.0
      %4420 = vmatpush1.msra.mxu0 0.0
      %4421 = vmatprep.subr.mxu0 0.0
      %4422 = vmatpush1.msra.mxu0 0.0
      %4423 = vmatprep.subr.mxu0 0.0
      %4424 = vmatpush1.msra.mxu0 0.0
      %4425 = vmatprep.subr.mxu0 0.0
      %4426 = vmatpush1.msra.mxu0 0.0
      %4427 = vmatprep.subr.mxu0 0.0
      %4428 = vmatpush1.msra.mxu0 0.0
      %4429 = vmatprep.subr.mxu0 0.0
      %4430 = vmatpush1.msra.mxu0 0.0
      %4431 = vmatprep.mubr.f32.mxu0 0.0
      %4432 = vmatmul.mubr.f32.gmra.mrb[0].mxu0 %v4365
      %v4433 = vpop.f32.mrb[0].mxu0
      %v4434 = vadd.f32 %v4363, %v4433
      %v4435 = vpop.f32.mrb[0].mxu0
      %4436 = vdwg.mxu0
      %v4437 = vadd.f32 %v4259, %v4434
      %v4438 = vld [vmem:[%s2354 + $0xf1] sm:$0x1]
      %v4439 = vld [vmem:[%s2354 + $0xf2] sm:$0x1]
      %v4440 = vsel %vm213, %v4437, 0.0
      %4441 = vadd.xlane.f32.xlu0 %v4440
      %v4442 = vpop.xlane.xlu0 %4441
      %v4443 = vmul.f32 %v4442, %v217
      %v4444 = vsub.f32 %v4437, %v4443
      %v4445 = vmul.f32 %v4444, %v4444
      %v4446 = vsel %vm213, %v4445, 0.0
      %4447 = vadd.xlane.f32.xlu0 %v4446
      %v4448 = vpop.xlane.xlu0 %4447
      %v4449 = vmul.f32 %v4448, %v217
      %v4450 = vadd.f32 %v4449, 1e-05
      %v4451 = vrsqrt.pop %v4450
      %v4452 = vmul.f32 %v4444, %v4451
      %v4453 = vlaneseq
      %v4454 = vshrl.u32 %v4453, 7
      %v4455 = vsub.s32 0, %v4454
      %v4456 = vrot.slane %v4438, %v4455
      %v4457 = vmul.f32 %v4452, %v4456
      %v4458 = vlaneseq
      %v4459 = vshrl.u32 %v4458, 7
      %v4460 = vsub.s32 0, %v4459
      %v4461 = vrot.slane %v4439, %v4460
      %v4462 = vadd.f32 %v4457, %v4461
      %v4463 = vld [vmem:[%s3 + $0x2] sm:$0xff]
      %v4464 = vld [vmem:[%s3 + $0xa] sm:$0xff]
      %v4465 = vld [vmem:[%s3 + $0x12] sm:$0xff]
      %v4466 = vld [vmem:[%s3 + $0x1a] sm:$0xff]
      %v4467 = vld [vmem:[%s3 + $0x22] sm:$0x1]
      %v4468 = vlaneseq
      %v4469 = vshrl.u32 %v4468, 7
      %v4470 = vsub.s32 0, %v4469
      %v4471 = vrot.slane %v4467, %v4470
      %v4473 = vsel %vm213, %v4462, 0
      %4475 = vmatprep.subr.mxu0 0.0
      %4476 = vmatpush1.msra.mxu0 %v4463
      %4477 = vmatprep.subr.mxu0 0.0
      %4478 = vmatpush1.msra.mxu0 %v4464
      %4479 = vmatprep.subr.mxu0 0.0
      %4480 = vmatpush1.msra.mxu0 %v4465
      %4481 = vmatprep.subr.mxu0 0.0
      %4482 = vmatpush1.msra.mxu0 %v4466
      %4483 = vmatprep.subr.mxu0 0.0
      %4484 = vmatpush1.msra.mxu0 0.0
      %4485 = vmatprep.subr.mxu0 0.0
      %4486 = vmatpush1.msra.mxu0 0.0
      %4487 = vmatprep.subr.mxu0 0.0
      %4488 = vmatpush1.msra.mxu0 0.0
      %4489 = vmatprep.subr.mxu0 0.0
      %4490 = vmatpush1.msra.mxu0 0.0
      %4491 = vmatprep.subr.mxu0 0.0
      %4492 = vmatpush1.msra.mxu0 0.0
      %4493 = vmatprep.subr.mxu0 0.0
      %4494 = vmatpush1.msra.mxu0 0.0
      %4495 = vmatprep.subr.mxu0 0.0
      %4496 = vmatpush1.msra.mxu0 0.0
      %4497 = vmatprep.subr.mxu0 0.0
      %4498 = vmatpush1.msra.mxu0 0.0
      %4499 = vmatprep.subr.mxu0 0.0
      %4500 = vmatpush1.msra.mxu0 0.0
      %4501 = vmatprep.subr.mxu0 0.0
      %4502 = vmatpush1.msra.mxu0 0.0
      %4503 = vmatprep.subr.mxu0 0.0
      %4504 = vmatpush1.msra.mxu0 0.0
      %4505 = vmatprep.subr.mxu0 0.0
      %4506 = vmatpush1.msra.mxu0 0.0
      %4507 = vmatprep.subr.mxu0 0.0
      %4508 = vmatpush1.msra.mxu0 0.0
      %4509 = vmatprep.subr.mxu0 0.0
      %4510 = vmatpush1.msra.mxu0 0.0
      %4511 = vmatprep.subr.mxu0 0.0
      %4512 = vmatpush1.msra.mxu0 0.0
      %4513 = vmatprep.subr.mxu0 0.0
      %4514 = vmatpush1.msra.mxu0 0.0
      %4515 = vmatprep.subr.mxu0 0.0
      %4516 = vmatpush1.msra.mxu0 0.0
      %4517 = vmatprep.subr.mxu0 0.0
      %4518 = vmatpush1.msra.mxu0 0.0
      %4519 = vmatprep.subr.mxu0 0.0
      %4520 = vmatpush1.msra.mxu0 0.0
      %4521 = vmatprep.subr.mxu0 0.0
      %4522 = vmatpush1.msra.mxu0 0.0
      %4523 = vmatprep.subr.mxu0 0.0
      %4524 = vmatpush1.msra.mxu0 0.0
      %4525 = vmatprep.subr.mxu0 0.0
      %4526 = vmatpush1.msra.mxu0 0.0
      %4527 = vmatprep.subr.mxu0 0.0
      %4528 = vmatpush1.msra.mxu0 0.0
      %4529 = vmatprep.subr.mxu0 0.0
      %4530 = vmatpush1.msra.mxu0 0.0
      %4531 = vmatprep.subr.mxu0 0.0
      %4532 = vmatpush1.msra.mxu0 0.0
      %4533 = vmatprep.subr.mxu0 0.0
      %4534 = vmatpush1.msra.mxu0 0.0
      %4535 = vmatprep.subr.mxu0 0.0
      %4536 = vmatpush1.msra.mxu0 0.0
      %4537 = vmatprep.subr.mxu0 0.0
      %4538 = vmatpush1.msra.mxu0 0.0
      %4539 = vmatprep.mubr.f32.mxu0 0.0
      %4540 = vmatmul.mubr.f32.gmra.mrb[0].mxu0 %v4473
      %v4541 = vpop.f32.mrb[0].mxu0
      %v4542 = vadd.f32 %v4471, %v4541
      %v4543 = vpop.f32.mrb[0].mxu0
      %4544 = vdwg.mxu0
      %v4545 = vtanh.pop %v4542
      %v4546 = vld [vmem:[%s3 + $0x23] sm:$0xff]
      %v4547 = vld [vmem:[%s3 + $0x2b] sm:$0xff]
      %v4548 = vld [vmem:[%s3 + $0x33] sm:$0xff]
      %v4549 = vld [vmem:[%s3 + $0x3b] sm:$0xff]
      %v4550 = vld [vmem:[%s3 + $0x43] sm:$0x1]
      %v4551 = vlaneseq
      %v4552 = vshrl.u32 %v4551, 7
      %v4553 = vsub.s32 0, %v4552
      %v4554 = vrot.slane %v4550, %v4553
      %v4556 = vsel %vm213, %v4545, 0
      %4558 = vmatprep.subr.mxu0 0.0
      %4559 = vmatpush1.msra.mxu0 %v4546
      %4560 = vmatprep.subr.mxu0 0.0
      %4561 = vmatpush1.msra.mxu0 %v4547
      %4562 = vmatprep.subr.mxu0 0.0
      %4563 = vmatpush1.msra.mxu0 %v4548
      %4564 = vmatprep.subr.mxu0 0.0
      %4565 = vmatpush1.msra.mxu0 %v4549
      %4566 = vmatprep.subr.mxu0 0.0
      %4567 = vmatpush1.msra.mxu0 0.0
      %4568 = vmatprep.subr.mxu0 0.0
      %4569 = vmatpush1.msra.mxu0 0.0
      %4570 = vmatprep.subr.mxu0 0.0
      %4571 = vmatpush1.msra.mxu0 0.0
      %4572 = vmatprep.subr.mxu0 0.0
      %4573 = vmatpush1.msra.mxu0 0.0
      %4574 = vmatprep.subr.mxu0 0.0
      %4575 = vmatpush1.msra.mxu0 0.0
      %4576 = vmatprep.subr.mxu0 0.0
      %4577 = vmatpush1.msra.mxu0 0.0
      %4578 = vmatprep.subr.mxu0 0.0
      %4579 = vmatpush1.msra.mxu0 0.0
      %4580 = vmatprep.subr.mxu0 0.0
      %4581 = vmatpush1.msra.mxu0 0.0
      %4582 = vmatprep.subr.mxu0 0.0
      %4583 = vmatpush1.msra.mxu0 0.0
      %4584 = vmatprep.subr.mxu0 0.0
      %4585 = vmatpush1.msra.mxu0 0.0
      %4586 = vmatprep.subr.mxu0 0.0
      %4587 = vmatpush1.msra.mxu0 0.0
      %4588 = vmatprep.subr.mxu0 0.0
      %4589 = vmatpush1.msra.mxu0 0.0
      %4590 = vmatprep.subr.mxu0 0.0
      %4591 = vmatpush1.msra.mxu0 0.0
      %4592 = vmatprep.subr.mxu0 0.0
      %4593 = vmatpush1.msra.mxu0 0.0
      %4594 = vmatprep.subr.mxu0 0.0
      %4595 = vmatpush1.msra.mxu0 0.0
      %4596 = vmatprep.subr.mxu0 0.0
      %4597 = vmatpush1.msra.mxu0 0.0
      %4598 = vmatprep.subr.mxu0 0.0
      %4599 = vmatpush1.msra.mxu0 0.0
      %4600 = vmatprep.subr.mxu0 0.0
      %4601 = vmatpush1.msra.mxu0 0.0
      %4602 = vmatprep.subr.mxu0 0.0
      %4603 = vmatpush1.msra.mxu0 0.0
      %4604 = vmatprep.subr.mxu0 0.0
      %4605 = vmatpush1.msra.mxu0 0.0
      %4606 = vmatprep.subr.mxu0 0.0
      %4607 = vmatpush1.msra.mxu0 0.0
      %4608 = vmatprep.subr.mxu0 0.0
      %4609 = vmatpush1.msra.mxu0 0.0
      %4610 = vmatprep.subr.mxu0 0.0
      %4611 = vmatpush1.msra.mxu0 0.0
      %4612 = vmatprep.subr.mxu0 0.0
      %4613 = vmatpush1.msra.mxu0 0.0
      %4614 = vmatprep.subr.mxu0 0.0
      %4615 = vmatpush1.msra.mxu0 0.0
      %4616 = vmatprep.subr.mxu0 0.0
      %4617 = vmatpush1.msra.mxu0 0.0
      %4618 = vmatprep.subr.mxu0 0.0
      %4619 = vmatpush1.msra.mxu0 0.0
      %4620 = vmatprep.subr.mxu0 0.0
      %4621 = vmatpush1.msra.mxu0 0.0
      %4622 = vmatprep.mubr.f32.mxu0 0.0
      %4623 = vmatmul.mubr.f32.gmra.mrb[0].mxu0 %v4556
      %v4624 = vpop.f32.mrb[0].mxu0
      %v4625 = vadd.f32 %v4554, %v4624
      %v4626 = vpop.f32.mrb[0].mxu0
      %4627 = vdwg.mxu0
      %4628 = vst [vmem:[%s206] sm:$0xff] %v4625
      %p4629 = scmp.lt.s32.totalorder %s15, 1
      %s4630 = scalar_select %p4629, %s15, 1
      %s4631 = smul.addr %s4630, 8
      %s4632 = scalar_lea.vmem %s4, %s4631
      // Predicated region
      $region37: #{mask_classifier_forward.1} parent=35 // pred_check
        %p4633 = pneg %p127
      $region38: #{mask_classifier_forward.1} parent=35 // pred_check_branch
        %4635 = sbr.rel (%p4633) target = $region40
      $region39: #{mask_classifier_forward.1} parent=35 // pred_region
        _
      $region40: #{mask_classifier_forward.1} parent=35 // pred_fallthru
        _
    $region36: #{mask_classifier_forward.1} parent=5 // pred_fallthru
      _
    %p4636 = scmp.le.s32.totalorder 2, %s10
    // Predicated region
    $region41: #{mask_classifier_forward.1} parent=5 // pred_check
      %p4637 = pneg %p4636
    $region42: #{mask_classifier_forward.1} parent=5 // pred_check_branch
      %4639 = sbr.rel (%p4637) target = $region44
    $region43: #{mask_classifier_forward.1} parent=5 // pred_region
      %s4640 = ssub.s32 %s10, 2
      // Predicated region
      $region45: #{mask_classifier_forward.1} parent=43 // pred_check
        %p4641 = pneg %p133
      $region46: #{mask_classifier_forward.1} parent=43 // pred_check_branch
        %4643 = sbr.rel (%p4641) target = $region48
      $region47: #{mask_classifier_forward.1} parent=43 // pred_region
        %p4644 = scmp.lt.s32.totalorder %s16, 1
        %s4645 = scalar_select %p4644, %s16, 1
        %s4646 = smul.addr %s4645, 8
        %s4647 = scalar_lea.vmem %s4, %s4646
      $region48: #{mask_classifier_forward.1} parent=43 // pred_fallthru
        _
    $region44: #{mask_classifier_forward.1} parent=5 // pred_fallthru
      _
  $region6: #{mask_classifier_forward.1} parent=0 // loop_footer
    %s14 = sadd.s32 1, %s10
  $region7: #{mask_classifier_forward.1} parent=0 // loop_footer_branch
    %9 = sbr.rel target = $region3
  $region8: #{mask_classifier_forward.1} parent=0 // loop_exit
    _

</llo_original>
